<compile_context>
chip_gen: v7x
topology: tpu7x:2x2x1
jax: 0.10.0
libtpu: 0.0.40
codegen_flags: <defaults>
</compile_context>

<pallas_src>
import functools

import numpy as np
import jax
import jax.numpy as jnp
from jax.experimental import pallas as pl
from jax.experimental.pallas import tpu as pltpu

EPS = 1e-5  # nn.LayerNorm default eps


# ----------------------------- kernel helpers -----------------------------

def _layernorm(x, g, b):
    mu = jnp.mean(x, axis=-1, keepdims=True)
    xc = x - mu
    var = jnp.mean(xc * xc, axis=-1, keepdims=True)
    return xc * jax.lax.rsqrt(var + EPS) * g + b


# ------------------------------- fused kernel ------------------------------

def fused_kernel(n_heads,
                 # layer-invariant inputs (block index constant over grid)
                 x_ref, win_ref, bin_ref, pos_ref,
                 te_ref, wt_ref, bt_ref,
                 bias_ref, valid_ref,
                 # per-layer stacked weights (block index = layer id)
                 wqkv_ref, bqkv_ref, wtm_ref, btm_ref,
                 w1_ref, b1_ref, w2_ref, b2_ref, ln_ref,
                 # output (VMEM-resident activations) + scratch
                 o_ref, tep_ref):
    l = pl.program_id(0)

    # ---- layer 0: fused embed (input_projection + positional encoding) and
    #      temporal_projection; both stay VMEM-resident for every layer ----
    @pl.when(l == 0)
    def _():
        o_ref[...] = (jnp.dot(x_ref[...], win_ref[...],
                              preferred_element_type=jnp.float32)
                      + bin_ref[...] + pos_ref[...])
        tep_ref[...] = (jnp.dot(te_ref[...], wt_ref[...],
                                preferred_element_type=jnp.float32)
                        + bt_ref[...])

    x = o_ref[...]                      # [N, D] f32 activations (resident)
    N, D = x.shape
    H = n_heads
    HD = H * D
    ln = ln_ref[0]                      # [6, D] LayerNorm gammas/betas
    bias = bias_ref[...].astype(jnp.float32)   # bf16 mask -> f32 once/layer

    # ---- TransformerConv (concat=False => mean over heads) ----
    # single fused Q|K|V|skip projection: [N, D] x [D, (3H+1)*D], bf16 MXU
    proj = (jnp.dot(x.astype(jnp.bfloat16), wqkv_ref[0],
                    preferred_element_type=jnp.float32)
            + bqkv_ref[0])              # f32 [N, (3H+1)*D]

    # Per-head unrolled attention: lane-aligned 128-wide slices of proj feed
    # the two matmuls directly; only one [N, N] score block is live at a time.
    # 1/sqrt(D) is folded into wq (init_params); 1/H is folded into valid_ref.
    att_sum = jnp.zeros((N, D), jnp.float32)
    for h in range(H):
        qh = proj[:, h * D:(h + 1) * D].astype(jnp.bfloat16)
        kh = proj[:, HD + h * D:HD + (h + 1) * D].astype(jnp.bfloat16)
        vh = proj[:, 2 * HD + h * D:2 * HD + (h + 1) * D].astype(jnp.bfloat16)
        s = jax.lax.dot_general(qh, kh, (((1,), (1,)), ((), ())),
                                preferred_element_type=jnp.float32)  # [N, N]
        s = s + bias                    # additive edge mask (f32 softmax math)
        m = jnp.max(s, axis=-1, keepdims=True)
        p = jnp.exp(s - m)
        p = p * pl.reciprocal(jnp.sum(p, axis=-1, keepdims=True), approx=True)
        att_sum = att_sum + jnp.dot(p.astype(jnp.bfloat16), vh,
                                    preferred_element_type=jnp.float32)

    skip = proj[:, 3 * HD:]             # root/skip linear output
    # valid_ref already contains (has_incoming_edge) / n_heads
    graph_out = att_sum * valid_ref[...] + skip

    x1 = _layernorm(x + graph_out, ln[0:1], ln[1:2])

    # ---- temporal MultiheadAttention with seq_len == 1:
    #      softmax over one key == 1, so output == out_proj(v_proj(te));
    #      the two affine maps were folded offline into (wtm, btm) ----
    temp_out = (jnp.dot(tep_ref[...].astype(jnp.bfloat16), wtm_ref[0],
                        preferred_element_type=jnp.float32) + btm_ref[0])
    x2 = _layernorm(x1 + temp_out, ln[2:3], ln[3:4])

    # ---- FFN: Linear -> ReLU -> Linear (bf16 MXU inputs, f32 accumulate) ----
    h1 = jnp.maximum(jnp.dot(x2.astype(jnp.bfloat16), w1_ref[0],
                             preferred_element_type=jnp.float32) + b1_ref[0],
                     0.0)
    ffn = (jnp.dot(h1.astype(jnp.bfloat16), w2_ref[0],
                   preferred_element_type=jnp.float32) + b2_ref[0])
    o_ref[...] = _layernorm(x2 + ffn, ln[4:5], ln[5:6])


# ------------------------------- wrapper ------------------------------------

def _full_spec(a):
    nd = a.ndim
    return pl.BlockSpec(a.shape, lambda l, nd=nd: (0,) * nd)


def _layer_spec(a):
    nd = a.ndim
    return pl.BlockSpec((1,) + a.shape[1:],
                        lambda l, nd=nd: (l,) + (0,) * (nd - 1))


def temporal_graph_transformer(params, x, edge_index, temporal_encoding, n_heads):
    N = x.shape[0]
    D = params['win'].shape[1]
    L = params['w_qkvs'].shape[0]
    pos = params['pos'][:N]             # positional_encoding(arange(N))

    # dense adjacency -> head-invariant additive mask (bf16, bf16-safe -1e9)
    # + per-row validity with the 1/n_heads head-mean folded in
    adj = jnp.zeros((N, N), jnp.float32).at[edge_index[1], edge_index[0]].set(1.0)
    bias = jnp.where(adj > 0.0, 0.0, -1e9).astype(jnp.bfloat16)
    valid = ((jnp.sum(adj, axis=-1, keepdims=True) > 0.0).astype(jnp.float32)
             / float(n_heads))

    inputs = (x, params['win'], params['bin'], pos,
              temporal_encoding, params['wt'], params['bt'],
              bias, valid,
              params['w_qkvs'], params['b_qkvs'],
              params['w_temp'], params['b_temp'],
              params['w1'], params['b1'], params['w2'], params['b2'],
              params['ln'])
    n_invariant = 9
    in_specs = ([_full_spec(a) for a in inputs[:n_invariant]]
                + [_layer_spec(a) for a in inputs[n_invariant:]])

    return pl.pallas_call(
        functools.partial(fused_kernel, n_heads),
        out_shape=jax.ShapeDtypeStruct((N, D), jnp.float32),
        grid_spec=pltpu.PrefetchScalarGridSpec(
            num_scalar_prefetch=0,
            grid=(L,),
            in_specs=in_specs,
            out_specs=pl.BlockSpec((N, D), lambda l: (0, 0)),
            scratch_shapes=[pltpu.VMEM((N, D), jnp.float32)],  # temporal proj
        ),
        compiler_params=pltpu.CompilerParams(
            dimension_semantics=("arbitrary",),       # layers are sequential
            # TODO(synk): raise toward ~96 MiB on v6e (<=48 MiB on v7x) once N
            # grows and attention is flash-tiled; 32 MiB is ample at toy sizes.
            vmem_limit_bytes=32 * 1024 * 1024,
        ),
    )(*inputs)


# ------------------------- parameter construction ---------------------------

def init_linear(key, fan_in, fan_out):
    k1, k2 = jax.random.split(key)
    w = jax.random.normal(k1, (fan_in, fan_out), jnp.float32) * (1.0 / np.sqrt(fan_in))
    b = jax.random.normal(k2, (1, fan_out), jnp.float32) * 0.01
    return w, b


def init_params(key, input_dim, d_model, n_heads, n_layers, max_nodes):
    keys = jax.random.split(key, 3 + n_layers)
    params = {}
    params['win'], params['bin'] = init_linear(keys[0], input_dim, d_model)
    params['pos'] = jax.random.normal(keys[1], (max_nodes, d_model), jnp.float32) * 0.02
    params['wt'], params['bt'] = init_linear(keys[2], d_model, d_model)

    scale = float(1.0 / np.sqrt(d_model))   # TransformerConv: 1/sqrt(out_channels)

    wqkvs, bqkvs, wtemp, btemp = [], [], [], []
    w1s, b1s, w2s, b2s, lns = [], [], [], [], []
    ones = jnp.ones((d_model,), jnp.float32)
    zeros = jnp.zeros((d_model,), jnp.float32)
    for layer in range(n_layers):
        lk = jax.random.split(keys[3 + layer], 8)
        # TransformerConv projections (heads * out_channels == n_heads * d_model)
        wq, bq = init_linear(lk[0], d_model, n_heads * d_model)
        wq, bq = wq * scale, bq * scale       # fold 1/sqrt(D) into Q (exact, f32)
        wk, bk = init_linear(lk[1], d_model, n_heads * d_model)
        wv, bv = init_linear(lk[2], d_model, n_heads * d_model)
        ws, bs = init_linear(lk[3], d_model, d_model)       # root/skip linear
        wqkvs.append(jnp.concatenate([wq, wk, wv, ws], axis=1))
        bqkvs.append(jnp.concatenate([bq, bk, bv, bs], axis=1))
        # MultiheadAttention (seq_len==1): only v_proj and out_proj matter;
        # fold the two affine maps into one (exact in f32 up to rounding order).
        wvm, bvm = init_linear(lk[4], d_model, d_model)
        wom, bom = init_linear(lk[5], d_model, d_model)
        wtemp.append(wvm @ wom)
        btemp.append(bvm @ wom + bom)
        # FFN
        w1, b1 = init_linear(lk[6], d_model, 4 * d_model)
        w2, b2 = init_linear(lk[7], 4 * d_model, d_model)
        w1s.append(w1); b1s.append(b1); w2s.append(w2); b2s.append(b2)
        # LayerNorms 1..3 (gamma=1, beta=0) packed as one [6, D] tensor
        lns.append(jnp.stack([ones, zeros, ones, zeros, ones, zeros], axis=0))

    bf16 = jnp.bfloat16
    # large streamed weight matrices in bf16 (halves per-layer HBM->VMEM DMA);
    # biases / LayerNorm params stay f32 (added after f32 accumulation).
    params['w_qkvs'] = jnp.stack(wqkvs).astype(bf16)   # [L, D, (3H+1)*D]
    params['b_qkvs'] = jnp.stack(bqkvs)                # [L, 1, (3H+1)*D]
    params['w_temp'] = jnp.stack(wtemp).astype(bf16)   # [L, D, D]
    params['b_temp'] = jnp.stack(btemp)                # [L, 1, D]
    params['w1'] = jnp.stack(w1s).astype(bf16)         # [L, D, 4D]
    params['b1'] = jnp.stack(b1s)                      # [L, 1, 4D]
    params['w2'] = jnp.stack(w2s).astype(bf16)         # [L, 4D, D]
    params['b2'] = jnp.stack(b2s)                      # [L, 1, D]
    params['ln'] = jnp.stack(lns)                      # [L, 6, D]
    return params


# TODO(synk): link_predictor / predict_links is not exercised by forward(data);
# it would be another chain of small linear kernels + sigmoid if needed.


if __name__ == "__main__":
    # small, forward-consistent shapes; d_model=128 keeps everything lane-dense
    N, INPUT_DIM, D_MODEL, N_HEADS, N_LAYERS, MAX_NODES = 16, 16, 128, 4, 2, 64

    key = jax.random.PRNGKey(0)
    kp, kx, kt = jax.random.split(key, 3)

    params = init_params(kp, INPUT_DIM, D_MODEL, N_HEADS, N_LAYERS, MAX_NODES)

    x = jax.random.normal(kx, (N, INPUT_DIM), jnp.float32)
    temporal_encoding = jax.random.normal(kt, (N, D_MODEL), jnp.float32)

    # deterministic, duplicate-free edge list: each node i receives edges from
    # (i+1)%N, (i+5)%N, (i+9)%N
    dst = np.repeat(np.arange(N), 3)
    src = np.concatenate([(np.arange(N) + o) % N
                          for o in (1, 5, 9)]).reshape(3, N).T.reshape(-1)
    edge_index = jnp.asarray(np.stack([src, dst], axis=0), dtype=jnp.int32)  # [2, E]

    out = temporal_graph_transformer(params, x, edge_index, temporal_encoding, N_HEADS)
    out = jax.block_until_ready(out)

    assert out.shape == (N, D_MODEL) and out.dtype == jnp.float32
    assert bool(jnp.all(jnp.isfinite(out)))
    print("KERNEL_OK")
</pallas_src>

<mosaic_0001>
module attributes {stable_mosaic.version = 11 : i64} {
  func.func @fused_kernel(%arg0: i32, %arg1: memref<16x16xf32, #tpu.memory_space<vmem>>, %arg2: memref<16x128xf32, #tpu.memory_space<vmem>>, %arg3: memref<1x128xf32, #tpu.memory_space<vmem>>, %arg4: memref<16x128xf32, #tpu.memory_space<vmem>>, %arg5: memref<16x128xf32, #tpu.memory_space<vmem>>, %arg6: memref<128x128xf32, #tpu.memory_space<vmem>>, %arg7: memref<1x128xf32, #tpu.memory_space<vmem>>, %arg8: memref<16x16xbf16, #tpu.memory_space<vmem>>, %arg9: memref<16x1xf32, #tpu.memory_space<vmem>>, %arg10: memref<1x128x1664xbf16, #tpu.memory_space<vmem>>, %arg11: memref<1x1x1664xf32, #tpu.memory_space<vmem>>, %arg12: memref<1x128x128xbf16, #tpu.memory_space<vmem>>, %arg13: memref<1x1x128xf32, #tpu.memory_space<vmem>>, %arg14: memref<1x128x512xbf16, #tpu.memory_space<vmem>>, %arg15: memref<1x1x512xf32, #tpu.memory_space<vmem>>, %arg16: memref<1x512x128xbf16, #tpu.memory_space<vmem>>, %arg17: memref<1x1x128xf32, #tpu.memory_space<vmem>>, %arg18: memref<1x6x128xf32, #tpu.memory_space<vmem>>, %arg19: memref<16x128xf32, #tpu.memory_space<vmem>>, %arg20: memref<16x128xf32, #tpu.memory_space<vmem>>) attributes {dimension_semantics = [#tpu.dimension_semantics<arbitrary>], iteration_bounds = array<i64: 2>, scalar_prefetch = 0 : i64, scratch_operands = 1 : i64, tpu.core_type = #tpu.core_type<tc>, window_params = [{pipeline_mode = #tpu.pipeline_mode<synchronous>, transform_indices = @transform_0, window_bounds = array<i64: 16, 16>}, {pipeline_mode = #tpu.pipeline_mode<synchronous>, transform_indices = @transform_1, window_bounds = array<i64: 16, 128>}, {pipeline_mode = #tpu.pipeline_mode<synchronous>, transform_indices = @transform_2, window_bounds = array<i64: 1, 128>}, {pipeline_mode = #tpu.pipeline_mode<synchronous>, transform_indices = @transform_3, window_bounds = array<i64: 16, 128>}, {pipeline_mode = #tpu.pipeline_mode<synchronous>, transform_indices = @transform_4, window_bounds = array<i64: 16, 128>}, {pipeline_mode = #tpu.pipeline_mode<synchronous>, transform_indices = @transform_5, window_bounds = array<i64: 128, 128>}, {pipeline_mode = #tpu.pipeline_mode<synchronous>, transform_indices = @transform_6, window_bounds = array<i64: 1, 128>}, {pipeline_mode = #tpu.pipeline_mode<synchronous>, transform_indices = @transform_7, window_bounds = array<i64: 16, 16>}, {pipeline_mode = #tpu.pipeline_mode<synchronous>, transform_indices = @transform_8, window_bounds = array<i64: 16, 1>}, {transform_indices = @transform_9, window_bounds = array<i64: 1, 128, 1664>}, {transform_indices = @transform_10, window_bounds = array<i64: 1, 1, 1664>}, {transform_indices = @transform_11, window_bounds = array<i64: 1, 128, 128>}, {transform_indices = @transform_12, window_bounds = array<i64: 1, 1, 128>}, {transform_indices = @transform_13, window_bounds = array<i64: 1, 128, 512>}, {transform_indices = @transform_14, window_bounds = array<i64: 1, 1, 512>}, {transform_indices = @transform_15, window_bounds = array<i64: 1, 512, 128>}, {transform_indices = @transform_16, window_bounds = array<i64: 1, 1, 128>}, {transform_indices = @transform_17, window_bounds = array<i64: 1, 6, 128>}, {pipeline_mode = #tpu.pipeline_mode<synchronous>, transform_indices = @transform_18, window_bounds = array<i64: 16, 128>}]} {
    %c0_i32 = arith.constant 0 : i32
    %0 = arith.cmpi eq, %arg0, %c0_i32 : i32
    %1 = arith.extui %0 : i1 to i32
    %c0_i32_0 = arith.constant 0 : i32
    %2 = arith.cmpi ne, %1, %c0_i32_0 : i32
    scf.if %2 {
      %c0_73 = arith.constant 0 : index
      %c0_74 = arith.constant 0 : index
      %203 = vector.load %arg1[%c0_73, %c0_74] : memref<16x16xf32, #tpu.memory_space<vmem>>, vector<16x16xf32>
      %c0_75 = arith.constant 0 : index
      %c0_76 = arith.constant 0 : index
      %204 = vector.load %arg2[%c0_75, %c0_76] : memref<16x128xf32, #tpu.memory_space<vmem>>, vector<16x128xf32>
      %cst_77 = arith.constant dense<0.000000e+00> : vector<16x128xf32>
      %205 = tpu.matmul %203, %204, %cst_77 {dimension_numbers = #tpu.dot_dimension_numbers<[1], [0], [0], [1], [0, 0, 1, 1], [], []>} : vector<16x16xf32>, vector<16x128xf32>, vector<16x128xf32> -> vector<16x128xf32>
      %c0_78 = arith.constant 0 : index
      %c0_79 = arith.constant 0 : index
      %206 = vector.load %arg3[%c0_78, %c0_79] : memref<1x128xf32, #tpu.memory_space<vmem>>, vector<1x128xf32>
      %207 = vector.broadcast %206 : vector<1x128xf32> to vector<16x128xf32>
      %208 = arith.addf %205, %207 : vector<16x128xf32>
      %c0_80 = arith.constant 0 : index
      %c0_81 = arith.constant 0 : index
      %209 = vector.load %arg4[%c0_80, %c0_81] : memref<16x128xf32, #tpu.memory_space<vmem>>, vector<16x128xf32>
      %210 = arith.addf %208, %209 : vector<16x128xf32>
      %c0_82 = arith.constant 0 : index
      %c0_83 = arith.constant 0 : index
      %211 = vector.load %arg19[%c0_82, %c0_83] : memref<16x128xf32, #tpu.memory_space<vmem>>, vector<16x128xf32>
      tpu.vector_store %arg19[%c0_82, %c0_83], %210 {strides = array<i32>} : memref<16x128xf32, #tpu.memory_space<vmem>>, vector<16x128xf32>,
      %c0_84 = arith.constant 0 : index
      %c0_85 = arith.constant 0 : index
      %212 = vector.load %arg5[%c0_84, %c0_85] : memref<16x128xf32, #tpu.memory_space<vmem>>, vector<16x128xf32>
      %c0_86 = arith.constant 0 : index
      %c0_87 = arith.constant 0 : index
      %213 = vector.load %arg6[%c0_86, %c0_87] : memref<128x128xf32, #tpu.memory_space<vmem>>, vector<128x128xf32>
      %cst_88 = arith.constant dense<0.000000e+00> : vector<16x128xf32>
      %214 = tpu.matmul %212, %213, %cst_88 {dimension_numbers = #tpu.dot_dimension_numbers<[1], [0], [0], [1], [0, 0, 1, 1], [], []>} : vector<16x128xf32>, vector<128x128xf32>, vector<16x128xf32> -> vector<16x128xf32>
      %c0_89 = arith.constant 0 : index
      %c0_90 = arith.constant 0 : index
      %215 = vector.load %arg7[%c0_89, %c0_90] : memref<1x128xf32, #tpu.memory_space<vmem>>, vector<1x128xf32>
      %216 = vector.broadcast %215 : vector<1x128xf32> to vector<16x128xf32>
      %217 = arith.addf %214, %216 : vector<16x128xf32>
      %c0_91 = arith.constant 0 : index
      %c0_92 = arith.constant 0 : index
      %218 = vector.load %arg20[%c0_91, %c0_92] : memref<16x128xf32, #tpu.memory_space<vmem>>, vector<16x128xf32>
      tpu.vector_store %arg20[%c0_91, %c0_92], %217 {strides = array<i32>} : memref<16x128xf32, #tpu.memory_space<vmem>>, vector<16x128xf32>,
    } else {
    }
    %c0 = arith.constant 0 : index
    %c0_1 = arith.constant 0 : index
    %3 = vector.load %arg19[%c0, %c0_1] : memref<16x128xf32, #tpu.memory_space<vmem>>, vector<16x128xf32>
    %c0_2 = arith.constant 0 : index
    %c0_3 = arith.constant 0 : index
    %c0_4 = arith.constant 0 : index
    %4 = vector.load %arg18[%c0_2, %c0_3, %c0_4] : memref<1x6x128xf32, #tpu.memory_space<vmem>>, vector<1x6x128xf32>
    %5 = vector.shape_cast %4 : vector<1x6x128xf32> to vector<6x128xf32>
    %c0_5 = arith.constant 0 : index
    %c0_6 = arith.constant 0 : index
    %6 = vector.load %arg8[%c0_5, %c0_6] : memref<16x16xbf16, #tpu.memory_space<vmem>>, vector<16x16xbf16>
    %7 = arith.extf %6 : vector<16x16xbf16> to vector<16x16xf32>
    %8 = arith.truncf %3 : vector<16x128xf32> to vector<16x128xbf16>
    %c0_7 = arith.constant 0 : index
    %c0_8 = arith.constant 0 : index
    %c0_9 = arith.constant 0 : index
    %9 = vector.load %arg10[%c0_7, %c0_8, %c0_9] : memref<1x128x1664xbf16, #tpu.memory_space<vmem>>, vector<1x128x1664xbf16>
    %10 = vector.shape_cast %9 : vector<1x128x1664xbf16> to vector<128x1664xbf16>
    %cst = arith.constant dense<0.000000e+00> : vector<16x1664xf32>
    %11 = tpu.matmul %8, %10, %cst {dimension_numbers = #tpu.dot_dimension_numbers<[1], [0], [0], [1], [0, 0, 1, 1], [], []>} : vector<16x128xbf16>, vector<128x1664xbf16>, vector<16x1664xf32> -> vector<16x1664xf32>
    %c0_10 = arith.constant 0 : index
    %c0_11 = arith.constant 0 : index
    %c0_12 = arith.constant 0 : index
    %12 = vector.load %arg11[%c0_10, %c0_11, %c0_12] : memref<1x1x1664xf32, #tpu.memory_space<vmem>>, vector<1x1x1664xf32>
    %13 = vector.shape_cast %12 : vector<1x1x1664xf32> to vector<1x1664xf32>
    %14 = vector.broadcast %13 : vector<1x1664xf32> to vector<16x1664xf32>
    %15 = arith.addf %11, %14 : vector<16x1664xf32>
    %cst_13 = arith.constant 0.000000e+00 : f32
    %16 = vector.broadcast %cst_13 : f32 to vector<16x128xf32>
    %17 = vector.extract_strided_slice %15 {offsets = [0, 0], sizes = [16, 128], strides = [1, 1]} : vector<16x1664xf32> to vector<16x128xf32>
    %18 = arith.truncf %17 : vector<16x128xf32> to vector<16x128xbf16>
    %19 = vector.extract_strided_slice %15 {offsets = [0, 512], sizes = [16, 128], strides = [1, 1]} : vector<16x1664xf32> to vector<16x128xf32>
    %20 = arith.truncf %19 : vector<16x128xf32> to vector<16x128xbf16>
    %21 = vector.extract_strided_slice %15 {offsets = [0, 1024], sizes = [16, 128], strides = [1, 1]} : vector<16x1664xf32> to vector<16x128xf32>
    %22 = arith.truncf %21 : vector<16x128xf32> to vector<16x128xbf16>
    %cst_14 = arith.constant dense<0.000000e+00> : vector<16x16xf32>
    %23 = tpu.matmul %18, %20, %cst_14 {dimension_numbers = #tpu.dot_dimension_numbers<[1], [1], [0], [0], [0, 0, 1, 0], [], []>} : vector<16x128xbf16>, vector<16x128xbf16>, vector<16x16xf32> -> vector<16x16xf32>
    %24 = arith.addf %23, %7 : vector<16x16xf32>
    %cst_15 = arith.constant dense<0xFF800000> : vector<16xf32>
    %25 = vector.multi_reduction <maximumf>, %24, %cst_15 [1] : vector<16x16xf32> to vector<16xf32>
    %26 = vector.shape_cast %25 : vector<16xf32> to vector<16x1xf32>
    %27 = vector.broadcast %26 : vector<16x1xf32> to vector<16x16xf32>
    %28 = arith.subf %24, %27 : vector<16x16xf32>
    %29 = math.exp %28 : vector<16x16xf32>
    %cst_16 = arith.constant dense<0.000000e+00> : vector<16xf32>
    %30 = vector.multi_reduction <add>, %29, %cst_16 [1] : vector<16x16xf32> to vector<16xf32>
    %31 = vector.shape_cast %30 : vector<16xf32> to vector<16x1xf32>
    %32 = tpu.reciprocal %31 {approx = true} : vector<16x1xf32> -> vector<16x1xf32>
    %33 = vector.broadcast %32 : vector<16x1xf32> to vector<16x16xf32>
    %34 = arith.mulf %29, %33 : vector<16x16xf32>
    %35 = arith.truncf %34 : vector<16x16xf32> to vector<16x16xbf16>
    %cst_17 = arith.constant dense<0.000000e+00> : vector<16x128xf32>
    %36 = tpu.matmul %35, %22, %cst_17 {dimension_numbers = #tpu.dot_dimension_numbers<[1], [0], [0], [1], [0, 0, 1, 1], [], []>} : vector<16x16xbf16>, vector<16x128xbf16>, vector<16x128xf32> -> vector<16x128xf32>
    %37 = arith.addf %16, %36 : vector<16x128xf32>
    %38 = vector.extract_strided_slice %15 {offsets = [0, 128], sizes = [16, 128], strides = [1, 1]} : vector<16x1664xf32> to vector<16x128xf32>
    %39 = arith.truncf %38 : vector<16x128xf32> to vector<16x128xbf16>
    %40 = vector.extract_strided_slice %15 {offsets = [0, 640], sizes = [16, 128], strides = [1, 1]} : vector<16x1664xf32> to vector<16x128xf32>
    %41 = arith.truncf %40 : vector<16x128xf32> to vector<16x128xbf16>
    %42 = vector.extract_strided_slice %15 {offsets = [0, 1152], sizes = [16, 128], strides = [1, 1]} : vector<16x1664xf32> to vector<16x128xf32>
    %43 = arith.truncf %42 : vector<16x128xf32> to vector<16x128xbf16>
    %cst_18 = arith.constant dense<0.000000e+00> : vector<16x16xf32>
    %44 = tpu.matmul %39, %41, %cst_18 {dimension_numbers = #tpu.dot_dimension_numbers<[1], [1], [0], [0], [0, 0, 1, 0], [], []>} : vector<16x128xbf16>, vector<16x128xbf16>, vector<16x16xf32> -> vector<16x16xf32>
    %45 = arith.addf %44, %7 : vector<16x16xf32>
    %cst_19 = arith.constant dense<0xFF800000> : vector<16xf32>
    %46 = vector.multi_reduction <maximumf>, %45, %cst_19 [1] : vector<16x16xf32> to vector<16xf32>
    %47 = vector.shape_cast %46 : vector<16xf32> to vector<16x1xf32>
    %48 = vector.broadcast %47 : vector<16x1xf32> to vector<16x16xf32>
    %49 = arith.subf %45, %48 : vector<16x16xf32>
    %50 = math.exp %49 : vector<16x16xf32>
    %cst_20 = arith.constant dense<0.000000e+00> : vector<16xf32>
    %51 = vector.multi_reduction <add>, %50, %cst_20 [1] : vector<16x16xf32> to vector<16xf32>
    %52 = vector.shape_cast %51 : vector<16xf32> to vector<16x1xf32>
    %53 = tpu.reciprocal %52 {approx = true} : vector<16x1xf32> -> vector<16x1xf32>
    %54 = vector.broadcast %53 : vector<16x1xf32> to vector<16x16xf32>
    %55 = arith.mulf %50, %54 : vector<16x16xf32>
    %56 = arith.truncf %55 : vector<16x16xf32> to vector<16x16xbf16>
    %cst_21 = arith.constant dense<0.000000e+00> : vector<16x128xf32>
    %57 = tpu.matmul %56, %43, %cst_21 {dimension_numbers = #tpu.dot_dimension_numbers<[1], [0], [0], [1], [0, 0, 1, 1], [], []>} : vector<16x16xbf16>, vector<16x128xbf16>, vector<16x128xf32> -> vector<16x128xf32>
    %58 = arith.addf %37, %57 : vector<16x128xf32>
    %59 = vector.extract_strided_slice %15 {offsets = [0, 256], sizes = [16, 128], strides = [1, 1]} : vector<16x1664xf32> to vector<16x128xf32>
    %60 = arith.truncf %59 : vector<16x128xf32> to vector<16x128xbf16>
    %61 = vector.extract_strided_slice %15 {offsets = [0, 768], sizes = [16, 128], strides = [1, 1]} : vector<16x1664xf32> to vector<16x128xf32>
    %62 = arith.truncf %61 : vector<16x128xf32> to vector<16x128xbf16>
    %63 = vector.extract_strided_slice %15 {offsets = [0, 1280], sizes = [16, 128], strides = [1, 1]} : vector<16x1664xf32> to vector<16x128xf32>
    %64 = arith.truncf %63 : vector<16x128xf32> to vector<16x128xbf16>
    %cst_22 = arith.constant dense<0.000000e+00> : vector<16x16xf32>
    %65 = tpu.matmul %60, %62, %cst_22 {dimension_numbers = #tpu.dot_dimension_numbers<[1], [1], [0], [0], [0, 0, 1, 0], [], []>} : vector<16x128xbf16>, vector<16x128xbf16>, vector<16x16xf32> -> vector<16x16xf32>
    %66 = arith.addf %65, %7 : vector<16x16xf32>
    %cst_23 = arith.constant dense<0xFF800000> : vector<16xf32>
    %67 = vector.multi_reduction <maximumf>, %66, %cst_23 [1] : vector<16x16xf32> to vector<16xf32>
    %68 = vector.shape_cast %67 : vector<16xf32> to vector<16x1xf32>
    %69 = vector.broadcast %68 : vector<16x1xf32> to vector<16x16xf32>
    %70 = arith.subf %66, %69 : vector<16x16xf32>
    %71 = math.exp %70 : vector<16x16xf32>
    %cst_24 = arith.constant dense<0.000000e+00> : vector<16xf32>
    %72 = vector.multi_reduction <add>, %71, %cst_24 [1] : vector<16x16xf32> to vector<16xf32>
    %73 = vector.shape_cast %72 : vector<16xf32> to vector<16x1xf32>
    %74 = tpu.reciprocal %73 {approx = true} : vector<16x1xf32> -> vector<16x1xf32>
    %75 = vector.broadcast %74 : vector<16x1xf32> to vector<16x16xf32>
    %76 = arith.mulf %71, %75 : vector<16x16xf32>
    %77 = arith.truncf %76 : vector<16x16xf32> to vector<16x16xbf16>
    %cst_25 = arith.constant dense<0.000000e+00> : vector<16x128xf32>
    %78 = tpu.matmul %77, %64, %cst_25 {dimension_numbers = #tpu.dot_dimension_numbers<[1], [0], [0], [1], [0, 0, 1, 1], [], []>} : vector<16x16xbf16>, vector<16x128xbf16>, vector<16x128xf32> -> vector<16x128xf32>
    %79 = arith.addf %58, %78 : vector<16x128xf32>
    %80 = vector.extract_strided_slice %15 {offsets = [0, 384], sizes = [16, 128], strides = [1, 1]} : vector<16x1664xf32> to vector<16x128xf32>
    %81 = arith.truncf %80 : vector<16x128xf32> to vector<16x128xbf16>
    %82 = vector.extract_strided_slice %15 {offsets = [0, 896], sizes = [16, 128], strides = [1, 1]} : vector<16x1664xf32> to vector<16x128xf32>
    %83 = arith.truncf %82 : vector<16x128xf32> to vector<16x128xbf16>
    %84 = vector.extract_strided_slice %15 {offsets = [0, 1408], sizes = [16, 128], strides = [1, 1]} : vector<16x1664xf32> to vector<16x128xf32>
    %85 = arith.truncf %84 : vector<16x128xf32> to vector<16x128xbf16>
    %cst_26 = arith.constant dense<0.000000e+00> : vector<16x16xf32>
    %86 = tpu.matmul %81, %83, %cst_26 {dimension_numbers = #tpu.dot_dimension_numbers<[1], [1], [0], [0], [0, 0, 1, 0], [], []>} : vector<16x128xbf16>, vector<16x128xbf16>, vector<16x16xf32> -> vector<16x16xf32>
    %87 = arith.addf %86, %7 : vector<16x16xf32>
    %cst_27 = arith.constant dense<0xFF800000> : vector<16xf32>
    %88 = vector.multi_reduction <maximumf>, %87, %cst_27 [1] : vector<16x16xf32> to vector<16xf32>
    %89 = vector.shape_cast %88 : vector<16xf32> to vector<16x1xf32>
    %90 = vector.broadcast %89 : vector<16x1xf32> to vector<16x16xf32>
    %91 = arith.subf %87, %90 : vector<16x16xf32>
    %92 = math.exp %91 : vector<16x16xf32>
    %cst_28 = arith.constant dense<0.000000e+00> : vector<16xf32>
    %93 = vector.multi_reduction <add>, %92, %cst_28 [1] : vector<16x16xf32> to vector<16xf32>
    %94 = vector.shape_cast %93 : vector<16xf32> to vector<16x1xf32>
    %95 = tpu.reciprocal %94 {approx = true} : vector<16x1xf32> -> vector<16x1xf32>
    %96 = vector.broadcast %95 : vector<16x1xf32> to vector<16x16xf32>
    %97 = arith.mulf %92, %96 : vector<16x16xf32>
    %98 = arith.truncf %97 : vector<16x16xf32> to vector<16x16xbf16>
    %cst_29 = arith.constant dense<0.000000e+00> : vector<16x128xf32>
    %99 = tpu.matmul %98, %85, %cst_29 {dimension_numbers = #tpu.dot_dimension_numbers<[1], [0], [0], [1], [0, 0, 1, 1], [], []>} : vector<16x16xbf16>, vector<16x128xbf16>, vector<16x128xf32> -> vector<16x128xf32>
    %100 = arith.addf %79, %99 : vector<16x128xf32>
    %101 = vector.extract_strided_slice %15 {offsets = [0, 1536], sizes = [16, 128], strides = [1, 1]} : vector<16x1664xf32> to vector<16x128xf32>
    %c0_30 = arith.constant 0 : index
    %c0_31 = arith.constant 0 : index
    %102 = vector.load %arg9[%c0_30, %c0_31] : memref<16x1xf32, #tpu.memory_space<vmem>>, vector<16x1xf32>
    %103 = vector.broadcast %102 : vector<16x1xf32> to vector<16x128xf32>
    %104 = arith.mulf %100, %103 : vector<16x128xf32>
    %105 = arith.addf %104, %101 : vector<16x128xf32>
    %106 = arith.addf %3, %105 : vector<16x128xf32>
    %107 = vector.extract_strided_slice %5 {offsets = [0, 0], sizes = [1, 128], strides = [1, 1]} : vector<6x128xf32> to vector<1x128xf32>
    %108 = vector.extract_strided_slice %5 {offsets = [1, 0], sizes = [1, 128], strides = [1, 1]} : vector<6x128xf32> to vector<1x128xf32>
    %cst_32 = arith.constant dense<0.000000e+00> : vector<16xf32>
    %109 = vector.multi_reduction <add>, %106, %cst_32 [1] : vector<16x128xf32> to vector<16xf32>
    %110 = vector.shape_cast %109 : vector<16xf32> to vector<16x1xf32>
    %cst_33 = arith.constant 1.280000e+02 : f32
    %111 = vector.broadcast %cst_33 : f32 to vector<16x1xf32>
    %112 = arith.divf %110, %111 : vector<16x1xf32>
    %113 = vector.broadcast %112 : vector<16x1xf32> to vector<16x128xf32>
    %114 = arith.subf %106, %113 : vector<16x128xf32>
    %115 = arith.mulf %114, %114 : vector<16x128xf32>
    %cst_34 = arith.constant dense<0.000000e+00> : vector<16xf32>
    %116 = vector.multi_reduction <add>, %115, %cst_34 [1] : vector<16x128xf32> to vector<16xf32>
    %117 = vector.shape_cast %116 : vector<16xf32> to vector<16x1xf32>
    %cst_35 = arith.constant 1.280000e+02 : f32
    %118 = vector.broadcast %cst_35 : f32 to vector<16x1xf32>
    %119 = arith.divf %117, %118 : vector<16x1xf32>
    %cst_36 = arith.constant 9.99999974E-6 : f32
    %120 = vector.broadcast %cst_36 : f32 to vector<16x1xf32>
    %121 = arith.addf %119, %120 : vector<16x1xf32>
    %122 = math.rsqrt %121 : vector<16x1xf32>
    %123 = vector.broadcast %122 : vector<16x1xf32> to vector<16x128xf32>
    %124 = arith.mulf %114, %123 : vector<16x128xf32>
    %125 = vector.broadcast %107 : vector<1x128xf32> to vector<16x128xf32>
    %126 = arith.mulf %124, %125 : vector<16x128xf32>
    %127 = vector.broadcast %108 : vector<1x128xf32> to vector<16x128xf32>
    %128 = arith.addf %126, %127 : vector<16x128xf32>
    %c0_37 = arith.constant 0 : index
    %c0_38 = arith.constant 0 : index
    %129 = vector.load %arg20[%c0_37, %c0_38] : memref<16x128xf32, #tpu.memory_space<vmem>>, vector<16x128xf32>
    %130 = arith.truncf %129 : vector<16x128xf32> to vector<16x128xbf16>
    %c0_39 = arith.constant 0 : index
    %c0_40 = arith.constant 0 : index
    %c0_41 = arith.constant 0 : index
    %131 = vector.load %arg12[%c0_39, %c0_40, %c0_41] : memref<1x128x128xbf16, #tpu.memory_space<vmem>>, vector<1x128x128xbf16>
    %132 = vector.shape_cast %131 : vector<1x128x128xbf16> to vector<128x128xbf16>
    %cst_42 = arith.constant dense<0.000000e+00> : vector<16x128xf32>
    %133 = tpu.matmul %130, %132, %cst_42 {dimension_numbers = #tpu.dot_dimension_numbers<[1], [0], [0], [1], [0, 0, 1, 1], [], []>} : vector<16x128xbf16>, vector<128x128xbf16>, vector<16x128xf32> -> vector<16x128xf32>
    %c0_43 = arith.constant 0 : index
    %c0_44 = arith.constant 0 : index
    %c0_45 = arith.constant 0 : index
    %134 = vector.load %arg13[%c0_43, %c0_44, %c0_45] : memref<1x1x128xf32, #tpu.memory_space<vmem>>, vector<1x1x128xf32>
    %135 = vector.shape_cast %134 : vector<1x1x128xf32> to vector<1x128xf32>
    %136 = vector.broadcast %135 : vector<1x128xf32> to vector<16x128xf32>
    %137 = arith.addf %133, %136 : vector<16x128xf32>
    %138 = arith.addf %128, %137 : vector<16x128xf32>
    %139 = vector.extract_strided_slice %5 {offsets = [2, 0], sizes = [1, 128], strides = [1, 1]} : vector<6x128xf32> to vector<1x128xf32>
    %140 = vector.extract_strided_slice %5 {offsets = [3, 0], sizes = [1, 128], strides = [1, 1]} : vector<6x128xf32> to vector<1x128xf32>
    %cst_46 = arith.constant dense<0.000000e+00> : vector<16xf32>
    %141 = vector.multi_reduction <add>, %138, %cst_46 [1] : vector<16x128xf32> to vector<16xf32>
    %142 = vector.shape_cast %141 : vector<16xf32> to vector<16x1xf32>
    %cst_47 = arith.constant 1.280000e+02 : f32
    %143 = vector.broadcast %cst_47 : f32 to vector<16x1xf32>
    %144 = arith.divf %142, %143 : vector<16x1xf32>
    %145 = vector.broadcast %144 : vector<16x1xf32> to vector<16x128xf32>
    %146 = arith.subf %138, %145 : vector<16x128xf32>
    %147 = arith.mulf %146, %146 : vector<16x128xf32>
    %cst_48 = arith.constant dense<0.000000e+00> : vector<16xf32>
    %148 = vector.multi_reduction <add>, %147, %cst_48 [1] : vector<16x128xf32> to vector<16xf32>
    %149 = vector.shape_cast %148 : vector<16xf32> to vector<16x1xf32>
    %cst_49 = arith.constant 1.280000e+02 : f32
    %150 = vector.broadcast %cst_49 : f32 to vector<16x1xf32>
    %151 = arith.divf %149, %150 : vector<16x1xf32>
    %cst_50 = arith.constant 9.99999974E-6 : f32
    %152 = vector.broadcast %cst_50 : f32 to vector<16x1xf32>
    %153 = arith.addf %151, %152 : vector<16x1xf32>
    %154 = math.rsqrt %153 : vector<16x1xf32>
    %155 = vector.broadcast %154 : vector<16x1xf32> to vector<16x128xf32>
    %156 = arith.mulf %146, %155 : vector<16x128xf32>
    %157 = vector.broadcast %139 : vector<1x128xf32> to vector<16x128xf32>
    %158 = arith.mulf %156, %157 : vector<16x128xf32>
    %159 = vector.broadcast %140 : vector<1x128xf32> to vector<16x128xf32>
    %160 = arith.addf %158, %159 : vector<16x128xf32>
    %161 = arith.truncf %160 : vector<16x128xf32> to vector<16x128xbf16>
    %c0_51 = arith.constant 0 : index
    %c0_52 = arith.constant 0 : index
    %c0_53 = arith.constant 0 : index
    %162 = vector.load %arg14[%c0_51, %c0_52, %c0_53] : memref<1x128x512xbf16, #tpu.memory_space<vmem>>, vector<1x128x512xbf16>
    %163 = vector.shape_cast %162 : vector<1x128x512xbf16> to vector<128x512xbf16>
    %cst_54 = arith.constant dense<0.000000e+00> : vector<16x512xf32>
    %164 = tpu.matmul %161, %163, %cst_54 {dimension_numbers = #tpu.dot_dimension_numbers<[1], [0], [0], [1], [0, 0, 1, 1], [], []>} : vector<16x128xbf16>, vector<128x512xbf16>, vector<16x512xf32> -> vector<16x512xf32>
    %c0_55 = arith.constant 0 : index
    %c0_56 = arith.constant 0 : index
    %c0_57 = arith.constant 0 : index
    %165 = vector.load %arg15[%c0_55, %c0_56, %c0_57] : memref<1x1x512xf32, #tpu.memory_space<vmem>>, vector<1x1x512xf32>
    %166 = vector.shape_cast %165 : vector<1x1x512xf32> to vector<1x512xf32>
    %167 = vector.broadcast %166 : vector<1x512xf32> to vector<16x512xf32>
    %168 = arith.addf %164, %167 : vector<16x512xf32>
    %cst_58 = arith.constant 0.000000e+00 : f32
    %169 = vector.broadcast %cst_58 : f32 to vector<16x512xf32>
    %170 = arith.maximumf %168, %169 : vector<16x512xf32>
    %171 = arith.truncf %170 : vector<16x512xf32> to vector<16x512xbf16>
    %c0_59 = arith.constant 0 : index
    %c0_60 = arith.constant 0 : index
    %c0_61 = arith.constant 0 : index
    %172 = vector.load %arg16[%c0_59, %c0_60, %c0_61] : memref<1x512x128xbf16, #tpu.memory_space<vmem>>, vector<1x512x128xbf16>
    %173 = vector.shape_cast %172 : vector<1x512x128xbf16> to vector<512x128xbf16>
    %cst_62 = arith.constant dense<0.000000e+00> : vector<16x128xf32>
    %174 = tpu.matmul %171, %173, %cst_62 {dimension_numbers = #tpu.dot_dimension_numbers<[1], [0], [0], [1], [0, 0, 1, 1], [], []>} : vector<16x512xbf16>, vector<512x128xbf16>, vector<16x128xf32> -> vector<16x128xf32>
    %c0_63 = arith.constant 0 : index
    %c0_64 = arith.constant 0 : index
    %c0_65 = arith.constant 0 : index
    %175 = vector.load %arg17[%c0_63, %c0_64, %c0_65] : memref<1x1x128xf32, #tpu.memory_space<vmem>>, vector<1x1x128xf32>
    %176 = vector.shape_cast %175 : vector<1x1x128xf32> to vector<1x128xf32>
    %177 = vector.broadcast %176 : vector<1x128xf32> to vector<16x128xf32>
    %178 = arith.addf %174, %177 : vector<16x128xf32>
    %179 = arith.addf %160, %178 : vector<16x128xf32>
    %180 = vector.extract_strided_slice %5 {offsets = [4, 0], sizes = [1, 128], strides = [1, 1]} : vector<6x128xf32> to vector<1x128xf32>
    %181 = vector.extract_strided_slice %5 {offsets = [5, 0], sizes = [1, 128], strides = [1, 1]} : vector<6x128xf32> to vector<1x128xf32>
    %cst_66 = arith.constant dense<0.000000e+00> : vector<16xf32>
    %182 = vector.multi_reduction <add>, %179, %cst_66 [1] : vector<16x128xf32> to vector<16xf32>
    %183 = vector.shape_cast %182 : vector<16xf32> to vector<16x1xf32>
    %cst_67 = arith.constant 1.280000e+02 : f32
    %184 = vector.broadcast %cst_67 : f32 to vector<16x1xf32>
    %185 = arith.divf %183, %184 : vector<16x1xf32>
    %186 = vector.broadcast %185 : vector<16x1xf32> to vector<16x128xf32>
    %187 = arith.subf %179, %186 : vector<16x128xf32>
    %188 = arith.mulf %187, %187 : vector<16x128xf32>
    %cst_68 = arith.constant dense<0.000000e+00> : vector<16xf32>
    %189 = vector.multi_reduction <add>, %188, %cst_68 [1] : vector<16x128xf32> to vector<16xf32>
    %190 = vector.shape_cast %189 : vector<16xf32> to vector<16x1xf32>
    %cst_69 = arith.constant 1.280000e+02 : f32
    %191 = vector.broadcast %cst_69 : f32 to vector<16x1xf32>
    %192 = arith.divf %190, %191 : vector<16x1xf32>
    %cst_70 = arith.constant 9.99999974E-6 : f32
    %193 = vector.broadcast %cst_70 : f32 to vector<16x1xf32>
    %194 = arith.addf %192, %193 : vector<16x1xf32>
    %195 = math.rsqrt %194 : vector<16x1xf32>
    %196 = vector.broadcast %195 : vector<16x1xf32> to vector<16x128xf32>
    %197 = arith.mulf %187, %196 : vector<16x128xf32>
    %198 = vector.broadcast %180 : vector<1x128xf32> to vector<16x128xf32>
    %199 = arith.mulf %197, %198 : vector<16x128xf32>
    %200 = vector.broadcast %181 : vector<1x128xf32> to vector<16x128xf32>
    %201 = arith.addf %199, %200 : vector<16x128xf32>
    %c0_71 = arith.constant 0 : index
    %c0_72 = arith.constant 0 : index
    %202 = vector.load %arg19[%c0_71, %c0_72] : memref<16x128xf32, #tpu.memory_space<vmem>>, vector<16x128xf32>
    tpu.vector_store %arg19[%c0_71, %c0_72], %201 {strides = array<i32>} : memref<16x128xf32, #tpu.memory_space<vmem>>, vector<16x128xf32>,
    return
  }
  func.func @transform_0(%arg0: i32) -> (i32, i32) {
    %c0_i32 = arith.constant 0 : i32
    %c0_i32_0 = arith.constant 0 : i32
    %c0_i32_1 = arith.constant 0 : i32
    return %c0_i32, %c0_i32_0 : i32, i32
  }
  func.func @transform_1(%arg0: i32) -> (i32, i32) {
    %c0_i32 = arith.constant 0 : i32
    %c0_i32_0 = arith.constant 0 : i32
    %c0_i32_1 = arith.constant 0 : i32
    return %c0_i32, %c0_i32_0 : i32, i32
  }
  func.func @transform_2(%arg0: i32) -> (i32, i32) {
    %c0_i32 = arith.constant 0 : i32
    %c0_i32_0 = arith.constant 0 : i32
    %c0_i32_1 = arith.constant 0 : i32
    return %c0_i32, %c0_i32_0 : i32, i32
  }
  func.func @transform_3(%arg0: i32) -> (i32, i32) {
    %c0_i32 = arith.constant 0 : i32
    %c0_i32_0 = arith.constant 0 : i32
    %c0_i32_1 = arith.constant 0 : i32
    return %c0_i32, %c0_i32_0 : i32, i32
  }
  func.func @transform_4(%arg0: i32) -> (i32, i32) {
    %c0_i32 = arith.constant 0 : i32
    %c0_i32_0 = arith.constant 0 : i32
    %c0_i32_1 = arith.constant 0 : i32
    return %c0_i32, %c0_i32_0 : i32, i32
  }
  func.func @transform_5(%arg0: i32) -> (i32, i32) {
    %c0_i32 = arith.constant 0 : i32
    %c0_i32_0 = arith.constant 0 : i32
    %c0_i32_1 = arith.constant 0 : i32
    return %c0_i32, %c0_i32_0 : i32, i32
  }
  func.func @transform_6(%arg0: i32) -> (i32, i32) {
    %c0_i32 = arith.constant 0 : i32
    %c0_i32_0 = arith.constant 0 : i32
    %c0_i32_1 = arith.constant 0 : i32
    return %c0_i32, %c0_i32_0 : i32, i32
  }
  func.func @transform_7(%arg0: i32) -> (i32, i32) {
    %c0_i32 = arith.constant 0 : i32
    %c0_i32_0 = arith.constant 0 : i32
    %c0_i32_1 = arith.constant 0 : i32
    return %c0_i32, %c0_i32_0 : i32, i32
  }
  func.func @transform_8(%arg0: i32) -> (i32, i32) {
    %c0_i32 = arith.constant 0 : i32
    %c0_i32_0 = arith.constant 0 : i32
    %c0_i32_1 = arith.constant 0 : i32
    return %c0_i32, %c0_i32_0 : i32, i32
  }
  func.func @transform_9(%arg0: i32) -> (i32, i32, i32) {
    %c0_i32 = arith.constant 0 : i32
    %c0_i32_0 = arith.constant 0 : i32
    %c0_i32_1 = arith.constant 0 : i32
    return %arg0, %c0_i32, %c0_i32_0 : i32, i32, i32
  }
  func.func @transform_10(%arg0: i32) -> (i32, i32, i32) {
    %c0_i32 = arith.constant 0 : i32
    %c0_i32_0 = arith.constant 0 : i32
    %c0_i32_1 = arith.constant 0 : i32
    return %arg0, %c0_i32, %c0_i32_0 : i32, i32, i32
  }
  func.func @transform_11(%arg0: i32) -> (i32, i32, i32) {
    %c0_i32 = arith.constant 0 : i32
    %c0_i32_0 = arith.constant 0 : i32
    %c0_i32_1 = arith.constant 0 : i32
    return %arg0, %c0_i32, %c0_i32_0 : i32, i32, i32
  }
  func.func @transform_12(%arg0: i32) -> (i32, i32, i32) {
    %c0_i32 = arith.constant 0 : i32
    %c0_i32_0 = arith.constant 0 : i32
    %c0_i32_1 = arith.constant 0 : i32
    return %arg0, %c0_i32, %c0_i32_0 : i32, i32, i32
  }
  func.func @transform_13(%arg0: i32) -> (i32, i32, i32) {
    %c0_i32 = arith.constant 0 : i32
    %c0_i32_0 = arith.constant 0 : i32
    %c0_i32_1 = arith.constant 0 : i32
    return %arg0, %c0_i32, %c0_i32_0 : i32, i32, i32
  }
  func.func @transform_14(%arg0: i32) -> (i32, i32, i32) {
    %c0_i32 = arith.constant 0 : i32
    %c0_i32_0 = arith.constant 0 : i32
    %c0_i32_1 = arith.constant 0 : i32
    return %arg0, %c0_i32, %c0_i32_0 : i32, i32, i32
  }
  func.func @transform_15(%arg0: i32) -> (i32, i32, i32) {
    %c0_i32 = arith.constant 0 : i32
    %c0_i32_0 = arith.constant 0 : i32
    %c0_i32_1 = arith.constant 0 : i32
    return %arg0, %c0_i32, %c0_i32_0 : i32, i32, i32
  }
  func.func @transform_16(%arg0: i32) -> (i32, i32, i32) {
    %c0_i32 = arith.constant 0 : i32
    %c0_i32_0 = arith.constant 0 : i32
    %c0_i32_1 = arith.constant 0 : i32
    return %arg0, %c0_i32, %c0_i32_0 : i32, i32, i32
  }
  func.func @transform_17(%arg0: i32) -> (i32, i32, i32) {
    %c0_i32 = arith.constant 0 : i32
    %c0_i32_0 = arith.constant 0 : i32
    %c0_i32_1 = arith.constant 0 : i32
    return %arg0, %c0_i32, %c0_i32_0 : i32, i32, i32
  }
  func.func @transform_18(%arg0: i32) -> (i32, i32) {
    %c0_i32 = arith.constant 0 : i32
    %c0_i32_0 = arith.constant 0 : i32
    %c0_i32_1 = arith.constant 0 : i32
    return %c0_i32, %c0_i32_0 : i32, i32
  }
}

</mosaic_0001>

<llo_original>
// kernel: tpu_custom_call.1
$region0: #{tpu_custom_call.1}
  #allocation0 [shape = 'u32[]', space=smem, size = 0x4, offset = 0x4, fixed_abs, tag = 'smem constant byte address 0x4 - core index']
  #allocation1 [shape = 'u32[144,128]{1,0:T(1,128)}', space=vmem, size = 0x12000, scoped, tag = 'internal scratch']
  #allocation2 [shape = 'f32[16,128]{1,0:T(8,128)}', space=vmem, size = 0x2000, scoped, tag = 'scratch operand']
  %s0 = inlined_call_operand.vmem [shape: f32[16,16], index: 0, kind: input, shape index: {}]
  %s1 = inlined_call_operand.hbm [shape: f32[16,128], index: 1, kind: input, shape index: {}]
  %s2 = inlined_call_operand.hbm [shape: f32[1,128], index: 2, kind: input, shape index: {}]
  %s3 = inlined_call_operand.hbm [shape: f32[16,128], index: 3, kind: input, shape index: {}]
  %s4 = inlined_call_operand.vmem [shape: f32[16,128], index: 4, kind: input, shape index: {}]
  %s5 = inlined_call_operand.hbm [shape: f32[128,128], index: 5, kind: input, shape index: {}]
  %s6 = inlined_call_operand.hbm [shape: f32[1,128], index: 6, kind: input, shape index: {}]
  %s7 = inlined_call_operand.hbm [shape: bf16[16,16], index: 7, kind: input, shape index: {}]
  %s8 = inlined_call_operand.vmem [shape: f32[16,1], index: 8, kind: input, shape index: {}]
  %s9 = inlined_call_operand.hbm [shape: bf16[2,128,1664], index: 9, kind: input, shape index: {}]
  %s10 = inlined_call_operand.vmem [shape: f32[2,1,1664], index: 10, kind: input, shape index: {}]
  %s11 = inlined_call_operand.hbm [shape: bf16[2,128,128], index: 11, kind: input, shape index: {}]
  %s12 = inlined_call_operand.vmem [shape: f32[2,1,128], index: 12, kind: input, shape index: {}]
  %s13 = inlined_call_operand.hbm [shape: bf16[2,128,512], index: 13, kind: input, shape index: {}]
  %s14 = inlined_call_operand.vmem [shape: f32[2,1,512], index: 14, kind: input, shape index: {}]
  %s15 = inlined_call_operand.hbm [shape: bf16[2,512,128], index: 15, kind: input, shape index: {}]
  %s16 = inlined_call_operand.vmem [shape: f32[2,1,128], index: 16, kind: input, shape index: {}]
  %s17 = inlined_call_operand.vmem [shape: f32[2,6,128], index: 17, kind: input, shape index: {}]
  %s18 = inlined_call_operand.hbm [shape: f32[16,128], index: 18, kind: output, shape index: {}]
  %s19 = sld [smem:[#allocation0]]
  $region149: #{tpu_custom_call.1} parent=0
    _
  %s21 = ssub.s32 1, %s19
  %s22 = scalar_select 0, %s21, %s19
  $region1: #{tpu_custom_call.1} parent=0
    #allocation3 [shape = 'u8[8192]{0}', space=vmem, size = 0x2000, scoped, tag = 'input window, operand 1, single buffered']
    #allocation4 [shape = 's32[2]{0}', space=sflag, size = 0x8, scoped, tag = 'scoped memory for tpu_custom_call.1']
    #allocation5 [shape = 's32[2]{0}', space=sflag, size = 0x8, scoped, tag = 'scoped memory for tpu_custom_call.1']
    #allocation6 [shape = 'u8[512]{0}', space=vmem, size = 0x400, scoped, tag = 'input window, operand 2, single buffered']
    #allocation7 [shape = 's32[1]{0}', space=sflag, size = 0x4, scoped, tag = 'scoped memory for tpu_custom_call.1']
    #allocation8 [shape = 'u8[8192]{0}', space=vmem, size = 0x2000, scoped, tag = 'input window, operand 3, single buffered']
    #allocation9 [shape = 'u8[65536]{0}', space=vmem, size = 0x10000, scoped, tag = 'input window, operand 5, single buffered']
    #allocation10 [shape = 's32[1]{0}', space=sflag, size = 0x4, scoped, tag = 'scoped memory for tpu_custom_call.1']
    #allocation11 [shape = 'u8[512]{0}', space=vmem, size = 0x400, scoped, tag = 'input window, operand 6, single buffered']
    #allocation12 [shape = 'u8[4096]{0}', space=vmem, size = 0x1000, scoped, tag = 'input window, operand 7, single buffered']
    #allocation13 [shape = 's32[1]{0}', space=sflag, size = 0x4, scoped, tag = 'scoped memory for tpu_custom_call.1']
    #allocation14 [shape = 'u8[851968]{0}', space=vmem, size = 0xd0000, scoped, tag = 'input window, operand 9']
    #allocation15 [shape = 'u8[65536]{0}', space=vmem, size = 0x10000, scoped, tag = 'input window, operand 11']
    #allocation16 [shape = 'u8[262144]{0}', space=vmem, size = 0x40000, scoped, tag = 'input window, operand 13']
    #allocation17 [shape = 'u8[262144]{0}', space=vmem, size = 0x40000, scoped, tag = 'input window, operand 15']
    #allocation18 [shape = 'u8[8192]{0}', space=vmem, size = 0x2000, scoped, tag = 'output window, operand 0, single buffered']
    %23 = vsyncpa [#allocation4], 0
    %24 = vsyncpa [#allocation7], 0
    %25 = vsyncpa [#allocation10], 0
    %26 = vsyncpa [#allocation13], 0
    %27 = vsyncpa [#allocation5], 0
    loop: start=0, step=1, limit=4
    $region2: #{tpu_custom_call.1} parent=1 // loop_pre_header
      _
    $region3: #{tpu_custom_call.1} parent=1 // loop_header
      %s29 = sphi 0, %s33
      %p30 = scmp.ge.s32.totalorder %s29, 4
      %s37 = sphi 0, %s37
      %s39 = sphi 0, %s37
      %s40 = sphi 0, %s39
      %s54 = sphi 0, %s40
      %s58 = sphi 0, %s58
      %s60 = sphi 0, %s58
      %s61 = sphi 0, %s60
      %s75 = sphi 0, %s61
      %s79 = sphi 0, %s79
      %s81 = sphi 0, %s79
      %s82 = sphi 0, %s81
      %s96 = sphi 0, %s82
      %s100 = sphi 0, %s100
      %s102 = sphi 0, %s100
      %s103 = sphi 0, %s102
      %s117 = sphi 0, %s103
      %s121 = sphi 0, %s121
      %s123 = sphi 0, %s121
      %s124 = sphi 0, %s123
      %s138 = sphi 0, %s124
      %s142 = sphi 0, %s142
      %s144 = sphi 0, %s142
      %s145 = sphi 0, %s144
      %s159 = sphi 0, %s145
      %s163 = sphi 0, %s163
      %s165 = sphi 0, %s163
      %s166 = sphi 0, %s165
      %s180 = sphi 0, %s166
      %s184 = sphi 0, %s184
      %s186 = sphi 0, %s184
      %s187 = sphi 0, %s186
      %s201 = sphi 0, %s187
      %s205 = sphi 0, %s205
      %s207 = sphi 0, %s205
      %s208 = sphi 0, %s207
      %s222 = sphi 0, %s208
      %s228 = sphi 0, %s230
      %s231 = sphi 0, %s228
      %s232 = sphi 0, %s231
      %s248 = sphi 0, %s232
      %s254 = sphi 0, %s256
      %s257 = sphi 0, %s254
      %s258 = sphi 0, %s257
      %s274 = sphi 0, %s258
      %s280 = sphi 0, %s282
      %s283 = sphi 0, %s280
      %s284 = sphi 0, %s283
      %s300 = sphi 0, %s284
      %s306 = sphi 0, %s308
      %s309 = sphi 0, %s306
      %s310 = sphi 0, %s309
      %s326 = sphi 0, %s310
      %s332 = sphi 0, %s334
      %s335 = sphi 0, %s332
      %s336 = sphi 0, %s335
      %s352 = sphi 0, %s336
      %s358 = sphi 0, %s360
      %s361 = sphi 0, %s358
      %s362 = sphi 0, %s361
      %s378 = sphi 0, %s362
      %s384 = sphi 0, %s386
      %s387 = sphi 0, %s384
      %s388 = sphi 0, %s387
      %s404 = sphi 0, %s388
      %s410 = sphi 0, %s412
      %s413 = sphi 0, %s410
      %s414 = sphi 0, %s413
      %s430 = sphi 0, %s414
      %s436 = sphi 0, %s438
      %s439 = sphi 0, %s436
      %s440 = sphi 0, %s439
      %s456 = sphi 0, %s440
      %s460 = sphi 0, %s460
      %s462 = sphi 0, %s460
      %s463 = sphi 0, %s462
      %s477 = sphi 0, %s463
    $region4: #{tpu_custom_call.1} parent=1 // loop_header_branch
      %32 = sbr.rel (%p30) target = $region8
    $region5: #{tpu_custom_call.1} parent=1 // loop_body
      %s34 = ssub.s32 %s29, 1
      %s35 = ssub.s32 %s29, 2
      %s36 = sadd.s32 %s29, 1
      %s38 = sadd.s32 %s37, 1
      %p41 = scmp.eq.s32.totalorder %s29, 1
      %p42 = scmp.ne.s32.totalorder %s37, %s39
      %p43 = scmp.eq.s32.totalorder %s29, 0
      %p44 = por %p42, %p43
      %p45 = scmp.ne.s32.totalorder %s37, %s39
      %p46 = scmp.eq.s32.totalorder %s34, 1
      %p47 = por %p45, %p46
      %p48 = scmp.ne.s32.totalorder %s39, %s40
      %p49 = scmp.eq.s32.totalorder %s34, 0
      %p50 = por %p48, %p49
      %p51 = scmp.ne.s32.totalorder %s39, %s40
      %p52 = scmp.eq.s32.totalorder %s35, 1
      %p53 = por %p51, %p52
      %p55 = scmp.ne.s32.totalorder %s40, %s54
      %p56 = scmp.eq.s32.totalorder %s35, 0
      %p57 = por %p55, %p56
      %s59 = sadd.s32 %s58, 1
      %p62 = scmp.eq.s32.totalorder %s29, 1
      %p63 = scmp.ne.s32.totalorder %s58, %s60
      %p64 = scmp.eq.s32.totalorder %s29, 0
      %p65 = por %p63, %p64
      %p66 = scmp.ne.s32.totalorder %s58, %s60
      %p67 = scmp.eq.s32.totalorder %s34, 1
      %p68 = por %p66, %p67
      %p69 = scmp.ne.s32.totalorder %s60, %s61
      %p70 = scmp.eq.s32.totalorder %s34, 0
      %p71 = por %p69, %p70
      %p72 = scmp.ne.s32.totalorder %s60, %s61
      %p73 = scmp.eq.s32.totalorder %s35, 1
      %p74 = por %p72, %p73
      %p76 = scmp.ne.s32.totalorder %s61, %s75
      %p77 = scmp.eq.s32.totalorder %s35, 0
      %p78 = por %p76, %p77
      %s80 = sadd.s32 %s79, 1
      %p83 = scmp.eq.s32.totalorder %s29, 1
      %p84 = scmp.ne.s32.totalorder %s79, %s81
      %p85 = scmp.eq.s32.totalorder %s29, 0
      %p86 = por %p84, %p85
      %p87 = scmp.ne.s32.totalorder %s79, %s81
      %p88 = scmp.eq.s32.totalorder %s34, 1
      %p89 = por %p87, %p88
      %p90 = scmp.ne.s32.totalorder %s81, %s82
      %p91 = scmp.eq.s32.totalorder %s34, 0
      %p92 = por %p90, %p91
      %p93 = scmp.ne.s32.totalorder %s81, %s82
      %p94 = scmp.eq.s32.totalorder %s35, 1
      %p95 = por %p93, %p94
      %p97 = scmp.ne.s32.totalorder %s82, %s96
      %p98 = scmp.eq.s32.totalorder %s35, 0
      %p99 = por %p97, %p98
      %s101 = sadd.s32 %s100, 1
      %p104 = scmp.eq.s32.totalorder %s29, 1
      %p105 = scmp.ne.s32.totalorder %s100, %s102
      %p106 = scmp.eq.s32.totalorder %s29, 0
      %p107 = por %p105, %p106
      %p108 = scmp.ne.s32.totalorder %s100, %s102
      %p109 = scmp.eq.s32.totalorder %s34, 1
      %p110 = por %p108, %p109
      %p111 = scmp.ne.s32.totalorder %s102, %s103
      %p112 = scmp.eq.s32.totalorder %s34, 0
      %p113 = por %p111, %p112
      %p114 = scmp.ne.s32.totalorder %s102, %s103
      %p115 = scmp.eq.s32.totalorder %s35, 1
      %p116 = por %p114, %p115
      %p118 = scmp.ne.s32.totalorder %s103, %s117
      %p119 = scmp.eq.s32.totalorder %s35, 0
      %p120 = por %p118, %p119
      %s122 = sadd.s32 %s121, 1
      %p125 = scmp.eq.s32.totalorder %s29, 1
      %p126 = scmp.ne.s32.totalorder %s121, %s123
      %p127 = scmp.eq.s32.totalorder %s29, 0
      %p128 = por %p126, %p127
      %p129 = scmp.ne.s32.totalorder %s121, %s123
      %p130 = scmp.eq.s32.totalorder %s34, 1
      %p131 = por %p129, %p130
      %p132 = scmp.ne.s32.totalorder %s123, %s124
      %p133 = scmp.eq.s32.totalorder %s34, 0
      %p134 = por %p132, %p133
      %p135 = scmp.ne.s32.totalorder %s123, %s124
      %p136 = scmp.eq.s32.totalorder %s35, 1
      %p137 = por %p135, %p136
      %p139 = scmp.ne.s32.totalorder %s124, %s138
      %p140 = scmp.eq.s32.totalorder %s35, 0
      %p141 = por %p139, %p140
      %s143 = sadd.s32 %s142, 1
      %p146 = scmp.eq.s32.totalorder %s29, 1
      %p147 = scmp.ne.s32.totalorder %s142, %s144
      %p148 = scmp.eq.s32.totalorder %s29, 0
      %p149 = por %p147, %p148
      %p150 = scmp.ne.s32.totalorder %s142, %s144
      %p151 = scmp.eq.s32.totalorder %s34, 1
      %p152 = por %p150, %p151
      %p153 = scmp.ne.s32.totalorder %s144, %s145
      %p154 = scmp.eq.s32.totalorder %s34, 0
      %p155 = por %p153, %p154
      %p156 = scmp.ne.s32.totalorder %s144, %s145
      %p157 = scmp.eq.s32.totalorder %s35, 1
      %p158 = por %p156, %p157
      %p160 = scmp.ne.s32.totalorder %s145, %s159
      %p161 = scmp.eq.s32.totalorder %s35, 0
      %p162 = por %p160, %p161
      %s164 = sadd.s32 %s163, 1
      %p167 = scmp.eq.s32.totalorder %s29, 1
      %p168 = scmp.ne.s32.totalorder %s163, %s165
      %p169 = scmp.eq.s32.totalorder %s29, 0
      %p170 = por %p168, %p169
      %p171 = scmp.ne.s32.totalorder %s163, %s165
      %p172 = scmp.eq.s32.totalorder %s34, 1
      %p173 = por %p171, %p172
      %p174 = scmp.ne.s32.totalorder %s165, %s166
      %p175 = scmp.eq.s32.totalorder %s34, 0
      %p176 = por %p174, %p175
      %p177 = scmp.ne.s32.totalorder %s165, %s166
      %p178 = scmp.eq.s32.totalorder %s35, 1
      %p179 = por %p177, %p178
      %p181 = scmp.ne.s32.totalorder %s166, %s180
      %p182 = scmp.eq.s32.totalorder %s35, 0
      %p183 = por %p181, %p182
      %s185 = sadd.s32 %s184, 1
      %p188 = scmp.eq.s32.totalorder %s29, 1
      %p189 = scmp.ne.s32.totalorder %s184, %s186
      %p190 = scmp.eq.s32.totalorder %s29, 0
      %p191 = por %p189, %p190
      %p192 = scmp.ne.s32.totalorder %s184, %s186
      %p193 = scmp.eq.s32.totalorder %s34, 1
      %p194 = por %p192, %p193
      %p195 = scmp.ne.s32.totalorder %s186, %s187
      %p196 = scmp.eq.s32.totalorder %s34, 0
      %p197 = por %p195, %p196
      %p198 = scmp.ne.s32.totalorder %s186, %s187
      %p199 = scmp.eq.s32.totalorder %s35, 1
      %p200 = por %p198, %p199
      %p202 = scmp.ne.s32.totalorder %s187, %s201
      %p203 = scmp.eq.s32.totalorder %s35, 0
      %p204 = por %p202, %p203
      %s206 = sadd.s32 %s205, 1
      %p209 = scmp.eq.s32.totalorder %s29, 1
      %p210 = scmp.ne.s32.totalorder %s205, %s207
      %p211 = scmp.eq.s32.totalorder %s29, 0
      %p212 = por %p210, %p211
      %p213 = scmp.ne.s32.totalorder %s205, %s207
      %p214 = scmp.eq.s32.totalorder %s34, 1
      %p215 = por %p213, %p214
      %p216 = scmp.ne.s32.totalorder %s207, %s208
      %p217 = scmp.eq.s32.totalorder %s34, 0
      %p218 = por %p216, %p217
      %p219 = scmp.ne.s32.totalorder %s207, %s208
      %p220 = scmp.eq.s32.totalorder %s35, 1
      %p221 = por %p219, %p220
      %p223 = scmp.ne.s32.totalorder %s208, %s222
      %p224 = scmp.eq.s32.totalorder %s35, 0
      %p225 = por %p223, %p224
      %s226 = ssub.s32 %s29, %s36
      %p227 = scmp.eq.s32.totalorder %s226, 0
      %s229 = sadd.s32 %s228, 1
      %s230 = scalar_select %p227, %s228, %s229
      %p233 = pneg %p227
      %p234 = scmp.eq.s32.totalorder %s29, 1
      %p235 = por %p233, %p234
      %p236 = scmp.ne.s32.totalorder %s228, %s231
      %p237 = scmp.eq.s32.totalorder %s29, 0
      %p238 = por %p236, %p237
      %p239 = scmp.ne.s32.totalorder %s228, %s231
      %p240 = scmp.eq.s32.totalorder %s34, 1
      %p241 = por %p239, %p240
      %p242 = scmp.ne.s32.totalorder %s231, %s232
      %p243 = scmp.eq.s32.totalorder %s34, 0
      %p244 = por %p242, %p243
      %p245 = scmp.ne.s32.totalorder %s231, %s232
      %p246 = scmp.eq.s32.totalorder %s35, 1
      %p247 = por %p245, %p246
      %p249 = scmp.ne.s32.totalorder %s232, %s248
      %p250 = scmp.eq.s32.totalorder %s35, 0
      %p251 = por %p249, %p250
      %s252 = ssub.s32 %s29, %s36
      %p253 = scmp.eq.s32.totalorder %s252, 0
      %s255 = sadd.s32 %s254, 1
      %s256 = scalar_select %p253, %s254, %s255
      %p259 = pneg %p253
      %p260 = scmp.eq.s32.totalorder %s29, 1
      %p261 = por %p259, %p260
      %p262 = scmp.ne.s32.totalorder %s254, %s257
      %p263 = scmp.eq.s32.totalorder %s29, 0
      %p264 = por %p262, %p263
      %p265 = scmp.ne.s32.totalorder %s254, %s257
      %p266 = scmp.eq.s32.totalorder %s34, 1
      %p267 = por %p265, %p266
      %p268 = scmp.ne.s32.totalorder %s257, %s258
      %p269 = scmp.eq.s32.totalorder %s34, 0
      %p270 = por %p268, %p269
      %p271 = scmp.ne.s32.totalorder %s257, %s258
      %p272 = scmp.eq.s32.totalorder %s35, 1
      %p273 = por %p271, %p272
      %p275 = scmp.ne.s32.totalorder %s258, %s274
      %p276 = scmp.eq.s32.totalorder %s35, 0
      %p277 = por %p275, %p276
      %s278 = ssub.s32 %s29, %s36
      %p279 = scmp.eq.s32.totalorder %s278, 0
      %s281 = sadd.s32 %s280, 1
      %s282 = scalar_select %p279, %s280, %s281
      %p285 = pneg %p279
      %p286 = scmp.eq.s32.totalorder %s29, 1
      %p287 = por %p285, %p286
      %p288 = scmp.ne.s32.totalorder %s280, %s283
      %p289 = scmp.eq.s32.totalorder %s29, 0
      %p290 = por %p288, %p289
      %p291 = scmp.ne.s32.totalorder %s280, %s283
      %p292 = scmp.eq.s32.totalorder %s34, 1
      %p293 = por %p291, %p292
      %p294 = scmp.ne.s32.totalorder %s283, %s284
      %p295 = scmp.eq.s32.totalorder %s34, 0
      %p296 = por %p294, %p295
      %p297 = scmp.ne.s32.totalorder %s283, %s284
      %p298 = scmp.eq.s32.totalorder %s35, 1
      %p299 = por %p297, %p298
      %p301 = scmp.ne.s32.totalorder %s284, %s300
      %p302 = scmp.eq.s32.totalorder %s35, 0
      %p303 = por %p301, %p302
      %s304 = ssub.s32 %s29, %s36
      %p305 = scmp.eq.s32.totalorder %s304, 0
      %s307 = sadd.s32 %s306, 1
      %s308 = scalar_select %p305, %s306, %s307
      %p311 = pneg %p305
      %p312 = scmp.eq.s32.totalorder %s29, 1
      %p313 = por %p311, %p312
      %p314 = scmp.ne.s32.totalorder %s306, %s309
      %p315 = scmp.eq.s32.totalorder %s29, 0
      %p316 = por %p314, %p315
      %p317 = scmp.ne.s32.totalorder %s306, %s309
      %p318 = scmp.eq.s32.totalorder %s34, 1
      %p319 = por %p317, %p318
      %p320 = scmp.ne.s32.totalorder %s309, %s310
      %p321 = scmp.eq.s32.totalorder %s34, 0
      %p322 = por %p320, %p321
      %p323 = scmp.ne.s32.totalorder %s309, %s310
      %p324 = scmp.eq.s32.totalorder %s35, 1
      %p325 = por %p323, %p324
      %p327 = scmp.ne.s32.totalorder %s310, %s326
      %p328 = scmp.eq.s32.totalorder %s35, 0
      %p329 = por %p327, %p328
      %s330 = ssub.s32 %s29, %s36
      %p331 = scmp.eq.s32.totalorder %s330, 0
      %s333 = sadd.s32 %s332, 1
      %s334 = scalar_select %p331, %s332, %s333
      %p337 = pneg %p331
      %p338 = scmp.eq.s32.totalorder %s29, 1
      %p339 = por %p337, %p338
      %p340 = scmp.ne.s32.totalorder %s332, %s335
      %p341 = scmp.eq.s32.totalorder %s29, 0
      %p342 = por %p340, %p341
      %p343 = scmp.ne.s32.totalorder %s332, %s335
      %p344 = scmp.eq.s32.totalorder %s34, 1
      %p345 = por %p343, %p344
      %p346 = scmp.ne.s32.totalorder %s335, %s336
      %p347 = scmp.eq.s32.totalorder %s34, 0
      %p348 = por %p346, %p347
      %p349 = scmp.ne.s32.totalorder %s335, %s336
      %p350 = scmp.eq.s32.totalorder %s35, 1
      %p351 = por %p349, %p350
      %p353 = scmp.ne.s32.totalorder %s336, %s352
      %p354 = scmp.eq.s32.totalorder %s35, 0
      %p355 = por %p353, %p354
      %s356 = ssub.s32 %s29, %s36
      %p357 = scmp.eq.s32.totalorder %s356, 0
      %s359 = sadd.s32 %s358, 1
      %s360 = scalar_select %p357, %s358, %s359
      %p363 = pneg %p357
      %p364 = scmp.eq.s32.totalorder %s29, 1
      %p365 = por %p363, %p364
      %p366 = scmp.ne.s32.totalorder %s358, %s361
      %p367 = scmp.eq.s32.totalorder %s29, 0
      %p368 = por %p366, %p367
      %p369 = scmp.ne.s32.totalorder %s358, %s361
      %p370 = scmp.eq.s32.totalorder %s34, 1
      %p371 = por %p369, %p370
      %p372 = scmp.ne.s32.totalorder %s361, %s362
      %p373 = scmp.eq.s32.totalorder %s34, 0
      %p374 = por %p372, %p373
      %p375 = scmp.ne.s32.totalorder %s361, %s362
      %p376 = scmp.eq.s32.totalorder %s35, 1
      %p377 = por %p375, %p376
      %p379 = scmp.ne.s32.totalorder %s362, %s378
      %p380 = scmp.eq.s32.totalorder %s35, 0
      %p381 = por %p379, %p380
      %s382 = ssub.s32 %s29, %s36
      %p383 = scmp.eq.s32.totalorder %s382, 0
      %s385 = sadd.s32 %s384, 1
      %s386 = scalar_select %p383, %s384, %s385
      %p389 = pneg %p383
      %p390 = scmp.eq.s32.totalorder %s29, 1
      %p391 = por %p389, %p390
      %p392 = scmp.ne.s32.totalorder %s384, %s387
      %p393 = scmp.eq.s32.totalorder %s29, 0
      %p394 = por %p392, %p393
      %p395 = scmp.ne.s32.totalorder %s384, %s387
      %p396 = scmp.eq.s32.totalorder %s34, 1
      %p397 = por %p395, %p396
      %p398 = scmp.ne.s32.totalorder %s387, %s388
      %p399 = scmp.eq.s32.totalorder %s34, 0
      %p400 = por %p398, %p399
      %p401 = scmp.ne.s32.totalorder %s387, %s388
      %p402 = scmp.eq.s32.totalorder %s35, 1
      %p403 = por %p401, %p402
      %p405 = scmp.ne.s32.totalorder %s388, %s404
      %p406 = scmp.eq.s32.totalorder %s35, 0
      %p407 = por %p405, %p406
      %s408 = ssub.s32 %s29, %s36
      %p409 = scmp.eq.s32.totalorder %s408, 0
      %s411 = sadd.s32 %s410, 1
      %s412 = scalar_select %p409, %s410, %s411
      %p415 = pneg %p409
      %p416 = scmp.eq.s32.totalorder %s29, 1
      %p417 = por %p415, %p416
      %p418 = scmp.ne.s32.totalorder %s410, %s413
      %p419 = scmp.eq.s32.totalorder %s29, 0
      %p420 = por %p418, %p419
      %p421 = scmp.ne.s32.totalorder %s410, %s413
      %p422 = scmp.eq.s32.totalorder %s34, 1
      %p423 = por %p421, %p422
      %p424 = scmp.ne.s32.totalorder %s413, %s414
      %p425 = scmp.eq.s32.totalorder %s34, 0
      %p426 = por %p424, %p425
      %p427 = scmp.ne.s32.totalorder %s413, %s414
      %p428 = scmp.eq.s32.totalorder %s35, 1
      %p429 = por %p427, %p428
      %p431 = scmp.ne.s32.totalorder %s414, %s430
      %p432 = scmp.eq.s32.totalorder %s35, 0
      %p433 = por %p431, %p432
      %s434 = ssub.s32 %s29, %s36
      %p435 = scmp.eq.s32.totalorder %s434, 0
      %s437 = sadd.s32 %s436, 1
      %s438 = scalar_select %p435, %s436, %s437
      %p441 = pneg %p435
      %p442 = scmp.eq.s32.totalorder %s29, 1
      %p443 = por %p441, %p442
      %p444 = scmp.ne.s32.totalorder %s436, %s439
      %p445 = scmp.eq.s32.totalorder %s29, 0
      %p446 = por %p444, %p445
      %p447 = scmp.ne.s32.totalorder %s436, %s439
      %p448 = scmp.eq.s32.totalorder %s34, 1
      %p449 = por %p447, %p448
      %p450 = scmp.ne.s32.totalorder %s439, %s440
      %p451 = scmp.eq.s32.totalorder %s34, 0
      %p452 = por %p450, %p451
      %p453 = scmp.ne.s32.totalorder %s439, %s440
      %p454 = scmp.eq.s32.totalorder %s35, 1
      %p455 = por %p453, %p454
      %p457 = scmp.ne.s32.totalorder %s440, %s456
      %p458 = scmp.eq.s32.totalorder %s35, 0
      %p459 = por %p457, %p458
      %s461 = sadd.s32 %s460, 1
      %p464 = scmp.eq.s32.totalorder %s29, 1
      %p465 = scmp.ne.s32.totalorder %s460, %s462
      %p466 = scmp.eq.s32.totalorder %s29, 0
      %p467 = por %p465, %p466
      %p468 = scmp.ne.s32.totalorder %s460, %s462
      %p469 = scmp.eq.s32.totalorder %s34, 1
      %p470 = por %p468, %p469
      %p471 = scmp.ne.s32.totalorder %s462, %s463
      %p472 = scmp.eq.s32.totalorder %s34, 0
      %p473 = por %p471, %p472
      %p474 = scmp.ne.s32.totalorder %s462, %s463
      %p475 = scmp.eq.s32.totalorder %s35, 1
      %p476 = por %p474, %p475
      %p478 = scmp.ne.s32.totalorder %s463, %s477
      %p479 = scmp.eq.s32.totalorder %s35, 0
      %p480 = por %p478, %p479
      %p481 = scmp.le.s32.totalorder 1, %s29
      %p482 = scmp.lt.s32.totalorder %s29, 3
      %p483 = pnand %p481, %p482
      %p484 = pneg %p483
      // Predicated region
      $region9: #{tpu_custom_call.1} parent=5 // pred_check
        _
      $region10: #{tpu_custom_call.1} parent=5 // pred_check_branch
        %486 = sbr.rel (%p483) target = $region12
      $region11: #{tpu_custom_call.1} parent=5 // pred_region
        %s487 = ssub.s32 %s29, 1
        // Predicated region
        $region13: #{tpu_custom_call.1} parent=11 // pred_check
          %p488 = pneg %p50
        $region14: #{tpu_custom_call.1} parent=11 // pred_check_branch
          %490 = sbr.rel (%p488) target = $region16
        $region15: #{tpu_custom_call.1} parent=11 // pred_region
          _
        $region16: #{tpu_custom_call.1} parent=11 // pred_fallthru
          _
        // Predicated region
        $region17: #{tpu_custom_call.1} parent=11 // pred_check
          %p491 = pneg %p71
        $region18: #{tpu_custom_call.1} parent=11 // pred_check_branch
          %493 = sbr.rel (%p491) target = $region20
        $region19: #{tpu_custom_call.1} parent=11 // pred_region
          %s495 = ssub.s32 256, 256
          %496 = vsyncadd [#allocation4], %s495
          %s497 = sshll.u32 [#allocation3], 4
          %s498 = int_to_ptr.vmem [resolvable:$true] %s497
          %503 = dma.hbm_to_vmem [thread:$0]  %s1, 256, %s498, [#allocation4], 128, 128, 8
        $region20: #{tpu_custom_call.1} parent=11 // pred_fallthru
          _
        // Predicated region
        $region21: #{tpu_custom_call.1} parent=11 // pred_check
          %p504 = pneg %p92
        $region22: #{tpu_custom_call.1} parent=11 // pred_check_branch
          %506 = sbr.rel (%p504) target = $region24
        $region23: #{tpu_custom_call.1} parent=11 // pred_region
          %s508 = ssub.s32 16, 16
          %509 = vsyncadd [#allocation7], %s508
          %s511 = sshll.u32 [#allocation6], 4
          %s512 = int_to_ptr.vmem [resolvable:$true] %s511
          %514 = dma.hbm_to_vmem [thread:$0]  %s2, 16, %s512, [#allocation7]
        $region24: #{tpu_custom_call.1} parent=11 // pred_fallthru
          _
        // Predicated region
        $region25: #{tpu_custom_call.1} parent=11 // pred_check
          %p515 = pneg %p113
        $region26: #{tpu_custom_call.1} parent=11 // pred_check_branch
          %517 = sbr.rel (%p515) target = $region28
        $region27: #{tpu_custom_call.1} parent=11 // pred_region
          %s519 = ssub.s32 256, 256
          %520 = vsyncadd [#allocation7], %s519
          %s521 = sshll.u32 [#allocation8], 4
          %s522 = int_to_ptr.vmem [resolvable:$true] %s521
          %527 = dma.hbm_to_vmem [thread:$0]  %s3, 256, %s522, [#allocation7], 128, 128, 8
        $region28: #{tpu_custom_call.1} parent=11 // pred_fallthru
          _
        // Predicated region
        $region29: #{tpu_custom_call.1} parent=11 // pred_check
          %p528 = pneg %p134
        $region30: #{tpu_custom_call.1} parent=11 // pred_check_branch
          %530 = sbr.rel (%p528) target = $region32
        $region31: #{tpu_custom_call.1} parent=11 // pred_region
          _
        $region32: #{tpu_custom_call.1} parent=11 // pred_fallthru
          _
        // Predicated region
        $region33: #{tpu_custom_call.1} parent=11 // pred_check
          %p531 = pneg %p155
        $region34: #{tpu_custom_call.1} parent=11 // pred_check_branch
          %533 = sbr.rel (%p531) target = $region36
        $region35: #{tpu_custom_call.1} parent=11 // pred_region
          %s535 = ssub.s32 2048, 2048
          %536 = vsyncadd [#allocation10], %s535
          %s537 = sshll.u32 [#allocation9], 4
          %s538 = int_to_ptr.vmem [resolvable:$true] %s537
          %543 = dma.hbm_to_vmem [thread:$0]  %s5, 2048, %s538, [#allocation10], 128, 128, 8
        $region36: #{tpu_custom_call.1} parent=11 // pred_fallthru
          _
        // Predicated region
        $region37: #{tpu_custom_call.1} parent=11 // pred_check
          %p544 = pneg %p176
        $region38: #{tpu_custom_call.1} parent=11 // pred_check_branch
          %546 = sbr.rel (%p544) target = $region40
        $region39: #{tpu_custom_call.1} parent=11 // pred_region
          %s548 = ssub.s32 16, 16
          %549 = vsyncadd [#allocation10], %s548
          %s551 = sshll.u32 [#allocation11], 4
          %s552 = int_to_ptr.vmem [resolvable:$true] %s551
          %554 = dma.hbm_to_vmem [thread:$0]  %s6, 16, %s552, [#allocation10]
        $region40: #{tpu_custom_call.1} parent=11 // pred_fallthru
          _
        // Predicated region
        $region41: #{tpu_custom_call.1} parent=11 // pred_check
          %p555 = pneg %p197
        $region42: #{tpu_custom_call.1} parent=11 // pred_check_branch
          %557 = sbr.rel (%p555) target = $region44
        $region43: #{tpu_custom_call.1} parent=11 // pred_region
          %s559 = ssub.s32 128, 128
          %560 = vsyncadd [#allocation13], %s559
          %s561 = sshll.u32 [#allocation12], 4
          %s562 = int_to_ptr.vmem [resolvable:$true] %s561
          %567 = dma.hbm_to_vmem [thread:$0]  %s7, 128, %s562, [#allocation13], 64, 64, 4
        $region44: #{tpu_custom_call.1} parent=11 // pred_fallthru
          _
        // Predicated region
        $region45: #{tpu_custom_call.1} parent=11 // pred_check
          %p568 = pneg %p218
        $region46: #{tpu_custom_call.1} parent=11 // pred_check_branch
          %570 = sbr.rel (%p568) target = $region48
        $region47: #{tpu_custom_call.1} parent=11 // pred_region
          _
        $region48: #{tpu_custom_call.1} parent=11 // pred_fallthru
          _
      $region12: #{tpu_custom_call.1} parent=5 // pred_fallthru
        _
      %p571 = scmp.lt.s32.totalorder %s29, 2
      // Predicated region
      $region49: #{tpu_custom_call.1} parent=5 // pred_check
        %p572 = pneg %p571
      $region50: #{tpu_custom_call.1} parent=5 // pred_check_branch
        %574 = sbr.rel (%p572) target = $region52
      $region51: #{tpu_custom_call.1} parent=5 // pred_region
        // Predicated region
        $region53: #{tpu_custom_call.1} parent=51 // pred_check
          %p575 = pneg %p238
        $region54: #{tpu_custom_call.1} parent=51 // pred_check_branch
          %577 = sbr.rel (%p575) target = $region56
        $region55: #{tpu_custom_call.1} parent=51 // pred_region
          %s578 = sand.u32 %s29, 1
          %s579 = scalar_lea.sflag [#allocation4], %s578
          %s580 = sand.u32 %s228, 1
          %s581 = smul.addr %s580, 832
          %s582 = scalar_lea.vmem [#allocation14], %s581
          %s584 = ssub.s32 13312, 13312
          %585 = vsyncadd %s579, %s584
          %s586 = smul.addr %s29, 208
          %s587 = smul.addr %s586, 64
          %s588 = scalar_lea.hbm %s9, %s587
          %s589 = sshll.u32 %s582, 4
          %s590 = int_to_ptr.vmem [resolvable:$true] %s589
          %595 = dma.hbm_to_vmem [thread:$0]  %s588, 13312, %s590, %s579, 832, 832, 52
        $region56: #{tpu_custom_call.1} parent=51 // pred_fallthru
          _
        // Predicated region
        $region57: #{tpu_custom_call.1} parent=51 // pred_check
          %p596 = pneg %p264
        $region58: #{tpu_custom_call.1} parent=51 // pred_check_branch
          %598 = sbr.rel (%p596) target = $region60
        $region59: #{tpu_custom_call.1} parent=51 // pred_region
          %p599 = scmp.lt.s32.totalorder %s29, 1
          %s600 = scalar_select %p599, %s29, 1
          %s601 = smul.addr %s600, 13
          %s602 = scalar_lea.vmem %s10, %s601
        $region60: #{tpu_custom_call.1} parent=51 // pred_fallthru
          _
        // Predicated region
        $region61: #{tpu_custom_call.1} parent=51 // pred_check
          %p603 = pneg %p290
        $region62: #{tpu_custom_call.1} parent=51 // pred_check_branch
          %605 = sbr.rel (%p603) target = $region64
        $region63: #{tpu_custom_call.1} parent=51 // pred_region
          %s606 = sand.u32 %s29, 1
          %s607 = scalar_lea.sflag [#allocation4], %s606
          %s608 = sand.u32 %s280, 1
          %s609 = smul.addr %s608, 64
          %s610 = scalar_lea.vmem [#allocation15], %s609
          %s612 = ssub.s32 1024, 1024
          %613 = vsyncadd %s607, %s612
          %s614 = smul.addr %s29, 16
          %s615 = smul.addr %s614, 64
          %s616 = scalar_lea.hbm %s11, %s615
          %s617 = sshll.u32 %s610, 4
          %s618 = int_to_ptr.vmem [resolvable:$true] %s617
          %623 = dma.hbm_to_vmem [thread:$0]  %s616, 1024, %s618, %s607, 64, 64, 4
        $region64: #{tpu_custom_call.1} parent=51 // pred_fallthru
          _
        // Predicated region
        $region65: #{tpu_custom_call.1} parent=51 // pred_check
          %p624 = pneg %p316
        $region66: #{tpu_custom_call.1} parent=51 // pred_check_branch
          %626 = sbr.rel (%p624) target = $region68
        $region67: #{tpu_custom_call.1} parent=51 // pred_region
          %p627 = scmp.lt.s32.totalorder %s29, 1
          %s628 = scalar_select %p627, %s29, 1
          %s629 = scalar_lea.vmem %s12, %s628
        $region68: #{tpu_custom_call.1} parent=51 // pred_fallthru
          _
        // Predicated region
        $region69: #{tpu_custom_call.1} parent=51 // pred_check
          %p630 = pneg %p342
        $region70: #{tpu_custom_call.1} parent=51 // pred_check_branch
          %632 = sbr.rel (%p630) target = $region72
        $region71: #{tpu_custom_call.1} parent=51 // pred_region
          %s633 = sand.u32 %s29, 1
          %s634 = scalar_lea.sflag [#allocation4], %s633
          %s635 = sand.u32 %s332, 1
          %s636 = smul.addr %s635, 256
          %s637 = scalar_lea.vmem [#allocation16], %s636
          %s639 = ssub.s32 4096, 4096
          %640 = vsyncadd %s634, %s639
          %s641 = smul.addr %s29, 64
          %s642 = smul.addr %s641, 64
          %s643 = scalar_lea.hbm %s13, %s642
          %s644 = sshll.u32 %s637, 4
          %s645 = int_to_ptr.vmem [resolvable:$true] %s644
          %650 = dma.hbm_to_vmem [thread:$0]  %s643, 4096, %s645, %s634, 256, 256, 16
        $region72: #{tpu_custom_call.1} parent=51 // pred_fallthru
          _
        // Predicated region
        $region73: #{tpu_custom_call.1} parent=51 // pred_check
          %p651 = pneg %p368
        $region74: #{tpu_custom_call.1} parent=51 // pred_check_branch
          %653 = sbr.rel (%p651) target = $region76
        $region75: #{tpu_custom_call.1} parent=51 // pred_region
          %p654 = scmp.lt.s32.totalorder %s29, 1
          %s655 = scalar_select %p654, %s29, 1
          %s656 = smul.addr %s655, 4
          %s657 = scalar_lea.vmem %s14, %s656
        $region76: #{tpu_custom_call.1} parent=51 // pred_fallthru
          _
        // Predicated region
        $region77: #{tpu_custom_call.1} parent=51 // pred_check
          %p658 = pneg %p394
        $region78: #{tpu_custom_call.1} parent=51 // pred_check_branch
          %660 = sbr.rel (%p658) target = $region80
        $region79: #{tpu_custom_call.1} parent=51 // pred_region
          %s661 = sand.u32 %s29, 1
          %s662 = scalar_lea.sflag [#allocation4], %s661
          %s663 = sand.u32 %s384, 1
          %s664 = smul.addr %s663, 256
          %s665 = scalar_lea.vmem [#allocation17], %s664
          %s667 = ssub.s32 4096, 4096
          %668 = vsyncadd %s662, %s667
          %s669 = smul.addr %s29, 64
          %s670 = smul.addr %s669, 64
          %s671 = scalar_lea.hbm %s15, %s670
          %s672 = sshll.u32 %s665, 4
          %s673 = int_to_ptr.vmem [resolvable:$true] %s672
          %678 = dma.hbm_to_vmem [thread:$0]  %s671, 4096, %s673, %s662, 64, 64, 4
        $region80: #{tpu_custom_call.1} parent=51 // pred_fallthru
          _
        // Predicated region
        $region81: #{tpu_custom_call.1} parent=51 // pred_check
          %p679 = pneg %p420
        $region82: #{tpu_custom_call.1} parent=51 // pred_check_branch
          %681 = sbr.rel (%p679) target = $region84
        $region83: #{tpu_custom_call.1} parent=51 // pred_region
          %p682 = scmp.lt.s32.totalorder %s29, 1
          %s683 = scalar_select %p682, %s29, 1
          %s684 = scalar_lea.vmem %s16, %s683
        $region84: #{tpu_custom_call.1} parent=51 // pred_fallthru
          _
        // Predicated region
        $region85: #{tpu_custom_call.1} parent=51 // pred_check
          %p685 = pneg %p446
        $region86: #{tpu_custom_call.1} parent=51 // pred_check_branch
          %687 = sbr.rel (%p685) target = $region88
        $region87: #{tpu_custom_call.1} parent=51 // pred_region
          %p688 = scmp.lt.s32.totalorder %s29, 1
          %s689 = scalar_select %p688, %s29, 1
          %s690 = smul.addr %s689, 8
          %s691 = scalar_lea.vmem %s17, %s690
        $region88: #{tpu_custom_call.1} parent=51 // pred_fallthru
          _
      $region52: #{tpu_custom_call.1} parent=5 // pred_fallthru
        _
      %p692 = scmp.le.s32.totalorder 1, %s29
      %p693 = scmp.lt.s32.totalorder %s29, 3
      %p694 = pnand %p692, %p693
      %p695 = pneg %p694
      // Predicated region
      $region89: #{tpu_custom_call.1} parent=5 // pred_check
        _
      $region90: #{tpu_custom_call.1} parent=5 // pred_check_branch
        %697 = sbr.rel (%p694) target = $region92
      $region91: #{tpu_custom_call.1} parent=5 // pred_region
        %s698 = ssub.s32 %s29, 1
        // Predicated region
        $region93: #{tpu_custom_call.1} parent=91 // pred_check
          %p699 = pneg %p71
        $region94: #{tpu_custom_call.1} parent=91 // pred_check_branch
          %701 = sbr.rel (%p699) target = $region96
        $region95: #{tpu_custom_call.1} parent=91 // pred_region
          %702 = dma.done [#allocation4], 256
        $region96: #{tpu_custom_call.1} parent=91 // pred_fallthru
          _
        // Predicated region
        $region97: #{tpu_custom_call.1} parent=91 // pred_check
          %p703 = pneg %p92
        $region98: #{tpu_custom_call.1} parent=91 // pred_check_branch
          %705 = sbr.rel (%p703) target = $region100
        $region99: #{tpu_custom_call.1} parent=91 // pred_region
          %706 = dma.done [#allocation7], 16
        $region100: #{tpu_custom_call.1} parent=91 // pred_fallthru
          _
        // Predicated region
        $region101: #{tpu_custom_call.1} parent=91 // pred_check
          %p707 = pneg %p113
        $region102: #{tpu_custom_call.1} parent=91 // pred_check_branch
          %709 = sbr.rel (%p707) target = $region104
        $region103: #{tpu_custom_call.1} parent=91 // pred_region
          %710 = dma.done [#allocation7], 256
        $region104: #{tpu_custom_call.1} parent=91 // pred_fallthru
          _
        // Predicated region
        $region105: #{tpu_custom_call.1} parent=91 // pred_check
          %p711 = pneg %p155
        $region106: #{tpu_custom_call.1} parent=91 // pred_check_branch
          %713 = sbr.rel (%p711) target = $region108
        $region107: #{tpu_custom_call.1} parent=91 // pred_region
          %714 = dma.done [#allocation10], 2048
        $region108: #{tpu_custom_call.1} parent=91 // pred_fallthru
          _
        // Predicated region
        $region109: #{tpu_custom_call.1} parent=91 // pred_check
          %p715 = pneg %p176
        $region110: #{tpu_custom_call.1} parent=91 // pred_check_branch
          %717 = sbr.rel (%p715) target = $region112
        $region111: #{tpu_custom_call.1} parent=91 // pred_region
          %718 = dma.done [#allocation10], 16
        $region112: #{tpu_custom_call.1} parent=91 // pred_fallthru
          _
        // Predicated region
        $region113: #{tpu_custom_call.1} parent=91 // pred_check
          %p719 = pneg %p197
        $region114: #{tpu_custom_call.1} parent=91 // pred_check_branch
          %721 = sbr.rel (%p719) target = $region116
        $region115: #{tpu_custom_call.1} parent=91 // pred_region
          %722 = dma.done [#allocation13], 128
        $region116: #{tpu_custom_call.1} parent=91 // pred_fallthru
          _
        %s723 = sand.u32 %s34, 1
        %s724 = scalar_lea.sflag [#allocation4], %s723
        %s725 = sand.u32 %s231, 1
        %s726 = smul.addr %s725, 832
        %s727 = scalar_lea.vmem [#allocation14], %s726
        // Predicated region
        $region117: #{tpu_custom_call.1} parent=91 // pred_check
          %p728 = pneg %p244
        $region118: #{tpu_custom_call.1} parent=91 // pred_check_branch
          %730 = sbr.rel (%p728) target = $region120
        $region119: #{tpu_custom_call.1} parent=91 // pred_region
          %731 = dma.done %s724, 13312
        $region120: #{tpu_custom_call.1} parent=91 // pred_fallthru
          _
        %s732 = sand.u32 %s34, 1
        %s733 = scalar_lea.sflag [#allocation4], %s732
        %s734 = sand.u32 %s283, 1
        %s735 = smul.addr %s734, 64
        %s736 = scalar_lea.vmem [#allocation15], %s735
        // Predicated region
        $region121: #{tpu_custom_call.1} parent=91 // pred_check
          %p737 = pneg %p296
        $region122: #{tpu_custom_call.1} parent=91 // pred_check_branch
          %739 = sbr.rel (%p737) target = $region124
        $region123: #{tpu_custom_call.1} parent=91 // pred_region
          %740 = dma.done %s733, 1024
        $region124: #{tpu_custom_call.1} parent=91 // pred_fallthru
          _
        %s741 = sand.u32 %s34, 1
        %s742 = scalar_lea.sflag [#allocation4], %s741
        %s743 = sand.u32 %s335, 1
        %s744 = smul.addr %s743, 256
        %s745 = scalar_lea.vmem [#allocation16], %s744
        // Predicated region
        $region125: #{tpu_custom_call.1} parent=91 // pred_check
          %p746 = pneg %p348
        $region126: #{tpu_custom_call.1} parent=91 // pred_check_branch
          %748 = sbr.rel (%p746) target = $region128
        $region127: #{tpu_custom_call.1} parent=91 // pred_region
          %749 = dma.done %s742, 4096
        $region128: #{tpu_custom_call.1} parent=91 // pred_fallthru
          _
        %s750 = sand.u32 %s34, 1
        %s751 = scalar_lea.sflag [#allocation4], %s750
        %s752 = sand.u32 %s387, 1
        %s753 = smul.addr %s752, 256
        %s754 = scalar_lea.vmem [#allocation17], %s753
        // Predicated region
        $region129: #{tpu_custom_call.1} parent=91 // pred_check
          %p755 = pneg %p400
        $region130: #{tpu_custom_call.1} parent=91 // pred_check_branch
          %757 = sbr.rel (%p755) target = $region132
        $region131: #{tpu_custom_call.1} parent=91 // pred_region
          %758 = dma.done %s751, 4096
        $region132: #{tpu_custom_call.1} parent=91 // pred_fallthru
          _
        %p759 = pneg %p50
        %p760 = pneg %p47
        %p761 = pneg %p71
        %p762 = pneg %p68
        %p763 = pneg %p92
        %p764 = pneg %p89
        %p765 = pneg %p113
        %p766 = pneg %p110
        %p767 = pneg %p134
        %p768 = pneg %p131
        %p769 = pneg %p155
        %p770 = pneg %p152
        %p771 = pneg %p176
        %p772 = pneg %p173
        %p773 = pneg %p197
        %p774 = pneg %p194
        %p775 = pneg %p218
        %p776 = pneg %p215
        %s777 = sand.u32 %s34, 1
        %s778 = scalar_lea.sflag [#allocation4], %s777
        %s779 = sand.u32 %s231, 1
        %s780 = smul.addr %s779, 832
        %s781 = scalar_lea.vmem [#allocation14], %s780
        %p782 = pneg %p244
        %p783 = pneg %p241
        %p784 = scmp.lt.s32.totalorder %s34, 1
        %s785 = scalar_select %p784, %s34, 1
        %s786 = smul.addr %s785, 13
        %s787 = scalar_lea.vmem %s10, %s786
        %p788 = pneg %p270
        %p789 = pneg %p267
        %s790 = sand.u32 %s34, 1
        %s791 = scalar_lea.sflag [#allocation4], %s790
        %s792 = sand.u32 %s283, 1
        %s793 = smul.addr %s792, 64
        %s794 = scalar_lea.vmem [#allocation15], %s793
        %p795 = pneg %p296
        %p796 = pneg %p293
        %p797 = scmp.lt.s32.totalorder %s34, 1
        %s798 = scalar_select %p797, %s34, 1
        %s799 = scalar_lea.vmem %s12, %s798
        %p800 = pneg %p322
        %p801 = pneg %p319
        %s802 = sand.u32 %s34, 1
        %s803 = scalar_lea.sflag [#allocation4], %s802
        %s804 = sand.u32 %s335, 1
        %s805 = smul.addr %s804, 256
        %s806 = scalar_lea.vmem [#allocation16], %s805
        %p807 = pneg %p348
        %p808 = pneg %p345
        %p809 = scmp.lt.s32.totalorder %s34, 1
        %s810 = scalar_select %p809, %s34, 1
        %s811 = smul.addr %s810, 4
        %s812 = scalar_lea.vmem %s14, %s811
        %p813 = pneg %p374
        %p814 = pneg %p371
        %s815 = sand.u32 %s34, 1
        %s816 = scalar_lea.sflag [#allocation4], %s815
        %s817 = sand.u32 %s387, 1
        %s818 = smul.addr %s817, 256
        %s819 = scalar_lea.vmem [#allocation17], %s818
        %p820 = pneg %p400
        %p821 = pneg %p397
        %p822 = scmp.lt.s32.totalorder %s34, 1
        %s823 = scalar_select %p822, %s34, 1
        %s824 = scalar_lea.vmem %s16, %s823
        %p825 = pneg %p426
        %p826 = pneg %p423
        %p827 = scmp.lt.s32.totalorder %s34, 1
        %s828 = scalar_select %p827, %s34, 1
        %s829 = smul.addr %s828, 8
        %s830 = scalar_lea.vmem %s17, %s829
        %p831 = pneg %p452
        %p832 = pneg %p449
        %p833 = pneg %p473
        %p834 = pneg %p470
        %p835 = scmp.lt.s32.totalorder %s34, 1
        %s836 = scalar_select %p835, %s34, 1
        %s837 = smul.addr %s836, 13
        %s838 = scalar_lea.vmem %s10, %s837
        %p839 = scmp.lt.s32.totalorder %s34, 1
        %s840 = scalar_select %p839, %s34, 1
        %s841 = scalar_lea.vmem %s12, %s840
        %p842 = scmp.lt.s32.totalorder %s34, 1
        %s843 = scalar_select %p842, %s34, 1
        %s844 = smul.addr %s843, 4
        %s845 = scalar_lea.vmem %s14, %s844
        %p846 = scmp.lt.s32.totalorder %s34, 1
        %s847 = scalar_select %p846, %s34, 1
        %s848 = scalar_lea.vmem %s16, %s847
        %p849 = scmp.lt.s32.totalorder %s34, 1
        %s850 = scalar_select %p849, %s34, 1
        %s851 = smul.addr %s850, 8
        %s852 = scalar_lea.vmem %s17, %s851
        %p854 = scmp.eq.s32.totalorder %s34, 0
        // Predicated region
        $region133: #{tpu_custom_call.1} parent=91 // pred_check
          %p855 = pneg %p854
        $region134: #{tpu_custom_call.1} parent=91 // pred_check_branch
          %857 = sbr.rel (%p855) target = $region136
        $region135: #{tpu_custom_call.1} parent=91 // pred_region
          %v858 = vld [vmem:[%s0] sm:$0xff]
          %v859 = vld [vmem:[%s0 + $0x8] sm:$0xff]
          %v860 = vld [vmem:[#allocation3] sm:$0xff]
          %v861 = vld [vmem:[#allocation3 + $0x8] sm:$0xff]
          %v862 = vld [vmem:[#allocation6] sm:$0x1]
          %v864 = vlaneseq
          %v865 = vshrl.u32 %v864, 7
          %v866 = vsub.s32 0, %v865
          %v867 = vrot.slane %v862, %v866
          %vm869 = vcmask 130048
          %v871 = vsel %vm869, %v858, 0
          %v874 = vsel %vm869, %v859, 0
          %876 = vmatprep.subr.mxu0 0.0
          %877 = vmatpush1.msra.mxu0 %v860
          %878 = vmatprep.subr.mxu0 0.0
          %879 = vmatpush1.msra.mxu0 %v861
          %880 = vmatprep.subr.mxu0 0.0
          %881 = vmatpush1.msra.mxu0 0.0
          %882 = vmatprep.subr.mxu0 0.0
          %883 = vmatpush1.msra.mxu0 0.0
          %884 = vmatprep.subr.mxu0 0.0
          %885 = vmatpush1.msra.mxu0 0.0
          %886 = vmatprep.subr.mxu0 0.0
          %887 = vmatpush1.msra.mxu0 0.0
          %888 = vmatprep.subr.mxu0 0.0
          %889 = vmatpush1.msra.mxu0 0.0
          %890 = vmatprep.subr.mxu0 0.0
          %891 = vmatpush1.msra.mxu0 0.0
          %892 = vmatprep.subr.mxu0 0.0
          %893 = vmatpush1.msra.mxu0 0.0
          %894 = vmatprep.subr.mxu0 0.0
          %895 = vmatpush1.msra.mxu0 0.0
          %896 = vmatprep.subr.mxu0 0.0
          %897 = vmatpush1.msra.mxu0 0.0
          %898 = vmatprep.subr.mxu0 0.0
          %899 = vmatpush1.msra.mxu0 0.0
          %900 = vmatprep.subr.mxu0 0.0
          %901 = vmatpush1.msra.mxu0 0.0
          %902 = vmatprep.subr.mxu0 0.0
          %903 = vmatpush1.msra.mxu0 0.0
          %904 = vmatprep.subr.mxu0 0.0
          %905 = vmatpush1.msra.mxu0 0.0
          %906 = vmatprep.subr.mxu0 0.0
          %907 = vmatpush1.msra.mxu0 0.0
          %908 = vmatprep.subr.mxu0 0.0
          %909 = vmatpush1.msra.mxu0 0.0
          %910 = vmatprep.subr.mxu0 0.0
          %911 = vmatpush1.msra.mxu0 0.0
          %912 = vmatprep.subr.mxu0 0.0
          %913 = vmatpush1.msra.mxu0 0.0
          %914 = vmatprep.subr.mxu0 0.0
          %915 = vmatpush1.msra.mxu0 0.0
          %916 = vmatprep.subr.mxu0 0.0
          %917 = vmatpush1.msra.mxu0 0.0
          %918 = vmatprep.subr.mxu0 0.0
          %919 = vmatpush1.msra.mxu0 0.0
          %920 = vmatprep.subr.mxu0 0.0
          %921 = vmatpush1.msra.mxu0 0.0
          %922 = vmatprep.subr.mxu0 0.0
          %923 = vmatpush1.msra.mxu0 0.0
          %924 = vmatprep.subr.mxu0 0.0
          %925 = vmatpush1.msra.mxu0 0.0
          %926 = vmatprep.subr.mxu0 0.0
          %927 = vmatpush1.msra.mxu0 0.0
          %928 = vmatprep.subr.mxu0 0.0
          %929 = vmatpush1.msra.mxu0 0.0
          %930 = vmatprep.subr.mxu0 0.0
          %931 = vmatpush1.msra.mxu0 0.0
          %932 = vmatprep.subr.mxu0 0.0
          %933 = vmatpush1.msra.mxu0 0.0
          %934 = vmatprep.subr.mxu0 0.0
          %935 = vmatpush1.msra.mxu0 0.0
          %936 = vmatprep.subr.mxu0 0.0
          %937 = vmatpush1.msra.mxu0 0.0
          %938 = vmatprep.subr.mxu0 0.0
          %939 = vmatpush1.msra.mxu0 0.0
          %940 = vmatprep.mubr.f32.mxu0 0.0
          %941 = vmatmul.mubr.f32.gmra.mrb[0].mxu0 %v871
          %v942 = vpop.f32.mrb[0].mxu0
          %v943 = vadd.f32 %v867, %v942
          %v944 = vpop.f32.mrb[0].mxu0
          %945 = vmatprep.mubr.f32.mxu0 0.0
          %946 = vmatmul.mubr.f32.gmra.mrb[0].mxu0 %v874
          %v947 = vpop.f32.mrb[0].mxu0
          %v948 = vadd.f32 %v867, %v947
          %v949 = vpop.f32.mrb[0].mxu0
          %950 = vdwg.mxu0
          %v951 = vld [vmem:[#allocation8] sm:$0xff]
          %v952 = vld [vmem:[#allocation8 + $0x8] sm:$0xff]
          %v953 = vadd.f32 %v943, %v951
          %v954 = vadd.f32 %v948, %v952
          %955 = vst [vmem:[#allocation18] sm:$0xff] %v953
          %956 = vst [vmem:[#allocation18 + $0x8] sm:$0xff] %v954
          %v957 = vld [vmem:[%s4] sm:$0xff]
          %v958 = vld [vmem:[%s4 + $0x8] sm:$0xff]
          %v959 = vld [vmem:[#allocation9] sm:$0xff]
          %v960 = vld [vmem:[#allocation9 + $0x8] sm:$0xff]
          %v961 = vld [vmem:[#allocation9 + $0x10] sm:$0xff]
          %v962 = vld [vmem:[#allocation9 + $0x18] sm:$0xff]
          %v963 = vld [vmem:[#allocation9 + $0x20] sm:$0xff]
          %v964 = vld [vmem:[#allocation9 + $0x28] sm:$0xff]
          %v965 = vld [vmem:[#allocation9 + $0x30] sm:$0xff]
          %v966 = vld [vmem:[#allocation9 + $0x38] sm:$0xff]
          %v967 = vld [vmem:[#allocation9 + $0x40] sm:$0xff]
          %v968 = vld [vmem:[#allocation9 + $0x48] sm:$0xff]
          %v969 = vld [vmem:[#allocation9 + $0x50] sm:$0xff]
          %v970 = vld [vmem:[#allocation9 + $0x58] sm:$0xff]
          %v971 = vld [vmem:[#allocation9 + $0x60] sm:$0xff]
          %v972 = vld [vmem:[#allocation9 + $0x68] sm:$0xff]
          %v973 = vld [vmem:[#allocation9 + $0x70] sm:$0xff]
          %v974 = vld [vmem:[#allocation9 + $0x78] sm:$0xff]
          %v975 = vld [vmem:[#allocation11] sm:$0x1]
          %v977 = vlaneseq
          %v978 = vshrl.u32 %v977, 7
          %v979 = vsub.s32 0, %v978
          %v980 = vrot.slane %v975, %v979
          %982 = vmatprep.subr.mxu0 0.0
          %983 = vmatpush1.msra.mxu0 %v959
          %984 = vmatprep.subr.mxu0 0.0
          %985 = vmatpush1.msra.mxu0 %v960
          %986 = vmatprep.subr.mxu0 0.0
          %987 = vmatpush1.msra.mxu0 %v961
          %988 = vmatprep.subr.mxu0 0.0
          %989 = vmatpush1.msra.mxu0 %v962
          %990 = vmatprep.subr.mxu0 0.0
          %991 = vmatpush1.msra.mxu0 %v963
          %992 = vmatprep.subr.mxu0 0.0
          %993 = vmatpush1.msra.mxu0 %v964
          %994 = vmatprep.subr.mxu0 0.0
          %995 = vmatpush1.msra.mxu0 %v965
          %996 = vmatprep.subr.mxu0 0.0
          %997 = vmatpush1.msra.mxu0 %v966
          %998 = vmatprep.subr.mxu0 0.0
          %999 = vmatpush1.msra.mxu0 %v967
          %1000 = vmatprep.subr.mxu0 0.0
          %1001 = vmatpush1.msra.mxu0 %v968
          %1002 = vmatprep.subr.mxu0 0.0
          %1003 = vmatpush1.msra.mxu0 %v969
          %1004 = vmatprep.subr.mxu0 0.0
          %1005 = vmatpush1.msra.mxu0 %v970
          %1006 = vmatprep.subr.mxu0 0.0
          %1007 = vmatpush1.msra.mxu0 %v971
          %1008 = vmatprep.subr.mxu0 0.0
          %1009 = vmatpush1.msra.mxu0 %v972
          %1010 = vmatprep.subr.mxu0 0.0
          %1011 = vmatpush1.msra.mxu0 %v973
          %1012 = vmatprep.subr.mxu0 0.0
          %1013 = vmatpush1.msra.mxu0 %v974
          %1014 = vmatprep.subr.mxu0 0.0
          %1015 = vmatpush1.msra.mxu0 0.0
          %1016 = vmatprep.subr.mxu0 0.0
          %1017 = vmatpush1.msra.mxu0 0.0
          %1018 = vmatprep.subr.mxu0 0.0
          %1019 = vmatpush1.msra.mxu0 0.0
          %1020 = vmatprep.subr.mxu0 0.0
          %1021 = vmatpush1.msra.mxu0 0.0
          %1022 = vmatprep.subr.mxu0 0.0
          %1023 = vmatpush1.msra.mxu0 0.0
          %1024 = vmatprep.subr.mxu0 0.0
          %1025 = vmatpush1.msra.mxu0 0.0
          %1026 = vmatprep.subr.mxu0 0.0
          %1027 = vmatpush1.msra.mxu0 0.0
          %1028 = vmatprep.subr.mxu0 0.0
          %1029 = vmatpush1.msra.mxu0 0.0
          %1030 = vmatprep.subr.mxu0 0.0
          %1031 = vmatpush1.msra.mxu0 0.0
          %1032 = vmatprep.subr.mxu0 0.0
          %1033 = vmatpush1.msra.mxu0 0.0
          %1034 = vmatprep.subr.mxu0 0.0
          %1035 = vmatpush1.msra.mxu0 0.0
          %1036 = vmatprep.subr.mxu0 0.0
          %1037 = vmatpush1.msra.mxu0 0.0
          %1038 = vmatprep.subr.mxu0 0.0
          %1039 = vmatpush1.msra.mxu0 0.0
          %1040 = vmatprep.subr.mxu0 0.0
          %1041 = vmatpush1.msra.mxu0 0.0
          %1042 = vmatprep.subr.mxu0 0.0
          %1043 = vmatpush1.msra.mxu0 0.0
          %1044 = vmatprep.subr.mxu0 0.0
          %1045 = vmatpush1.msra.mxu0 0.0
          %1046 = vmatprep.mubr.f32.mxu0 0.0
          %1047 = vmatmul.mubr.f32.gmra.mrb[0].mxu0 %v957
          %v1048 = vpop.f32.mrb[0].mxu0
          %v1049 = vadd.f32 %v980, %v1048
          %v1050 = vpop.f32.mrb[0].mxu0
          %1051 = vmatprep.mubr.f32.mxu0 0.0
          %1052 = vmatmul.mubr.f32.gmra.mrb[0].mxu0 %v958
          %v1053 = vpop.f32.mrb[0].mxu0
          %v1054 = vadd.f32 %v980, %v1053
          %v1055 = vpop.f32.mrb[0].mxu0
          %1056 = vdwg.mxu0
          %1057 = vst [vmem:[#allocation2] sm:$0xff] %v1049
          %1058 = vst [vmem:[#allocation2 + $0x8] sm:$0xff] %v1054
        $region136: #{tpu_custom_call.1} parent=91 // pred_fallthru
          _
        %v1059 = vld [vmem:[#allocation18] sm:$0xff]
        %v1060 = vld [vmem:[#allocation18 + $0x8] sm:$0xff]
        %v1061 = vld [vmem:[%s852] sm:$0x3f]
        %v1062 = vld [vmem:[#allocation12] sm:$0xf]
        %v1063 = vld [vmem:[#allocation12 + $0x4] sm:$0xf]
        %v1064 = vunpack.c.l.bf16 %v1062
        %v1065 = vunpack.c.l.bf16 %v1063
        %v1066 = vpack.c.bf16 %v1060, %v1059
        %v1067 = vld [vmem:[%s727] sm:$0xff]
        %v1068 = vld [vmem:[%s727 + $0x8] sm:$0xff]
        %v1069 = vld [vmem:[%s727 + $0x10] sm:$0xff]
        %v1070 = vld [vmem:[%s727 + $0x18] sm:$0xff]
        %v1071 = vld [vmem:[%s727 + $0x20] sm:$0xff]
        %v1072 = vld [vmem:[%s727 + $0x28] sm:$0xff]
        %v1073 = vld [vmem:[%s727 + $0x30] sm:$0xf]
        %v1074 = vld [vmem:[%s727 + $0x34] sm:$0xff]
        %v1075 = vld [vmem:[%s727 + $0x3c] sm:$0xff]
        %v1076 = vld [vmem:[%s727 + $0x44] sm:$0xff]
        %v1077 = vld [vmem:[%s727 + $0x4c] sm:$0xff]
        %v1078 = vld [vmem:[%s727 + $0x54] sm:$0xff]
        %v1079 = vld [vmem:[%s727 + $0x5c] sm:$0xff]
        %v1080 = vld [vmem:[%s727 + $0x64] sm:$0xf]
        %v1081 = vld [vmem:[%s727 + $0x68] sm:$0xff]
        %v1082 = vld [vmem:[%s727 + $0x70] sm:$0xff]
        %v1083 = vld [vmem:[%s727 + $0x78] sm:$0xff]
        %v1084 = vld [vmem:[%s727 + $0x80] sm:$0xff]
        %v1085 = vld [vmem:[%s727 + $0x88] sm:$0xff]
        %v1086 = vld [vmem:[%s727 + $0x90] sm:$0xff]
        %v1087 = vld [vmem:[%s727 + $0x98] sm:$0xf]
        %v1088 = vld [vmem:[%s727 + $0x9c] sm:$0xff]
        %v1089 = vld [vmem:[%s727 + $0xa4] sm:$0xff]
        %v1090 = vld [vmem:[%s727 + $0xac] sm:$0xff]
        %v1091 = vld [vmem:[%s727 + $0xb4] sm:$0xff]
        %v1092 = vld [vmem:[%s727 + $0xbc] sm:$0xff]
        %v1093 = vld [vmem:[%s727 + $0xc4] sm:$0xff]
        %v1094 = vld [vmem:[%s727 + $0xcc] sm:$0xf]
        %v1095 = vld [vmem:[%s727 + $0xd0] sm:$0xff]
        %v1096 = vld [vmem:[%s727 + $0xd8] sm:$0xff]
        %v1097 = vld [vmem:[%s727 + $0xe0] sm:$0xff]
        %v1098 = vld [vmem:[%s727 + $0xe8] sm:$0xff]
        %v1099 = vld [vmem:[%s727 + $0xf0] sm:$0xff]
        %v1100 = vld [vmem:[%s727 + $0xf8] sm:$0xff]
        %v1101 = vld [vmem:[%s727 + $0x100] sm:$0xf]
        %v1102 = vld [vmem:[%s727 + $0x104] sm:$0xff]
        %v1103 = vld [vmem:[%s727 + $0x10c] sm:$0xff]
        %v1104 = vld [vmem:[%s727 + $0x114] sm:$0xff]
        %v1105 = vld [vmem:[%s727 + $0x11c] sm:$0xff]
        %v1106 = vld [vmem:[%s727 + $0x124] sm:$0xff]
        %v1107 = vld [vmem:[%s727 + $0x12c] sm:$0xff]
        %v1108 = vld [vmem:[%s727 + $0x134] sm:$0xf]
        %v1109 = vld [vmem:[%s727 + $0x138] sm:$0xff]
        %v1110 = vld [vmem:[%s727 + $0x140] sm:$0xff]
        %v1111 = vld [vmem:[%s727 + $0x148] sm:$0xff]
        %v1112 = vld [vmem:[%s727 + $0x150] sm:$0xff]
        %v1113 = vld [vmem:[%s727 + $0x158] sm:$0xff]
        %v1114 = vld [vmem:[%s727 + $0x160] sm:$0xff]
        %v1115 = vld [vmem:[%s727 + $0x168] sm:$0xf]
        %v1116 = vld [vmem:[%s727 + $0x16c] sm:$0xff]
        %v1117 = vld [vmem:[%s727 + $0x174] sm:$0xff]
        %v1118 = vld [vmem:[%s727 + $0x17c] sm:$0xff]
        %v1119 = vld [vmem:[%s727 + $0x184] sm:$0xff]
        %v1120 = vld [vmem:[%s727 + $0x18c] sm:$0xff]
        %v1121 = vld [vmem:[%s727 + $0x194] sm:$0xff]
        %v1122 = vld [vmem:[%s727 + $0x19c] sm:$0xf]
        %v1123 = vld [vmem:[%s727 + $0x1a0] sm:$0xff]
        %v1124 = vld [vmem:[%s727 + $0x1a8] sm:$0xff]
        %v1125 = vld [vmem:[%s727 + $0x1b0] sm:$0xff]
        %v1126 = vld [vmem:[%s727 + $0x1b8] sm:$0xff]
        %v1127 = vld [vmem:[%s727 + $0x1c0] sm:$0xff]
        %v1128 = vld [vmem:[%s727 + $0x1c8] sm:$0xff]
        %v1129 = vld [vmem:[%s727 + $0x1d0] sm:$0xf]
        %v1130 = vld [vmem:[%s727 + $0x1d4] sm:$0xff]
        %v1131 = vld [vmem:[%s727 + $0x1dc] sm:$0xff]
        %v1132 = vld [vmem:[%s727 + $0x1e4] sm:$0xff]
        %v1133 = vld [vmem:[%s727 + $0x1ec] sm:$0xff]
        %v1134 = vld [vmem:[%s727 + $0x1f4] sm:$0xff]
        %v1135 = vld [vmem:[%s727 + $0x1fc] sm:$0xff]
        %v1136 = vld [vmem:[%s727 + $0x204] sm:$0xf]
        %v1137 = vld [vmem:[%s727 + $0x208] sm:$0xff]
        %v1138 = vld [vmem:[%s727 + $0x210] sm:$0xff]
        %v1139 = vld [vmem:[%s727 + $0x218] sm:$0xff]
        %v1140 = vld [vmem:[%s727 + $0x220] sm:$0xff]
        %v1141 = vld [vmem:[%s727 + $0x228] sm:$0xff]
        %v1142 = vld [vmem:[%s727 + $0x230] sm:$0xff]
        %v1143 = vld [vmem:[%s727 + $0x238] sm:$0xf]
        %v1144 = vld [vmem:[%s727 + $0x23c] sm:$0xff]
        %v1145 = vld [vmem:[%s727 + $0x244] sm:$0xff]
        %v1146 = vld [vmem:[%s727 + $0x24c] sm:$0xff]
        %v1147 = vld [vmem:[%s727 + $0x254] sm:$0xff]
        %v1148 = vld [vmem:[%s727 + $0x25c] sm:$0xff]
        %v1149 = vld [vmem:[%s727 + $0x264] sm:$0xff]
        %v1150 = vld [vmem:[%s727 + $0x26c] sm:$0xf]
        %v1151 = vld [vmem:[%s727 + $0x270] sm:$0xff]
        %v1152 = vld [vmem:[%s727 + $0x278] sm:$0xff]
        %v1153 = vld [vmem:[%s727 + $0x280] sm:$0xff]
        %v1154 = vld [vmem:[%s727 + $0x288] sm:$0xff]
        %v1155 = vld [vmem:[%s727 + $0x290] sm:$0xff]
        %v1156 = vld [vmem:[%s727 + $0x298] sm:$0xff]
        %v1157 = vld [vmem:[%s727 + $0x2a0] sm:$0xf]
        %v1158 = vld [vmem:[%s727 + $0x2a4] sm:$0xff]
        %v1159 = vld [vmem:[%s727 + $0x2ac] sm:$0xff]
        %v1160 = vld [vmem:[%s727 + $0x2b4] sm:$0xff]
        %v1161 = vld [vmem:[%s727 + $0x2bc] sm:$0xff]
        %v1162 = vld [vmem:[%s727 + $0x2c4] sm:$0xff]
        %v1163 = vld [vmem:[%s727 + $0x2cc] sm:$0xff]
        %v1164 = vld [vmem:[%s727 + $0x2d4] sm:$0xf]
        %v1165 = vld [vmem:[%s727 + $0x2d8] sm:$0xff]
        %v1166 = vld [vmem:[%s727 + $0x2e0] sm:$0xff]
        %v1167 = vld [vmem:[%s727 + $0x2e8] sm:$0xff]
        %v1168 = vld [vmem:[%s727 + $0x2f0] sm:$0xff]
        %v1169 = vld [vmem:[%s727 + $0x2f8] sm:$0xff]
        %v1170 = vld [vmem:[%s727 + $0x300] sm:$0xff]
        %v1171 = vld [vmem:[%s727 + $0x308] sm:$0xf]
        %v1172 = vld [vmem:[%s727 + $0x30c] sm:$0xff]
        %v1173 = vld [vmem:[%s727 + $0x314] sm:$0xff]
        %v1174 = vld [vmem:[%s727 + $0x31c] sm:$0xff]
        %v1175 = vld [vmem:[%s727 + $0x324] sm:$0xff]
        %v1176 = vld [vmem:[%s727 + $0x32c] sm:$0xff]
        %v1177 = vld [vmem:[%s727 + $0x334] sm:$0xff]
        %v1178 = vld [vmem:[%s727 + $0x33c] sm:$0xf]
        %v1179 = vld [vmem:[%s838] sm:$0xff]
        %v1180 = vld [vmem:[%s838 + $0x8] sm:$0x1f]
        %v1183 = vlaneseq
        %v1184 = vshrl.u32 %v1183, 7
        %v1185 = vsub.s32 0, %v1184
        %v1186 = vrot.slane %v1179, %v1185
        %v1187 = vlaneseq
        %v1188 = vshrl.u32 %v1187, 7
        %v1189 = vsub.s32 1, %v1188
        %v1190 = vrot.slane %v1179, %v1189
        %v1191 = vlaneseq
        %v1192 = vshrl.u32 %v1191, 7
        %v1193 = vsub.s32 2, %v1192
        %v1194 = vrot.slane %v1179, %v1193
        %v1195 = vlaneseq
        %v1196 = vshrl.u32 %v1195, 7
        %v1197 = vsub.s32 3, %v1196
        %v1198 = vrot.slane %v1179, %v1197
        %v1199 = vlaneseq
        %v1200 = vshrl.u32 %v1199, 7
        %v1201 = vsub.s32 4, %v1200
        %v1202 = vrot.slane %v1179, %v1201
        %v1203 = vlaneseq
        %v1204 = vshrl.u32 %v1203, 7
        %v1205 = vsub.s32 5, %v1204
        %v1206 = vrot.slane %v1179, %v1205
        %v1207 = vlaneseq
        %v1208 = vshrl.u32 %v1207, 7
        %v1209 = vsub.s32 6, %v1208
        %v1210 = vrot.slane %v1179, %v1209
        %v1211 = vlaneseq
        %v1212 = vshrl.u32 %v1211, 7
        %v1213 = vsub.s32 7, %v1212
        %v1214 = vrot.slane %v1179, %v1213
        %v1215 = vlaneseq
        %v1216 = vshrl.u32 %v1215, 7
        %v1217 = vsub.s32 0, %v1216
        %v1218 = vrot.slane %v1180, %v1217
        %v1219 = vlaneseq
        %v1220 = vshrl.u32 %v1219, 7
        %v1221 = vsub.s32 1, %v1220
        %v1222 = vrot.slane %v1180, %v1221
        %v1223 = vlaneseq
        %v1224 = vshrl.u32 %v1223, 7
        %v1225 = vsub.s32 2, %v1224
        %v1226 = vrot.slane %v1180, %v1225
        %v1227 = vlaneseq
        %v1228 = vshrl.u32 %v1227, 7
        %v1229 = vsub.s32 3, %v1228
        %v1230 = vrot.slane %v1180, %v1229
        %v1231 = vlaneseq
        %v1232 = vshrl.u32 %v1231, 7
        %v1233 = vsub.s32 4, %v1232
        %v1234 = vrot.slane %v1180, %v1233
        %v1360 = vunpack.c.l.b16 %v1067
        %v1361 = vunpack.c.h.b16 %v1067
        %v1362 = vunpack.c.l.b16 %v1068
        %v1363 = vunpack.c.h.b16 %v1068
        %v1364 = vunpack.c.l.b16 %v1069
        %v1365 = vunpack.c.h.b16 %v1069
        %v1366 = vunpack.c.l.b16 %v1070
        %v1367 = vunpack.c.h.b16 %v1070
        %v1368 = vunpack.c.l.b16 %v1071
        %v1369 = vunpack.c.h.b16 %v1071
        %v1370 = vunpack.c.l.b16 %v1072
        %v1371 = vunpack.c.h.b16 %v1072
        %v1372 = vunpack.c.l.b16 %v1073
        %v1373 = vunpack.c.l.b16 %v1074
        %v1374 = vunpack.c.h.b16 %v1074
        %v1375 = vunpack.c.l.b16 %v1075
        %v1376 = vunpack.c.h.b16 %v1075
        %v1377 = vunpack.c.l.b16 %v1076
        %v1378 = vunpack.c.h.b16 %v1076
        %v1379 = vunpack.c.l.b16 %v1077
        %v1380 = vunpack.c.h.b16 %v1077
        %v1381 = vunpack.c.l.b16 %v1078
        %v1382 = vunpack.c.h.b16 %v1078
        %v1383 = vunpack.c.l.b16 %v1079
        %v1384 = vunpack.c.h.b16 %v1079
        %v1385 = vunpack.c.l.b16 %v1080
        %v1386 = vunpack.c.l.b16 %v1081
        %v1387 = vunpack.c.h.b16 %v1081
        %v1388 = vunpack.c.l.b16 %v1082
        %v1389 = vunpack.c.h.b16 %v1082
        %v1390 = vunpack.c.l.b16 %v1083
        %v1391 = vunpack.c.h.b16 %v1083
        %v1392 = vunpack.c.l.b16 %v1084
        %v1393 = vunpack.c.h.b16 %v1084
        %v1394 = vunpack.c.l.b16 %v1085
        %v1395 = vunpack.c.h.b16 %v1085
        %v1396 = vunpack.c.l.b16 %v1086
        %v1397 = vunpack.c.h.b16 %v1086
        %v1398 = vunpack.c.l.b16 %v1087
        %v1399 = vunpack.c.l.b16 %v1088
        %v1400 = vunpack.c.h.b16 %v1088
        %v1401 = vunpack.c.l.b16 %v1089
        %v1402 = vunpack.c.h.b16 %v1089
        %v1403 = vunpack.c.l.b16 %v1090
        %v1404 = vunpack.c.h.b16 %v1090
        %v1405 = vunpack.c.l.b16 %v1091
        %v1406 = vunpack.c.h.b16 %v1091
        %v1407 = vunpack.c.l.b16 %v1092
        %v1408 = vunpack.c.h.b16 %v1092
        %v1409 = vunpack.c.l.b16 %v1093
        %v1410 = vunpack.c.h.b16 %v1093
        %v1411 = vunpack.c.l.b16 %v1094
        %v1412 = vunpack.c.l.b16 %v1095
        %v1413 = vunpack.c.h.b16 %v1095
        %v1414 = vunpack.c.l.b16 %v1096
        %v1415 = vunpack.c.h.b16 %v1096
        %v1416 = vunpack.c.l.b16 %v1097
        %v1417 = vunpack.c.h.b16 %v1097
        %v1418 = vunpack.c.l.b16 %v1098
        %v1419 = vunpack.c.h.b16 %v1098
        %v1420 = vunpack.c.l.b16 %v1099
        %v1421 = vunpack.c.h.b16 %v1099
        %v1422 = vunpack.c.l.b16 %v1100
        %v1423 = vunpack.c.h.b16 %v1100
        %v1424 = vunpack.c.l.b16 %v1101
        %v1425 = vunpack.c.l.b16 %v1102
        %v1426 = vunpack.c.h.b16 %v1102
        %v1427 = vunpack.c.l.b16 %v1103
        %v1428 = vunpack.c.h.b16 %v1103
        %v1429 = vunpack.c.l.b16 %v1104
        %v1430 = vunpack.c.h.b16 %v1104
        %v1431 = vunpack.c.l.b16 %v1105
        %v1432 = vunpack.c.h.b16 %v1105
        %v1433 = vunpack.c.l.b16 %v1106
        %v1434 = vunpack.c.h.b16 %v1106
        %v1435 = vunpack.c.l.b16 %v1107
        %v1436 = vunpack.c.h.b16 %v1107
        %v1437 = vunpack.c.l.b16 %v1108
        %v1438 = vunpack.c.l.b16 %v1109
        %v1439 = vunpack.c.h.b16 %v1109
        %v1440 = vunpack.c.l.b16 %v1110
        %v1441 = vunpack.c.h.b16 %v1110
        %v1442 = vunpack.c.l.b16 %v1111
        %v1443 = vunpack.c.h.b16 %v1111
        %v1444 = vunpack.c.l.b16 %v1112
        %v1445 = vunpack.c.h.b16 %v1112
        %v1446 = vunpack.c.l.b16 %v1113
        %v1447 = vunpack.c.h.b16 %v1113
        %v1448 = vunpack.c.l.b16 %v1114
        %v1449 = vunpack.c.h.b16 %v1114
        %v1450 = vunpack.c.l.b16 %v1115
        %v1451 = vunpack.c.l.b16 %v1116
        %v1452 = vunpack.c.h.b16 %v1116
        %v1453 = vunpack.c.l.b16 %v1117
        %v1454 = vunpack.c.h.b16 %v1117
        %v1455 = vunpack.c.l.b16 %v1118
        %v1456 = vunpack.c.h.b16 %v1118
        %v1457 = vunpack.c.l.b16 %v1119
        %v1458 = vunpack.c.h.b16 %v1119
        %v1459 = vunpack.c.l.b16 %v1120
        %v1460 = vunpack.c.h.b16 %v1120
        %v1461 = vunpack.c.l.b16 %v1121
        %v1462 = vunpack.c.h.b16 %v1121
        %v1463 = vunpack.c.l.b16 %v1122
        %v1464 = vunpack.c.l.b16 %v1123
        %v1465 = vunpack.c.h.b16 %v1123
        %v1466 = vunpack.c.l.b16 %v1124
        %v1467 = vunpack.c.h.b16 %v1124
        %v1468 = vunpack.c.l.b16 %v1125
        %v1469 = vunpack.c.h.b16 %v1125
        %v1470 = vunpack.c.l.b16 %v1126
        %v1471 = vunpack.c.h.b16 %v1126
        %v1472 = vunpack.c.l.b16 %v1127
        %v1473 = vunpack.c.h.b16 %v1127
        %v1474 = vunpack.c.l.b16 %v1128
        %v1475 = vunpack.c.h.b16 %v1128
        %v1476 = vunpack.c.l.b16 %v1129
        %v1477 = vunpack.c.l.b16 %v1130
        %v1478 = vunpack.c.h.b16 %v1130
        %v1479 = vunpack.c.l.b16 %v1131
        %v1480 = vunpack.c.h.b16 %v1131
        %v1481 = vunpack.c.l.b16 %v1132
        %v1482 = vunpack.c.h.b16 %v1132
        %v1483 = vunpack.c.l.b16 %v1133
        %v1484 = vunpack.c.h.b16 %v1133
        %v1485 = vunpack.c.l.b16 %v1134
        %v1486 = vunpack.c.h.b16 %v1134
        %v1487 = vunpack.c.l.b16 %v1135
        %v1488 = vunpack.c.h.b16 %v1135
        %v1489 = vunpack.c.l.b16 %v1136
        %v1490 = vunpack.c.l.b16 %v1137
        %v1491 = vunpack.c.h.b16 %v1137
        %v1492 = vunpack.c.l.b16 %v1138
        %v1493 = vunpack.c.h.b16 %v1138
        %v1494 = vunpack.c.l.b16 %v1139
        %v1495 = vunpack.c.h.b16 %v1139
        %v1496 = vunpack.c.l.b16 %v1140
        %v1497 = vunpack.c.h.b16 %v1140
        %v1498 = vunpack.c.l.b16 %v1141
        %v1499 = vunpack.c.h.b16 %v1141
        %v1500 = vunpack.c.l.b16 %v1142
        %v1501 = vunpack.c.h.b16 %v1142
        %v1502 = vunpack.c.l.b16 %v1143
        %v1503 = vunpack.c.l.b16 %v1144
        %v1504 = vunpack.c.h.b16 %v1144
        %v1505 = vunpack.c.l.b16 %v1145
        %v1506 = vunpack.c.h.b16 %v1145
        %v1507 = vunpack.c.l.b16 %v1146
        %v1508 = vunpack.c.h.b16 %v1146
        %v1509 = vunpack.c.l.b16 %v1147
        %v1510 = vunpack.c.h.b16 %v1147
        %v1511 = vunpack.c.l.b16 %v1148
        %v1512 = vunpack.c.h.b16 %v1148
        %v1513 = vunpack.c.l.b16 %v1149
        %v1514 = vunpack.c.h.b16 %v1149
        %v1515 = vunpack.c.l.b16 %v1150
        %v1516 = vunpack.c.l.b16 %v1151
        %v1517 = vunpack.c.h.b16 %v1151
        %v1518 = vunpack.c.l.b16 %v1152
        %v1519 = vunpack.c.h.b16 %v1152
        %v1520 = vunpack.c.l.b16 %v1153
        %v1521 = vunpack.c.h.b16 %v1153
        %v1522 = vunpack.c.l.b16 %v1154
        %v1523 = vunpack.c.h.b16 %v1154
        %v1524 = vunpack.c.l.b16 %v1155
        %v1525 = vunpack.c.h.b16 %v1155
        %v1526 = vunpack.c.l.b16 %v1156
        %v1527 = vunpack.c.h.b16 %v1156
        %v1528 = vunpack.c.l.b16 %v1157
        %v1529 = vunpack.c.l.b16 %v1158
        %v1530 = vunpack.c.h.b16 %v1158
        %v1531 = vunpack.c.l.b16 %v1159
        %v1532 = vunpack.c.h.b16 %v1159
        %v1533 = vunpack.c.l.b16 %v1160
        %v1534 = vunpack.c.h.b16 %v1160
        %v1535 = vunpack.c.l.b16 %v1161
        %v1536 = vunpack.c.h.b16 %v1161
        %v1537 = vunpack.c.l.b16 %v1162
        %v1538 = vunpack.c.h.b16 %v1162
        %v1539 = vunpack.c.l.b16 %v1163
        %v1540 = vunpack.c.h.b16 %v1163
        %v1541 = vunpack.c.l.b16 %v1164
        %v1542 = vunpack.c.l.b16 %v1165
        %v1543 = vunpack.c.h.b16 %v1165
        %v1544 = vunpack.c.l.b16 %v1166
        %v1545 = vunpack.c.h.b16 %v1166
        %v1546 = vunpack.c.l.b16 %v1167
        %v1547 = vunpack.c.h.b16 %v1167
        %v1548 = vunpack.c.l.b16 %v1168
        %v1549 = vunpack.c.h.b16 %v1168
        %v1550 = vunpack.c.l.b16 %v1169
        %v1551 = vunpack.c.h.b16 %v1169
        %v1552 = vunpack.c.l.b16 %v1170
        %v1553 = vunpack.c.h.b16 %v1170
        %v1554 = vunpack.c.l.b16 %v1171
        %v1555 = vunpack.c.l.b16 %v1172
        %v1556 = vunpack.c.h.b16 %v1172
        %v1557 = vunpack.c.l.b16 %v1173
        %v1558 = vunpack.c.h.b16 %v1173
        %v1559 = vunpack.c.l.b16 %v1174
        %v1560 = vunpack.c.h.b16 %v1174
        %v1561 = vunpack.c.l.b16 %v1175
        %v1562 = vunpack.c.h.b16 %v1175
        %v1563 = vunpack.c.l.b16 %v1176
        %v1564 = vunpack.c.h.b16 %v1176
        %v1565 = vunpack.c.l.b16 %v1177
        %v1566 = vunpack.c.h.b16 %v1177
        %v1567 = vunpack.c.l.b16 %v1178
        %v1568 = vpack.c.b16 %v1373, %v1360
        %v1569 = vpack.c.b16 %v1374, %v1361
        %v1570 = vpack.c.b16 %v1375, %v1362
        %v1571 = vpack.c.b16 %v1376, %v1363
        %v1572 = vpack.c.b16 %v1377, %v1364
        %v1573 = vpack.c.b16 %v1378, %v1365
        %v1574 = vpack.c.b16 %v1379, %v1366
        %v1575 = vpack.c.b16 %v1380, %v1367
        %v1576 = vpack.c.b16 %v1381, %v1368
        %v1577 = vpack.c.b16 %v1382, %v1369
        %v1578 = vpack.c.b16 %v1383, %v1370
        %v1579 = vpack.c.b16 %v1384, %v1371
        %v1580 = vpack.c.b16 %v1385, %v1372
        %v1581 = vpack.c.b16 %v1399, %v1386
        %v1582 = vpack.c.b16 %v1400, %v1387
        %v1583 = vpack.c.b16 %v1401, %v1388
        %v1584 = vpack.c.b16 %v1402, %v1389
        %v1585 = vpack.c.b16 %v1403, %v1390
        %v1586 = vpack.c.b16 %v1404, %v1391
        %v1587 = vpack.c.b16 %v1405, %v1392
        %v1588 = vpack.c.b16 %v1406, %v1393
        %v1589 = vpack.c.b16 %v1407, %v1394
        %v1590 = vpack.c.b16 %v1408, %v1395
        %v1591 = vpack.c.b16 %v1409, %v1396
        %v1592 = vpack.c.b16 %v1410, %v1397
        %v1593 = vpack.c.b16 %v1411, %v1398
        %v1594 = vpack.c.b16 %v1425, %v1412
        %v1595 = vpack.c.b16 %v1426, %v1413
        %v1596 = vpack.c.b16 %v1427, %v1414
        %v1597 = vpack.c.b16 %v1428, %v1415
        %v1598 = vpack.c.b16 %v1429, %v1416
        %v1599 = vpack.c.b16 %v1430, %v1417
        %v1600 = vpack.c.b16 %v1431, %v1418
        %v1601 = vpack.c.b16 %v1432, %v1419
        %v1602 = vpack.c.b16 %v1433, %v1420
        %v1603 = vpack.c.b16 %v1434, %v1421
        %v1604 = vpack.c.b16 %v1435, %v1422
        %v1605 = vpack.c.b16 %v1436, %v1423
        %v1606 = vpack.c.b16 %v1437, %v1424
        %v1607 = vpack.c.b16 %v1451, %v1438
        %v1608 = vpack.c.b16 %v1452, %v1439
        %v1609 = vpack.c.b16 %v1453, %v1440
        %v1610 = vpack.c.b16 %v1454, %v1441
        %v1611 = vpack.c.b16 %v1455, %v1442
        %v1612 = vpack.c.b16 %v1456, %v1443
        %v1613 = vpack.c.b16 %v1457, %v1444
        %v1614 = vpack.c.b16 %v1458, %v1445
        %v1615 = vpack.c.b16 %v1459, %v1446
        %v1616 = vpack.c.b16 %v1460, %v1447
        %v1617 = vpack.c.b16 %v1461, %v1448
        %v1618 = vpack.c.b16 %v1462, %v1449
        %v1619 = vpack.c.b16 %v1463, %v1450
        %v1620 = vpack.c.b16 %v1477, %v1464
        %v1621 = vpack.c.b16 %v1478, %v1465
        %v1622 = vpack.c.b16 %v1479, %v1466
        %v1623 = vpack.c.b16 %v1480, %v1467
        %v1624 = vpack.c.b16 %v1481, %v1468
        %v1625 = vpack.c.b16 %v1482, %v1469
        %v1626 = vpack.c.b16 %v1483, %v1470
        %v1627 = vpack.c.b16 %v1484, %v1471
        %v1628 = vpack.c.b16 %v1485, %v1472
        %v1629 = vpack.c.b16 %v1486, %v1473
        %v1630 = vpack.c.b16 %v1487, %v1474
        %v1631 = vpack.c.b16 %v1488, %v1475
        %v1632 = vpack.c.b16 %v1489, %v1476
        %v1633 = vpack.c.b16 %v1503, %v1490
        %v1634 = vpack.c.b16 %v1504, %v1491
        %v1635 = vpack.c.b16 %v1505, %v1492
        %v1636 = vpack.c.b16 %v1506, %v1493
        %v1637 = vpack.c.b16 %v1507, %v1494
        %v1638 = vpack.c.b16 %v1508, %v1495
        %v1639 = vpack.c.b16 %v1509, %v1496
        %v1640 = vpack.c.b16 %v1510, %v1497
        %v1641 = vpack.c.b16 %v1511, %v1498
        %v1642 = vpack.c.b16 %v1512, %v1499
        %v1643 = vpack.c.b16 %v1513, %v1500
        %v1644 = vpack.c.b16 %v1514, %v1501
        %v1645 = vpack.c.b16 %v1515, %v1502
        %v1646 = vpack.c.b16 %v1529, %v1516
        %v1647 = vpack.c.b16 %v1530, %v1517
        %v1648 = vpack.c.b16 %v1531, %v1518
        %v1649 = vpack.c.b16 %v1532, %v1519
        %v1650 = vpack.c.b16 %v1533, %v1520
        %v1651 = vpack.c.b16 %v1534, %v1521
        %v1652 = vpack.c.b16 %v1535, %v1522
        %v1653 = vpack.c.b16 %v1536, %v1523
        %v1654 = vpack.c.b16 %v1537, %v1524
        %v1655 = vpack.c.b16 %v1538, %v1525
        %v1656 = vpack.c.b16 %v1539, %v1526
        %v1657 = vpack.c.b16 %v1540, %v1527
        %v1658 = vpack.c.b16 %v1541, %v1528
        %v1659 = vpack.c.b16 %v1555, %v1542
        %v1660 = vpack.c.b16 %v1556, %v1543
        %v1661 = vpack.c.b16 %v1557, %v1544
        %v1662 = vpack.c.b16 %v1558, %v1545
        %v1663 = vpack.c.b16 %v1559, %v1546
        %v1664 = vpack.c.b16 %v1560, %v1547
        %v1665 = vpack.c.b16 %v1561, %v1548
        %v1666 = vpack.c.b16 %v1562, %v1549
        %v1667 = vpack.c.b16 %v1563, %v1550
        %v1668 = vpack.c.b16 %v1564, %v1551
        %v1669 = vpack.c.b16 %v1565, %v1552
        %v1670 = vpack.c.b16 %v1566, %v1553
        %v1671 = vpack.c.b16 %v1567, %v1554
        %1776 = vmatprep.subr.bf16.mxu0 %v1569
        %1777 = vmatpush1.bf16.msra.mxu0 %v1568
        %1778 = vmatprep.subr.bf16.mxu0 %v1582
        %1779 = vmatpush1.bf16.msra.mxu0 %v1581
        %1780 = vmatprep.subr.bf16.mxu0 %v1595
        %1781 = vmatpush1.bf16.msra.mxu0 %v1594
        %1782 = vmatprep.subr.bf16.mxu0 %v1608
        %1783 = vmatpush1.bf16.msra.mxu0 %v1607
        %1784 = vmatprep.subr.bf16.mxu0 %v1621
        %1785 = vmatpush1.bf16.msra.mxu0 %v1620
        %1786 = vmatprep.subr.bf16.mxu0 %v1634
        %1787 = vmatpush1.bf16.msra.mxu0 %v1633
        %1788 = vmatprep.subr.bf16.mxu0 %v1647
        %1789 = vmatpush1.bf16.msra.mxu0 %v1646
        %1790 = vmatprep.subr.bf16.mxu0 %v1660
        %1791 = vmatpush1.bf16.msra.mxu0 %v1659
        %1792 = vmatprep.subr.bf16.mxu0 0
        %1793 = vmatpush1.bf16.msra.mxu0 0
        %1794 = vmatprep.subr.bf16.mxu0 0
        %1795 = vmatpush1.bf16.msra.mxu0 0
        %1796 = vmatprep.subr.bf16.mxu0 0
        %1797 = vmatpush1.bf16.msra.mxu0 0
        %1798 = vmatprep.subr.bf16.mxu0 0
        %1799 = vmatpush1.bf16.msra.mxu0 0
        %1800 = vmatprep.subr.bf16.mxu0 0
        %1801 = vmatpush1.bf16.msra.mxu0 0
        %1802 = vmatprep.subr.bf16.mxu0 0
        %1803 = vmatpush1.bf16.msra.mxu0 0
        %1804 = vmatprep.subr.bf16.mxu0 0
        %1805 = vmatpush1.bf16.msra.mxu0 0
        %1806 = vmatprep.subr.bf16.mxu0 0
        %1807 = vmatpush1.bf16.msra.mxu0 0
        %1808 = vmatprep.mubr.bf16.mxu0 0
        %1809 = vmatmul.mubr.bf16.gmra.mrb[0].mxu0 %v1066
        %v1810 = vpop.f32.mrb[0].mxu0
        %v1811 = vadd.f32 %v1186, %v1810
        %v1812 = vpop.f32.mrb[0].mxu0
        %v1813 = vadd.f32 %v1190, %v1812
        %v1814 = vpop.f32.mrb[0].mxu0
        %v1815 = vadd.f32 %v1186, %v1814
        %v1816 = vpop.f32.mrb[0].mxu0
        %v1817 = vadd.f32 %v1190, %v1816
        %1818 = vdwg.mxu0
        %1819 = vmatprep.subr.bf16.mxu0 %v1571
        %1820 = vmatpush1.bf16.msra.mxu0 %v1570
        %1821 = vmatprep.subr.bf16.mxu0 %v1584
        %1822 = vmatpush1.bf16.msra.mxu0 %v1583
        %1823 = vmatprep.subr.bf16.mxu0 %v1597
        %1824 = vmatpush1.bf16.msra.mxu0 %v1596
        %1825 = vmatprep.subr.bf16.mxu0 %v1610
        %1826 = vmatpush1.bf16.msra.mxu0 %v1609
        %1827 = vmatprep.subr.bf16.mxu0 %v1623
        %1828 = vmatpush1.bf16.msra.mxu0 %v1622
        %1829 = vmatprep.subr.bf16.mxu0 %v1636
        %1830 = vmatpush1.bf16.msra.mxu0 %v1635
        %1831 = vmatprep.subr.bf16.mxu0 %v1649
        %1832 = vmatpush1.bf16.msra.mxu0 %v1648
        %1833 = vmatprep.subr.bf16.mxu0 %v1662
        %1834 = vmatpush1.bf16.msra.mxu0 %v1661
        %1835 = vmatprep.subr.bf16.mxu0 0
        %1836 = vmatpush1.bf16.msra.mxu0 0
        %1837 = vmatprep.subr.bf16.mxu0 0
        %1838 = vmatpush1.bf16.msra.mxu0 0
        %1839 = vmatprep.subr.bf16.mxu0 0
        %1840 = vmatpush1.bf16.msra.mxu0 0
        %1841 = vmatprep.subr.bf16.mxu0 0
        %1842 = vmatpush1.bf16.msra.mxu0 0
        %1843 = vmatprep.subr.bf16.mxu0 0
        %1844 = vmatpush1.bf16.msra.mxu0 0
        %1845 = vmatprep.subr.bf16.mxu0 0
        %1846 = vmatpush1.bf16.msra.mxu0 0
        %1847 = vmatprep.subr.bf16.mxu0 0
        %1848 = vmatpush1.bf16.msra.mxu0 0
        %1849 = vmatprep.subr.bf16.mxu0 0
        %1850 = vmatpush1.bf16.msra.mxu0 0
        %1851 = vmatprep.mubr.bf16.mxu0 0
        %1852 = vmatmul.mubr.bf16.gmra.mrb[0].mxu0 %v1066
        %v1853 = vpop.f32.mrb[0].mxu0
        %v1854 = vadd.f32 %v1194, %v1853
        %v1855 = vpop.f32.mrb[0].mxu0
        %v1856 = vadd.f32 %v1198, %v1855
        %v1857 = vpop.f32.mrb[0].mxu0
        %v1858 = vadd.f32 %v1194, %v1857
        %v1859 = vpop.f32.mrb[0].mxu0
        %v1860 = vadd.f32 %v1198, %v1859
        %1861 = vdwg.mxu0
        %1862 = vmatprep.subr.bf16.mxu0 %v1573
        %1863 = vmatpush1.bf16.msra.mxu0 %v1572
        %1864 = vmatprep.subr.bf16.mxu0 %v1586
        %1865 = vmatpush1.bf16.msra.mxu0 %v1585
        %1866 = vmatprep.subr.bf16.mxu0 %v1599
        %1867 = vmatpush1.bf16.msra.mxu0 %v1598
        %1868 = vmatprep.subr.bf16.mxu0 %v1612
        %1869 = vmatpush1.bf16.msra.mxu0 %v1611
        %1870 = vmatprep.subr.bf16.mxu0 %v1625
        %1871 = vmatpush1.bf16.msra.mxu0 %v1624
        %1872 = vmatprep.subr.bf16.mxu0 %v1638
        %1873 = vmatpush1.bf16.msra.mxu0 %v1637
        %1874 = vmatprep.subr.bf16.mxu0 %v1651
        %1875 = vmatpush1.bf16.msra.mxu0 %v1650
        %1876 = vmatprep.subr.bf16.mxu0 %v1664
        %1877 = vmatpush1.bf16.msra.mxu0 %v1663
        %1878 = vmatprep.subr.bf16.mxu0 0
        %1879 = vmatpush1.bf16.msra.mxu0 0
        %1880 = vmatprep.subr.bf16.mxu0 0
        %1881 = vmatpush1.bf16.msra.mxu0 0
        %1882 = vmatprep.subr.bf16.mxu0 0
        %1883 = vmatpush1.bf16.msra.mxu0 0
        %1884 = vmatprep.subr.bf16.mxu0 0
        %1885 = vmatpush1.bf16.msra.mxu0 0
        %1886 = vmatprep.subr.bf16.mxu0 0
        %1887 = vmatpush1.bf16.msra.mxu0 0
        %1888 = vmatprep.subr.bf16.mxu0 0
        %1889 = vmatpush1.bf16.msra.mxu0 0
        %1890 = vmatprep.subr.bf16.mxu0 0
        %1891 = vmatpush1.bf16.msra.mxu0 0
        %1892 = vmatprep.subr.bf16.mxu0 0
        %1893 = vmatpush1.bf16.msra.mxu0 0
        %1894 = vmatprep.mubr.bf16.mxu0 0
        %1895 = vmatmul.mubr.bf16.gmra.mrb[0].mxu0 %v1066
        %v1896 = vpop.f32.mrb[0].mxu0
        %v1897 = vadd.f32 %v1202, %v1896
        %v1898 = vpop.f32.mrb[0].mxu0
        %v1899 = vadd.f32 %v1206, %v1898
        %v1900 = vpop.f32.mrb[0].mxu0
        %v1901 = vadd.f32 %v1202, %v1900
        %v1902 = vpop.f32.mrb[0].mxu0
        %v1903 = vadd.f32 %v1206, %v1902
        %1904 = vdwg.mxu0
        %1905 = vmatprep.subr.bf16.mxu0 %v1575
        %1906 = vmatpush1.bf16.msra.mxu0 %v1574
        %1907 = vmatprep.subr.bf16.mxu0 %v1588
        %1908 = vmatpush1.bf16.msra.mxu0 %v1587
        %1909 = vmatprep.subr.bf16.mxu0 %v1601
        %1910 = vmatpush1.bf16.msra.mxu0 %v1600
        %1911 = vmatprep.subr.bf16.mxu0 %v1614
        %1912 = vmatpush1.bf16.msra.mxu0 %v1613
        %1913 = vmatprep.subr.bf16.mxu0 %v1627
        %1914 = vmatpush1.bf16.msra.mxu0 %v1626
        %1915 = vmatprep.subr.bf16.mxu0 %v1640
        %1916 = vmatpush1.bf16.msra.mxu0 %v1639
        %1917 = vmatprep.subr.bf16.mxu0 %v1653
        %1918 = vmatpush1.bf16.msra.mxu0 %v1652
        %1919 = vmatprep.subr.bf16.mxu0 %v1666
        %1920 = vmatpush1.bf16.msra.mxu0 %v1665
        %1921 = vmatprep.subr.bf16.mxu0 0
        %1922 = vmatpush1.bf16.msra.mxu0 0
        %1923 = vmatprep.subr.bf16.mxu0 0
        %1924 = vmatpush1.bf16.msra.mxu0 0
        %1925 = vmatprep.subr.bf16.mxu0 0
        %1926 = vmatpush1.bf16.msra.mxu0 0
        %1927 = vmatprep.subr.bf16.mxu0 0
        %1928 = vmatpush1.bf16.msra.mxu0 0
        %1929 = vmatprep.subr.bf16.mxu0 0
        %1930 = vmatpush1.bf16.msra.mxu0 0
        %1931 = vmatprep.subr.bf16.mxu0 0
        %1932 = vmatpush1.bf16.msra.mxu0 0
        %1933 = vmatprep.subr.bf16.mxu0 0
        %1934 = vmatpush1.bf16.msra.mxu0 0
        %1935 = vmatprep.subr.bf16.mxu0 0
        %1936 = vmatpush1.bf16.msra.mxu0 0
        %1937 = vmatprep.mubr.bf16.mxu0 0
        %1938 = vmatmul.mubr.bf16.gmra.mrb[0].mxu0 %v1066
        %v1939 = vpop.f32.mrb[0].mxu0
        %v1940 = vadd.f32 %v1210, %v1939
        %v1941 = vpop.f32.mrb[0].mxu0
        %v1942 = vadd.f32 %v1214, %v1941
        %v1943 = vpop.f32.mrb[0].mxu0
        %v1944 = vadd.f32 %v1210, %v1943
        %v1945 = vpop.f32.mrb[0].mxu0
        %v1946 = vadd.f32 %v1214, %v1945
        %1947 = vdwg.mxu0
        %1948 = vmatprep.subr.bf16.mxu0 %v1577
        %1949 = vmatpush1.bf16.msra.mxu0 %v1576
        %1950 = vmatprep.subr.bf16.mxu0 %v1590
        %1951 = vmatpush1.bf16.msra.mxu0 %v1589
        %1952 = vmatprep.subr.bf16.mxu0 %v1603
        %1953 = vmatpush1.bf16.msra.mxu0 %v1602
        %1954 = vmatprep.subr.bf16.mxu0 %v1616
        %1955 = vmatpush1.bf16.msra.mxu0 %v1615
        %1956 = vmatprep.subr.bf16.mxu0 %v1629
        %1957 = vmatpush1.bf16.msra.mxu0 %v1628
        %1958 = vmatprep.subr.bf16.mxu0 %v1642
        %1959 = vmatpush1.bf16.msra.mxu0 %v1641
        %1960 = vmatprep.subr.bf16.mxu0 %v1655
        %1961 = vmatpush1.bf16.msra.mxu0 %v1654
        %1962 = vmatprep.subr.bf16.mxu0 %v1668
        %1963 = vmatpush1.bf16.msra.mxu0 %v1667
        %1964 = vmatprep.subr.bf16.mxu0 0
        %1965 = vmatpush1.bf16.msra.mxu0 0
        %1966 = vmatprep.subr.bf16.mxu0 0
        %1967 = vmatpush1.bf16.msra.mxu0 0
        %1968 = vmatprep.subr.bf16.mxu0 0
        %1969 = vmatpush1.bf16.msra.mxu0 0
        %1970 = vmatprep.subr.bf16.mxu0 0
        %1971 = vmatpush1.bf16.msra.mxu0 0
        %1972 = vmatprep.subr.bf16.mxu0 0
        %1973 = vmatpush1.bf16.msra.mxu0 0
        %1974 = vmatprep.subr.bf16.mxu0 0
        %1975 = vmatpush1.bf16.msra.mxu0 0
        %1976 = vmatprep.subr.bf16.mxu0 0
        %1977 = vmatpush1.bf16.msra.mxu0 0
        %1978 = vmatprep.subr.bf16.mxu0 0
        %1979 = vmatpush1.bf16.msra.mxu0 0
        %1980 = vmatprep.mubr.bf16.mxu0 0
        %1981 = vmatmul.mubr.bf16.gmra.mrb[0].mxu0 %v1066
        %v1982 = vpop.f32.mrb[0].mxu0
        %v1983 = vadd.f32 %v1218, %v1982
        %v1984 = vpop.f32.mrb[0].mxu0
        %v1985 = vadd.f32 %v1222, %v1984
        %v1986 = vpop.f32.mrb[0].mxu0
        %v1987 = vadd.f32 %v1218, %v1986
        %v1988 = vpop.f32.mrb[0].mxu0
        %v1989 = vadd.f32 %v1222, %v1988
        %1990 = vdwg.mxu0
        %1991 = vmatprep.subr.bf16.mxu0 %v1579
        %1992 = vmatpush1.bf16.msra.mxu0 %v1578
        %1993 = vmatprep.subr.bf16.mxu0 %v1592
        %1994 = vmatpush1.bf16.msra.mxu0 %v1591
        %1995 = vmatprep.subr.bf16.mxu0 %v1605
        %1996 = vmatpush1.bf16.msra.mxu0 %v1604
        %1997 = vmatprep.subr.bf16.mxu0 %v1618
        %1998 = vmatpush1.bf16.msra.mxu0 %v1617
        %1999 = vmatprep.subr.bf16.mxu0 %v1631
        %2000 = vmatpush1.bf16.msra.mxu0 %v1630
        %2001 = vmatprep.subr.bf16.mxu0 %v1644
        %2002 = vmatpush1.bf16.msra.mxu0 %v1643
        %2003 = vmatprep.subr.bf16.mxu0 %v1657
        %2004 = vmatpush1.bf16.msra.mxu0 %v1656
        %2005 = vmatprep.subr.bf16.mxu0 %v1670
        %2006 = vmatpush1.bf16.msra.mxu0 %v1669
        %2007 = vmatprep.subr.bf16.mxu0 0
        %2008 = vmatpush1.bf16.msra.mxu0 0
        %2009 = vmatprep.subr.bf16.mxu0 0
        %2010 = vmatpush1.bf16.msra.mxu0 0
        %2011 = vmatprep.subr.bf16.mxu0 0
        %2012 = vmatpush1.bf16.msra.mxu0 0
        %2013 = vmatprep.subr.bf16.mxu0 0
        %2014 = vmatpush1.bf16.msra.mxu0 0
        %2015 = vmatprep.subr.bf16.mxu0 0
        %2016 = vmatpush1.bf16.msra.mxu0 0
        %2017 = vmatprep.subr.bf16.mxu0 0
        %2018 = vmatpush1.bf16.msra.mxu0 0
        %2019 = vmatprep.subr.bf16.mxu0 0
        %2020 = vmatpush1.bf16.msra.mxu0 0
        %2021 = vmatprep.subr.bf16.mxu0 0
        %2022 = vmatpush1.bf16.msra.mxu0 0
        %2023 = vmatprep.mubr.bf16.mxu0 0
        %2024 = vmatmul.mubr.bf16.gmra.mrb[0].mxu0 %v1066
        %v2025 = vpop.f32.mrb[0].mxu0
        %v2026 = vadd.f32 %v1226, %v2025
        %v2027 = vpop.f32.mrb[0].mxu0
        %v2028 = vadd.f32 %v1230, %v2027
        %v2029 = vpop.f32.mrb[0].mxu0
        %v2030 = vadd.f32 %v1226, %v2029
        %v2031 = vpop.f32.mrb[0].mxu0
        %v2032 = vadd.f32 %v1230, %v2031
        %2033 = vdwg.mxu0
        %2034 = vmatprep.subr.bf16.mxu0 0
        %2035 = vmatpush1.bf16.msra.mxu0 %v1580
        %2036 = vmatprep.subr.bf16.mxu0 0
        %2037 = vmatpush1.bf16.msra.mxu0 %v1593
        %2038 = vmatprep.subr.bf16.mxu0 0
        %2039 = vmatpush1.bf16.msra.mxu0 %v1606
        %2040 = vmatprep.subr.bf16.mxu0 0
        %2041 = vmatpush1.bf16.msra.mxu0 %v1619
        %2042 = vmatprep.subr.bf16.mxu0 0
        %2043 = vmatpush1.bf16.msra.mxu0 %v1632
        %2044 = vmatprep.subr.bf16.mxu0 0
        %2045 = vmatpush1.bf16.msra.mxu0 %v1645
        %2046 = vmatprep.subr.bf16.mxu0 0
        %2047 = vmatpush1.bf16.msra.mxu0 %v1658
        %2048 = vmatprep.subr.bf16.mxu0 0
        %2049 = vmatpush1.bf16.msra.mxu0 %v1671
        %2050 = vmatprep.subr.bf16.mxu0 0
        %2051 = vmatpush1.bf16.msra.mxu0 0
        %2052 = vmatprep.subr.bf16.mxu0 0
        %2053 = vmatpush1.bf16.msra.mxu0 0
        %2054 = vmatprep.subr.bf16.mxu0 0
        %2055 = vmatpush1.bf16.msra.mxu0 0
        %2056 = vmatprep.subr.bf16.mxu0 0
        %2057 = vmatpush1.bf16.msra.mxu0 0
        %2058 = vmatprep.subr.bf16.mxu0 0
        %2059 = vmatpush1.bf16.msra.mxu0 0
        %2060 = vmatprep.subr.bf16.mxu0 0
        %2061 = vmatpush1.bf16.msra.mxu0 0
        %2062 = vmatprep.subr.bf16.mxu0 0
        %2063 = vmatpush1.bf16.msra.mxu0 0
        %2064 = vmatprep.subr.bf16.mxu0 0
        %2065 = vmatpush1.bf16.msra.mxu0 0
        %2066 = vmatprep.mubr.bf16.mxu0 0
        %2067 = vmatmul.mubr.bf16.gmra.mrb[0].mxu0 %v1066
        %v2068 = vpop.f32.mrb[0].mxu0
        %v2069 = vadd.f32 %v1234, %v2068
        %v2070 = vpop.f32.mrb[0].mxu0
        %v2071 = vpop.f32.mrb[0].mxu0
        %v2072 = vadd.f32 %v1234, %v2071
        %v2073 = vpop.f32.mrb[0].mxu0
        %2074 = vdwg.mxu0
        %v2075 = vpack.c.bf16 %v1815, %v1811
        %v2076 = vpack.c.bf16 %v1901, %v1897
        %v2077 = vpack.c.bf16 %v1987, %v1983
        %2078 = vmatprep.subr.bf16.mxu0 0
        %2079 = vmatpush1.bf16.xpose.msra.mxu0 %v2076
        %2080 = vmatprep.subr.bf16.mxu0 0
        %2081 = vmatpush1.bf16.xpose.msra.mxu0 0
        %2082 = vmatprep.subr.bf16.mxu0 0
        %2083 = vmatpush1.bf16.xpose.msra.mxu0 0
        %2084 = vmatprep.subr.bf16.mxu0 0
        %2085 = vmatpush1.bf16.xpose.msra.mxu0 0
        %2086 = vmatprep.subr.bf16.mxu0 0
        %2087 = vmatpush1.bf16.xpose.msra.mxu0 0
        %2088 = vmatprep.subr.bf16.mxu0 0
        %2089 = vmatpush1.bf16.xpose.msra.mxu0 0
        %2090 = vmatprep.subr.bf16.mxu0 0
        %2091 = vmatpush1.bf16.xpose.msra.mxu0 0
        %2092 = vmatprep.subr.bf16.mxu0 0
        %2093 = vmatpush1.bf16.xpose.msra.mxu0 0
        %2094 = vmatprep.subr.bf16.mxu0 0
        %2095 = vmatpush1.bf16.xpose.msra.mxu0 0
        %2096 = vmatprep.subr.bf16.mxu0 0
        %2097 = vmatpush1.bf16.xpose.msra.mxu0 0
        %2098 = vmatprep.subr.bf16.mxu0 0
        %2099 = vmatpush1.bf16.xpose.msra.mxu0 0
        %2100 = vmatprep.subr.bf16.mxu0 0
        %2101 = vmatpush1.bf16.xpose.msra.mxu0 0
        %2102 = vmatprep.subr.bf16.mxu0 0
        %2103 = vmatpush1.bf16.xpose.msra.mxu0 0
        %2104 = vmatprep.subr.bf16.mxu0 0
        %2105 = vmatpush1.bf16.xpose.msra.mxu0 0
        %2106 = vmatprep.subr.bf16.mxu0 0
        %2107 = vmatpush1.bf16.xpose.msra.mxu0 0
        %2108 = vmatprep.subr.bf16.mxu0 0
        %2109 = vmatpush1.bf16.xpose.msra.mxu0 0
        %2110 = vmatprep.mubr.bf16.mxu0 0
        %2111 = vmatmul.mubr.bf16.gmra.mrb[0].mxu0 %v2075
        %v2112 = vpop.f32.mrb[0].mxu0
        %v2113 = vadd.f32 %v1064, %v2112
        %v2114 = vpop.f32.mrb[0].mxu0
        %v2115 = vpop.f32.mrb[0].mxu0
        %v2116 = vadd.f32 %v1065, %v2115
        %v2117 = vpop.f32.mrb[0].mxu0
        %2118 = vdwg.mxu0
        %vm2119 = vcmask 130048
        %v2120 = vsel %vm2119, %v2113, -inf
        %2121 = vmax.xlane.f32.xlu0 %v2120
        %v2122 = vpop.xlane.xlu0 %2121
        %v2123 = vsel %vm2119, %v2116, -inf
        %2124 = vmax.xlane.f32.xlu0 %v2123
        %v2125 = vpop.xlane.xlu0 %2124
        %v2126 = vsub.f32 %v2113, %v2122
        %v2127 = vsub.f32 %v2116, %v2125
        %v2128 = vmul.f32 %v2126, 1.442695
        %v2129 = vpow.pop %v2128
        %v2130 = vmul.f32 %v2127, 1.442695
        %v2131 = vpow.pop %v2130
        %v2132 = vsel %vm2119, %v2129, 0.0
        %2133 = vadd.xlane.f32.xlu0 %v2132
        %v2134 = vpop.xlane.xlu0 %2133
        %v2135 = vsel %vm2119, %v2131, 0.0
        %2136 = vadd.xlane.f32.xlu0 %v2135
        %v2137 = vpop.xlane.xlu0 %2136
        %v2138 = vrcp.pop %v2134
        %v2139 = vrcp.pop %v2137
        %v2140 = vmul.f32 %v2129, %v2138
        %v2141 = vmul.f32 %v2131, %v2139
        %v2142 = vpack.c.bf16 %v2141, %v2140
        %v2143 = vpack.c.bf16 %v1817, %v1813
        %v2144 = vpack.c.bf16 %v1903, %v1899
        %v2145 = vpack.c.bf16 %v1989, %v1985
        %2146 = vmatprep.subr.bf16.mxu0 0
        %2147 = vmatpush1.bf16.xpose.msra.mxu0 %v2144
        %2148 = vmatprep.subr.bf16.mxu0 0
        %2149 = vmatpush1.bf16.xpose.msra.mxu0 0
        %2150 = vmatprep.subr.bf16.mxu0 0
        %2151 = vmatpush1.bf16.xpose.msra.mxu0 0
        %2152 = vmatprep.subr.bf16.mxu0 0
        %2153 = vmatpush1.bf16.xpose.msra.mxu0 0
        %2154 = vmatprep.subr.bf16.mxu0 0
        %2155 = vmatpush1.bf16.xpose.msra.mxu0 0
        %2156 = vmatprep.subr.bf16.mxu0 0
        %2157 = vmatpush1.bf16.xpose.msra.mxu0 0
        %2158 = vmatprep.subr.bf16.mxu0 0
        %2159 = vmatpush1.bf16.xpose.msra.mxu0 0
        %2160 = vmatprep.subr.bf16.mxu0 0
        %2161 = vmatpush1.bf16.xpose.msra.mxu0 0
        %2162 = vmatprep.subr.bf16.mxu0 0
        %2163 = vmatpush1.bf16.xpose.msra.mxu0 0
        %2164 = vmatprep.subr.bf16.mxu0 0
        %2165 = vmatpush1.bf16.xpose.msra.mxu0 0
        %2166 = vmatprep.subr.bf16.mxu0 0
        %2167 = vmatpush1.bf16.xpose.msra.mxu0 0
        %2168 = vmatprep.subr.bf16.mxu0 0
        %2169 = vmatpush1.bf16.xpose.msra.mxu0 0
        %2170 = vmatprep.subr.bf16.mxu0 0
        %2171 = vmatpush1.bf16.xpose.msra.mxu0 0
        %2172 = vmatprep.subr.bf16.mxu0 0
        %2173 = vmatpush1.bf16.xpose.msra.mxu0 0
        %2174 = vmatprep.subr.bf16.mxu0 0
        %2175 = vmatpush1.bf16.xpose.msra.mxu0 0
        %2176 = vmatprep.subr.bf16.mxu0 0
        %2177 = vmatpush1.bf16.xpose.msra.mxu0 0
        %2178 = vmatprep.mubr.bf16.mxu0 0
        %2179 = vmatmul.mubr.bf16.gmra.mrb[0].mxu0 %v2143
        %v2180 = vpop.f32.mrb[0].mxu0
        %v2181 = vadd.f32 %v1064, %v2180
        %v2182 = vpop.f32.mrb[0].mxu0
        %v2183 = vpop.f32.mrb[0].mxu0
        %v2184 = vadd.f32 %v1065, %v2183
        %v2185 = vpop.f32.mrb[0].mxu0
        %2186 = vdwg.mxu0
        %v2187 = vsel %vm2119, %v2181, -inf
        %2188 = vmax.xlane.f32.xlu0 %v2187
        %v2189 = vpop.xlane.xlu0 %2188
        %v2190 = vsel %vm2119, %v2184, -inf
        %2191 = vmax.xlane.f32.xlu0 %v2190
        %v2192 = vpop.xlane.xlu0 %2191
        %v2193 = vsub.f32 %v2181, %v2189
        %v2194 = vsub.f32 %v2184, %v2192
        %v2195 = vmul.f32 %v2193, 1.442695
        %v2196 = vpow.pop %v2195
        %v2197 = vmul.f32 %v2194, 1.442695
        %v2198 = vpow.pop %v2197
        %v2199 = vsel %vm2119, %v2196, 0.0
        %2200 = vadd.xlane.f32.xlu0 %v2199
        %v2201 = vpop.xlane.xlu0 %2200
        %v2202 = vsel %vm2119, %v2198, 0.0
        %2203 = vadd.xlane.f32.xlu0 %v2202
        %v2204 = vpop.xlane.xlu0 %2203
        %v2205 = vrcp.pop %v2201
        %v2206 = vrcp.pop %v2204
        %v2207 = vmul.f32 %v2196, %v2205
        %v2208 = vmul.f32 %v2198, %v2206
        %v2209 = vpack.c.bf16 %v2208, %v2207
        %v2211 = vsel %vm2119, %v2209, 0
        %2213 = vmatprep.subr.bf16.mxu0 0
        %2214 = vmatpush1.bf16.msra.mxu0 %v2145
        %2215 = vmatprep.subr.bf16.mxu0 0
        %2216 = vmatpush1.bf16.msra.mxu0 0
        %2217 = vmatprep.subr.bf16.mxu0 0
        %2218 = vmatpush1.bf16.msra.mxu0 0
        %2219 = vmatprep.subr.bf16.mxu0 0
        %2220 = vmatpush1.bf16.msra.mxu0 0
        %2221 = vmatprep.subr.bf16.mxu0 0
        %2222 = vmatpush1.bf16.msra.mxu0 0
        %2223 = vmatprep.subr.bf16.mxu0 0
        %2224 = vmatpush1.bf16.msra.mxu0 0
        %2225 = vmatprep.subr.bf16.mxu0 0
        %2226 = vmatpush1.bf16.msra.mxu0 0
        %2227 = vmatprep.subr.bf16.mxu0 0
        %2228 = vmatpush1.bf16.msra.mxu0 0
        %2229 = vmatprep.subr.bf16.mxu0 0
        %2230 = vmatpush1.bf16.msra.mxu0 0
        %2231 = vmatprep.subr.bf16.mxu0 0
        %2232 = vmatpush1.bf16.msra.mxu0 0
        %2233 = vmatprep.subr.bf16.mxu0 0
        %2234 = vmatpush1.bf16.msra.mxu0 0
        %2235 = vmatprep.subr.bf16.mxu0 0
        %2236 = vmatpush1.bf16.msra.mxu0 0
        %2237 = vmatprep.subr.bf16.mxu0 0
        %2238 = vmatpush1.bf16.msra.mxu0 0
        %2239 = vmatprep.subr.bf16.mxu0 0
        %2240 = vmatpush1.bf16.msra.mxu0 0
        %2241 = vmatprep.subr.bf16.mxu0 0
        %2242 = vmatpush1.bf16.msra.mxu0 0
        %2243 = vmatprep.subr.bf16.mxu0 0
        %2244 = vmatpush1.bf16.msra.mxu0 0
        %2245 = vmatprep.mubr.bf16.mxu0 0
        %2246 = vmatmul.mubr.bf16.gmra.mrb[0].mxu0 %v2211
        %v2247 = vpop.f32.mrb[0].mxu0
        %v2248 = vadd.f32 0.0, %v2247
        %v2249 = vpop.f32.mrb[0].mxu0
        %v2250 = vpop.f32.mrb[0].mxu0
        %v2251 = vadd.f32 0.0, %v2250
        %v2252 = vpop.f32.mrb[0].mxu0
        %2253 = vdwg.mxu0
        %v2255 = vsel %vm2119, %v2142, 0
        %2257 = vmatprep.subr.bf16.mxu0 0
        %2258 = vmatpush1.bf16.msra.mxu0 %v2077
        %2259 = vmatprep.subr.bf16.mxu0 0
        %2260 = vmatpush1.bf16.msra.mxu0 0
        %2261 = vmatprep.subr.bf16.mxu0 0
        %2262 = vmatpush1.bf16.msra.mxu0 0
        %2263 = vmatprep.subr.bf16.mxu0 0
        %2264 = vmatpush1.bf16.msra.mxu0 0
        %2265 = vmatprep.subr.bf16.mxu0 0
        %2266 = vmatpush1.bf16.msra.mxu0 0
        %2267 = vmatprep.subr.bf16.mxu0 0
        %2268 = vmatpush1.bf16.msra.mxu0 0
        %2269 = vmatprep.subr.bf16.mxu0 0
        %2270 = vmatpush1.bf16.msra.mxu0 0
        %2271 = vmatprep.subr.bf16.mxu0 0
        %2272 = vmatpush1.bf16.msra.mxu0 0
        %2273 = vmatprep.subr.bf16.mxu0 0
        %2274 = vmatpush1.bf16.msra.mxu0 0
        %2275 = vmatprep.subr.bf16.mxu0 0
        %2276 = vmatpush1.bf16.msra.mxu0 0
        %2277 = vmatprep.subr.bf16.mxu0 0
        %2278 = vmatpush1.bf16.msra.mxu0 0
        %2279 = vmatprep.subr.bf16.mxu0 0
        %2280 = vmatpush1.bf16.msra.mxu0 0
        %2281 = vmatprep.subr.bf16.mxu0 0
        %2282 = vmatpush1.bf16.msra.mxu0 0
        %2283 = vmatprep.subr.bf16.mxu0 0
        %2284 = vmatpush1.bf16.msra.mxu0 0
        %2285 = vmatprep.subr.bf16.mxu0 0
        %2286 = vmatpush1.bf16.msra.mxu0 0
        %2287 = vmatprep.subr.bf16.mxu0 0
        %2288 = vmatpush1.bf16.msra.mxu0 0
        %2289 = vmatprep.mubr.bf16.mxu0 0
        %2290 = vmatmul.mubr.bf16.gmra.mrb[0].mxu0 %v2255
        %v2291 = vpop.f32.mrb[0].mxu0
        %v2292 = vadd.f32 %v2248, %v2291
        %v2293 = vpop.f32.mrb[0].mxu0
        %v2294 = vpop.f32.mrb[0].mxu0
        %v2295 = vadd.f32 %v2251, %v2294
        %v2296 = vpop.f32.mrb[0].mxu0
        %2297 = vdwg.mxu0
        %v2298 = vpack.c.bf16 %v1858, %v1854
        %v2299 = vpack.c.bf16 %v1944, %v1940
        %v2300 = vpack.c.bf16 %v2030, %v2026
        %2301 = vmatprep.subr.bf16.mxu0 0
        %2302 = vmatpush1.bf16.xpose.msra.mxu0 %v2299
        %2303 = vmatprep.subr.bf16.mxu0 0
        %2304 = vmatpush1.bf16.xpose.msra.mxu0 0
        %2305 = vmatprep.subr.bf16.mxu0 0
        %2306 = vmatpush1.bf16.xpose.msra.mxu0 0
        %2307 = vmatprep.subr.bf16.mxu0 0
        %2308 = vmatpush1.bf16.xpose.msra.mxu0 0
        %2309 = vmatprep.subr.bf16.mxu0 0
        %2310 = vmatpush1.bf16.xpose.msra.mxu0 0
        %2311 = vmatprep.subr.bf16.mxu0 0
        %2312 = vmatpush1.bf16.xpose.msra.mxu0 0
        %2313 = vmatprep.subr.bf16.mxu0 0
        %2314 = vmatpush1.bf16.xpose.msra.mxu0 0
        %2315 = vmatprep.subr.bf16.mxu0 0
        %2316 = vmatpush1.bf16.xpose.msra.mxu0 0
        %2317 = vmatprep.subr.bf16.mxu0 0
        %2318 = vmatpush1.bf16.xpose.msra.mxu0 0
        %2319 = vmatprep.subr.bf16.mxu0 0
        %2320 = vmatpush1.bf16.xpose.msra.mxu0 0
        %2321 = vmatprep.subr.bf16.mxu0 0
        %2322 = vmatpush1.bf16.xpose.msra.mxu0 0
        %2323 = vmatprep.subr.bf16.mxu0 0
        %2324 = vmatpush1.bf16.xpose.msra.mxu0 0
        %2325 = vmatprep.subr.bf16.mxu0 0
        %2326 = vmatpush1.bf16.xpose.msra.mxu0 0
        %2327 = vmatprep.subr.bf16.mxu0 0
        %2328 = vmatpush1.bf16.xpose.msra.mxu0 0
        %2329 = vmatprep.subr.bf16.mxu0 0
        %2330 = vmatpush1.bf16.xpose.msra.mxu0 0
        %2331 = vmatprep.subr.bf16.mxu0 0
        %2332 = vmatpush1.bf16.xpose.msra.mxu0 0
        %2333 = vmatprep.mubr.bf16.mxu0 0
        %2334 = vmatmul.mubr.bf16.gmra.mrb[0].mxu0 %v2298
        %v2335 = vpop.f32.mrb[0].mxu0
        %v2336 = vadd.f32 %v1064, %v2335
        %v2337 = vpop.f32.mrb[0].mxu0
        %v2338 = vpop.f32.mrb[0].mxu0
        %v2339 = vadd.f32 %v1065, %v2338
        %v2340 = vpop.f32.mrb[0].mxu0
        %2341 = vdwg.mxu0
        %v2342 = vsel %vm2119, %v2336, -inf
        %2343 = vmax.xlane.f32.xlu0 %v2342
        %v2344 = vpop.xlane.xlu0 %2343
        %v2345 = vsel %vm2119, %v2339, -inf
        %2346 = vmax.xlane.f32.xlu0 %v2345
        %v2347 = vpop.xlane.xlu0 %2346
        %v2348 = vsub.f32 %v2336, %v2344
        %v2349 = vsub.f32 %v2339, %v2347
        %v2350 = vmul.f32 %v2348, 1.442695
        %v2351 = vpow.pop %v2350
        %v2352 = vmul.f32 %v2349, 1.442695
        %v2353 = vpow.pop %v2352
        %v2354 = vsel %vm2119, %v2351, 0.0
        %2355 = vadd.xlane.f32.xlu0 %v2354
        %v2356 = vpop.xlane.xlu0 %2355
        %v2357 = vsel %vm2119, %v2353, 0.0
        %2358 = vadd.xlane.f32.xlu0 %v2357
        %v2359 = vpop.xlane.xlu0 %2358
        %v2360 = vrcp.pop %v2356
        %v2361 = vrcp.pop %v2359
        %v2362 = vmul.f32 %v2351, %v2360
        %v2363 = vmul.f32 %v2353, %v2361
        %v2364 = vpack.c.bf16 %v2363, %v2362
        %v2366 = vsel %vm2119, %v2364, 0
        %2368 = vmatprep.subr.bf16.mxu0 0
        %2369 = vmatpush1.bf16.msra.mxu0 %v2300
        %2370 = vmatprep.subr.bf16.mxu0 0
        %2371 = vmatpush1.bf16.msra.mxu0 0
        %2372 = vmatprep.subr.bf16.mxu0 0
        %2373 = vmatpush1.bf16.msra.mxu0 0
        %2374 = vmatprep.subr.bf16.mxu0 0
        %2375 = vmatpush1.bf16.msra.mxu0 0
        %2376 = vmatprep.subr.bf16.mxu0 0
        %2377 = vmatpush1.bf16.msra.mxu0 0
        %2378 = vmatprep.subr.bf16.mxu0 0
        %2379 = vmatpush1.bf16.msra.mxu0 0
        %2380 = vmatprep.subr.bf16.mxu0 0
        %2381 = vmatpush1.bf16.msra.mxu0 0
        %2382 = vmatprep.subr.bf16.mxu0 0
        %2383 = vmatpush1.bf16.msra.mxu0 0
        %2384 = vmatprep.subr.bf16.mxu0 0
        %2385 = vmatpush1.bf16.msra.mxu0 0
        %2386 = vmatprep.subr.bf16.mxu0 0
        %2387 = vmatpush1.bf16.msra.mxu0 0
        %2388 = vmatprep.subr.bf16.mxu0 0
        %2389 = vmatpush1.bf16.msra.mxu0 0
        %2390 = vmatprep.subr.bf16.mxu0 0
        %2391 = vmatpush1.bf16.msra.mxu0 0
        %2392 = vmatprep.subr.bf16.mxu0 0
        %2393 = vmatpush1.bf16.msra.mxu0 0
        %2394 = vmatprep.subr.bf16.mxu0 0
        %2395 = vmatpush1.bf16.msra.mxu0 0
        %2396 = vmatprep.subr.bf16.mxu0 0
        %2397 = vmatpush1.bf16.msra.mxu0 0
        %2398 = vmatprep.subr.bf16.mxu0 0
        %2399 = vmatpush1.bf16.msra.mxu0 0
        %2400 = vmatprep.mubr.bf16.mxu0 0
        %2401 = vmatmul.mubr.bf16.gmra.mrb[0].mxu0 %v2366
        %v2402 = vpop.f32.mrb[0].mxu0
        %v2403 = vadd.f32 0.0, %v2402
        %v2404 = vpop.f32.mrb[0].mxu0
        %v2405 = vpop.f32.mrb[0].mxu0
        %v2406 = vadd.f32 0.0, %v2405
        %v2407 = vpop.f32.mrb[0].mxu0
        %2408 = vdwg.mxu0
        %v2409 = vadd.f32 %v2292, %v2403
        %v2410 = vadd.f32 %v2295, %v2406
        %v2411 = vpack.c.bf16 %v1860, %v1856
        %v2412 = vpack.c.bf16 %v1946, %v1942
        %v2413 = vpack.c.bf16 %v2032, %v2028
        %2414 = vmatprep.subr.bf16.mxu0 0
        %2415 = vmatpush1.bf16.xpose.msra.mxu0 %v2412
        %2416 = vmatprep.subr.bf16.mxu0 0
        %2417 = vmatpush1.bf16.xpose.msra.mxu0 0
        %2418 = vmatprep.subr.bf16.mxu0 0
        %2419 = vmatpush1.bf16.xpose.msra.mxu0 0
        %2420 = vmatprep.subr.bf16.mxu0 0
        %2421 = vmatpush1.bf16.xpose.msra.mxu0 0
        %2422 = vmatprep.subr.bf16.mxu0 0
        %2423 = vmatpush1.bf16.xpose.msra.mxu0 0
        %2424 = vmatprep.subr.bf16.mxu0 0
        %2425 = vmatpush1.bf16.xpose.msra.mxu0 0
        %2426 = vmatprep.subr.bf16.mxu0 0
        %2427 = vmatpush1.bf16.xpose.msra.mxu0 0
        %2428 = vmatprep.subr.bf16.mxu0 0
        %2429 = vmatpush1.bf16.xpose.msra.mxu0 0
        %2430 = vmatprep.subr.bf16.mxu0 0
        %2431 = vmatpush1.bf16.xpose.msra.mxu0 0
        %2432 = vmatprep.subr.bf16.mxu0 0
        %2433 = vmatpush1.bf16.xpose.msra.mxu0 0
        %2434 = vmatprep.subr.bf16.mxu0 0
        %2435 = vmatpush1.bf16.xpose.msra.mxu0 0
        %2436 = vmatprep.subr.bf16.mxu0 0
        %2437 = vmatpush1.bf16.xpose.msra.mxu0 0
        %2438 = vmatprep.subr.bf16.mxu0 0
        %2439 = vmatpush1.bf16.xpose.msra.mxu0 0
        %2440 = vmatprep.subr.bf16.mxu0 0
        %2441 = vmatpush1.bf16.xpose.msra.mxu0 0
        %2442 = vmatprep.subr.bf16.mxu0 0
        %2443 = vmatpush1.bf16.xpose.msra.mxu0 0
        %2444 = vmatprep.subr.bf16.mxu0 0
        %2445 = vmatpush1.bf16.xpose.msra.mxu0 0
        %2446 = vmatprep.mubr.bf16.mxu0 0
        %2447 = vmatmul.mubr.bf16.gmra.mrb[0].mxu0 %v2411
        %v2448 = vpop.f32.mrb[0].mxu0
        %v2449 = vadd.f32 %v1064, %v2448
        %v2450 = vpop.f32.mrb[0].mxu0
        %v2451 = vpop.f32.mrb[0].mxu0
        %v2452 = vadd.f32 %v1065, %v2451
        %v2453 = vpop.f32.mrb[0].mxu0
        %2454 = vdwg.mxu0
        %v2455 = vsel %vm2119, %v2449, -inf
        %2456 = vmax.xlane.f32.xlu0 %v2455
        %v2457 = vpop.xlane.xlu0 %2456
        %v2458 = vsel %vm2119, %v2452, -inf
        %2459 = vmax.xlane.f32.xlu0 %v2458
        %v2460 = vpop.xlane.xlu0 %2459
        %v2461 = vsub.f32 %v2449, %v2457
        %v2462 = vsub.f32 %v2452, %v2460
        %v2463 = vmul.f32 %v2461, 1.442695
        %v2464 = vpow.pop %v2463
        %v2465 = vmul.f32 %v2462, 1.442695
        %v2466 = vpow.pop %v2465
        %v2467 = vsel %vm2119, %v2464, 0.0
        %2468 = vadd.xlane.f32.xlu0 %v2467
        %v2469 = vpop.xlane.xlu0 %2468
        %v2470 = vsel %vm2119, %v2466, 0.0
        %2471 = vadd.xlane.f32.xlu0 %v2470
        %v2472 = vpop.xlane.xlu0 %2471
        %v2473 = vrcp.pop %v2469
        %v2474 = vrcp.pop %v2472
        %v2475 = vmul.f32 %v2464, %v2473
        %v2476 = vmul.f32 %v2466, %v2474
        %v2477 = vpack.c.bf16 %v2476, %v2475
        %v2479 = vsel %vm2119, %v2477, 0
        %2481 = vmatprep.subr.bf16.mxu0 0
        %2482 = vmatpush1.bf16.msra.mxu0 %v2413
        %2483 = vmatprep.subr.bf16.mxu0 0
        %2484 = vmatpush1.bf16.msra.mxu0 0
        %2485 = vmatprep.subr.bf16.mxu0 0
        %2486 = vmatpush1.bf16.msra.mxu0 0
        %2487 = vmatprep.subr.bf16.mxu0 0
        %2488 = vmatpush1.bf16.msra.mxu0 0
        %2489 = vmatprep.subr.bf16.mxu0 0
        %2490 = vmatpush1.bf16.msra.mxu0 0
        %2491 = vmatprep.subr.bf16.mxu0 0
        %2492 = vmatpush1.bf16.msra.mxu0 0
        %2493 = vmatprep.subr.bf16.mxu0 0
        %2494 = vmatpush1.bf16.msra.mxu0 0
        %2495 = vmatprep.subr.bf16.mxu0 0
        %2496 = vmatpush1.bf16.msra.mxu0 0
        %2497 = vmatprep.subr.bf16.mxu0 0
        %2498 = vmatpush1.bf16.msra.mxu0 0
        %2499 = vmatprep.subr.bf16.mxu0 0
        %2500 = vmatpush1.bf16.msra.mxu0 0
        %2501 = vmatprep.subr.bf16.mxu0 0
        %2502 = vmatpush1.bf16.msra.mxu0 0
        %2503 = vmatprep.subr.bf16.mxu0 0
        %2504 = vmatpush1.bf16.msra.mxu0 0
        %2505 = vmatprep.subr.bf16.mxu0 0
        %2506 = vmatpush1.bf16.msra.mxu0 0
        %2507 = vmatprep.subr.bf16.mxu0 0
        %2508 = vmatpush1.bf16.msra.mxu0 0
        %2509 = vmatprep.subr.bf16.mxu0 0
        %2510 = vmatpush1.bf16.msra.mxu0 0
        %2511 = vmatprep.subr.bf16.mxu0 0
        %2512 = vmatpush1.bf16.msra.mxu0 0
        %2513 = vmatprep.mubr.bf16.mxu0 0
        %2514 = vmatmul.mubr.bf16.gmra.mrb[0].mxu0 %v2479
        %v2515 = vpop.f32.mrb[0].mxu0
        %v2516 = vadd.f32 0.0, %v2515
        %v2517 = vpop.f32.mrb[0].mxu0
        %v2518 = vpop.f32.mrb[0].mxu0
        %v2519 = vadd.f32 0.0, %v2518
        %v2520 = vpop.f32.mrb[0].mxu0
        %2521 = vdwg.mxu0
        %v2522 = vadd.f32 %v2409, %v2516
        %v2523 = vadd.f32 %v2410, %v2519
        %v2524 = vld [vmem:[%s8] sm:$0xff]
        %v2525 = vld [vmem:[%s8 + $0x8] sm:$0xff]
        %2527 = vset.pattern.permute.xlu0 0
        %2528 = vperm.xlu0 %2527, %v2524
        %v2529 = vpop.permute.xlu0 %2528
        %2532 = vset.pattern.permute.xlu0 0
        %2533 = vperm.xlu0 %2532, %v2525
        %v2534 = vpop.permute.xlu0 %2533
        %v2536 = vmul.f32 %v2522, %v2529
        %v2537 = vmul.f32 %v2523, %v2534
        %v2538 = vadd.f32 %v2536, %v2069
        %v2539 = vadd.f32 %v2537, %v2072
        %v2540 = vadd.f32 %v1059, %v2538
        %v2541 = vadd.f32 %v1060, %v2539
        %2542 = vadd.xlane.f32.xlu0 %v2540
        %v2543 = vpop.xlane.xlu0 %2542
        %2544 = vadd.xlane.f32.xlu0 %v2541
        %v2545 = vpop.xlane.xlu0 %2544
        %v2546 = vrcp.pop 128.0
        %v2547 = vmul.f32 %v2543, %v2546
        %v2548 = vmul.f32 %v2545, %v2546
        %v2549 = vsub.f32 %v2540, %v2547
        %v2550 = vsub.f32 %v2541, %v2548
        %v2551 = vmul.f32 %v2549, %v2549
        %v2552 = vmul.f32 %v2550, %v2550
        %2553 = vadd.xlane.f32.xlu0 %v2551
        %v2554 = vpop.xlane.xlu0 %2553
        %2555 = vadd.xlane.f32.xlu0 %v2552
        %v2556 = vpop.xlane.xlu0 %2555
        %v2557 = vmul.f32 %v2554, %v2546
        %v2558 = vmul.f32 %v2556, %v2546
        %v2559 = vadd.f32 %v2557, 1e-05
        %v2560 = vadd.f32 %v2558, 1e-05
        %v2561 = vrsqrt.pop %v2559
        %v2562 = vrsqrt.pop %v2560
        %v2563 = vmul.f32 %v2549, %v2561
        %v2564 = vmul.f32 %v2550, %v2562
        %v2565 = vlaneseq
        %v2566 = vshrl.u32 %v2565, 7
        %v2567 = vsub.s32 0, %v2566
        %v2568 = vrot.slane %v1061, %v2567
        %v2569 = vmul.f32 %v2563, %v2568
        %v2570 = vmul.f32 %v2564, %v2568
        %v2571 = vlaneseq
        %v2572 = vshrl.u32 %v2571, 7
        %v2573 = vsub.s32 1, %v2572
        %v2574 = vrot.slane %v1061, %v2573
        %v2575 = vadd.f32 %v2569, %v2574
        %v2576 = vadd.f32 %v2570, %v2574
        %v2577 = vld [vmem:[#allocation2] sm:$0xff]
        %v2578 = vld [vmem:[#allocation2 + $0x8] sm:$0xff]
        %v2579 = vpack.c.bf16 %v2578, %v2577
        %v2580 = vld [vmem:[%s736] sm:$0xf]
        %v2581 = vld [vmem:[%s736 + $0x4] sm:$0xf]
        %v2582 = vld [vmem:[%s736 + $0x8] sm:$0xf]
        %v2583 = vld [vmem:[%s736 + $0xc] sm:$0xf]
        %v2584 = vld [vmem:[%s736 + $0x10] sm:$0xf]
        %v2585 = vld [vmem:[%s736 + $0x14] sm:$0xf]
        %v2586 = vld [vmem:[%s736 + $0x18] sm:$0xf]
        %v2587 = vld [vmem:[%s736 + $0x1c] sm:$0xf]
        %v2588 = vld [vmem:[%s736 + $0x20] sm:$0xf]
        %v2589 = vld [vmem:[%s736 + $0x24] sm:$0xf]
        %v2590 = vld [vmem:[%s736 + $0x28] sm:$0xf]
        %v2591 = vld [vmem:[%s736 + $0x2c] sm:$0xf]
        %v2592 = vld [vmem:[%s736 + $0x30] sm:$0xf]
        %v2593 = vld [vmem:[%s736 + $0x34] sm:$0xf]
        %v2594 = vld [vmem:[%s736 + $0x38] sm:$0xf]
        %v2595 = vld [vmem:[%s736 + $0x3c] sm:$0xf]
        %v2596 = vld [vmem:[%s841] sm:$0x1]
        %v2598 = vlaneseq
        %v2599 = vshrl.u32 %v2598, 7
        %v2600 = vsub.s32 0, %v2599
        %v2601 = vrot.slane %v2596, %v2600
        %v2619 = vunpack.c.l.b16 %v2580
        %v2620 = vunpack.c.l.b16 %v2581
        %v2621 = vunpack.c.l.b16 %v2582
        %v2622 = vunpack.c.l.b16 %v2583
        %v2623 = vunpack.c.l.b16 %v2584
        %v2624 = vunpack.c.l.b16 %v2585
        %v2625 = vunpack.c.l.b16 %v2586
        %v2626 = vunpack.c.l.b16 %v2587
        %v2627 = vunpack.c.l.b16 %v2588
        %v2628 = vunpack.c.l.b16 %v2589
        %v2629 = vunpack.c.l.b16 %v2590
        %v2630 = vunpack.c.l.b16 %v2591
        %v2631 = vunpack.c.l.b16 %v2592
        %v2632 = vunpack.c.l.b16 %v2593
        %v2633 = vunpack.c.l.b16 %v2594
        %v2634 = vunpack.c.l.b16 %v2595
        %v2635 = vpack.c.b16 %v2620, %v2619
        %v2636 = vpack.c.b16 %v2622, %v2621
        %v2637 = vpack.c.b16 %v2624, %v2623
        %v2638 = vpack.c.b16 %v2626, %v2625
        %v2639 = vpack.c.b16 %v2628, %v2627
        %v2640 = vpack.c.b16 %v2630, %v2629
        %v2641 = vpack.c.b16 %v2632, %v2631
        %v2642 = vpack.c.b16 %v2634, %v2633
        %2651 = vmatprep.subr.bf16.mxu0 0
        %2652 = vmatpush1.bf16.msra.mxu0 %v2635
        %2653 = vmatprep.subr.bf16.mxu0 0
        %2654 = vmatpush1.bf16.msra.mxu0 %v2636
        %2655 = vmatprep.subr.bf16.mxu0 0
        %2656 = vmatpush1.bf16.msra.mxu0 %v2637
        %2657 = vmatprep.subr.bf16.mxu0 0
        %2658 = vmatpush1.bf16.msra.mxu0 %v2638
        %2659 = vmatprep.subr.bf16.mxu0 0
        %2660 = vmatpush1.bf16.msra.mxu0 %v2639
        %2661 = vmatprep.subr.bf16.mxu0 0
        %2662 = vmatpush1.bf16.msra.mxu0 %v2640
        %2663 = vmatprep.subr.bf16.mxu0 0
        %2664 = vmatpush1.bf16.msra.mxu0 %v2641
        %2665 = vmatprep.subr.bf16.mxu0 0
        %2666 = vmatpush1.bf16.msra.mxu0 %v2642
        %2667 = vmatprep.subr.bf16.mxu0 0
        %2668 = vmatpush1.bf16.msra.mxu0 0
        %2669 = vmatprep.subr.bf16.mxu0 0
        %2670 = vmatpush1.bf16.msra.mxu0 0
        %2671 = vmatprep.subr.bf16.mxu0 0
        %2672 = vmatpush1.bf16.msra.mxu0 0
        %2673 = vmatprep.subr.bf16.mxu0 0
        %2674 = vmatpush1.bf16.msra.mxu0 0
        %2675 = vmatprep.subr.bf16.mxu0 0
        %2676 = vmatpush1.bf16.msra.mxu0 0
        %2677 = vmatprep.subr.bf16.mxu0 0
        %2678 = vmatpush1.bf16.msra.mxu0 0
        %2679 = vmatprep.subr.bf16.mxu0 0
        %2680 = vmatpush1.bf16.msra.mxu0 0
        %2681 = vmatprep.subr.bf16.mxu0 0
        %2682 = vmatpush1.bf16.msra.mxu0 0
        %2683 = vmatprep.mubr.bf16.mxu0 0
        %2684 = vmatmul.mubr.bf16.gmra.mrb[0].mxu0 %v2579
        %v2685 = vpop.f32.mrb[0].mxu0
        %v2686 = vadd.f32 %v2601, %v2685
        %v2687 = vpop.f32.mrb[0].mxu0
        %v2688 = vpop.f32.mrb[0].mxu0
        %v2689 = vadd.f32 %v2601, %v2688
        %v2690 = vpop.f32.mrb[0].mxu0
        %2691 = vdwg.mxu0
        %v2692 = vadd.f32 %v2575, %v2686
        %v2693 = vadd.f32 %v2576, %v2689
        %2694 = vadd.xlane.f32.xlu0 %v2692
        %v2695 = vpop.xlane.xlu0 %2694
        %2696 = vadd.xlane.f32.xlu0 %v2693
        %v2697 = vpop.xlane.xlu0 %2696
        %v2698 = vmul.f32 %v2695, %v2546
        %v2699 = vmul.f32 %v2697, %v2546
        %v2700 = vsub.f32 %v2692, %v2698
        %v2701 = vsub.f32 %v2693, %v2699
        %v2702 = vmul.f32 %v2700, %v2700
        %v2703 = vmul.f32 %v2701, %v2701
        %2704 = vadd.xlane.f32.xlu0 %v2702
        %v2705 = vpop.xlane.xlu0 %2704
        %2706 = vadd.xlane.f32.xlu0 %v2703
        %v2707 = vpop.xlane.xlu0 %2706
        %v2708 = vmul.f32 %v2705, %v2546
        %v2709 = vmul.f32 %v2707, %v2546
        %v2710 = vadd.f32 %v2708, 1e-05
        %v2711 = vadd.f32 %v2709, 1e-05
        %v2712 = vrsqrt.pop %v2710
        %v2713 = vrsqrt.pop %v2711
        %v2714 = vmul.f32 %v2700, %v2712
        %v2715 = vmul.f32 %v2701, %v2713
        %v2716 = vlaneseq
        %v2717 = vshrl.u32 %v2716, 7
        %v2718 = vsub.s32 2, %v2717
        %v2719 = vrot.slane %v1061, %v2718
        %v2720 = vmul.f32 %v2714, %v2719
        %v2721 = vmul.f32 %v2715, %v2719
        %v2722 = vlaneseq
        %v2723 = vshrl.u32 %v2722, 7
        %v2724 = vsub.s32 3, %v2723
        %v2725 = vrot.slane %v1061, %v2724
        %v2726 = vadd.f32 %v2720, %v2725
        %v2727 = vadd.f32 %v2721, %v2725
        %v2728 = vpack.c.bf16 %v2727, %v2726
        %v2729 = vld [vmem:[%s745] sm:$0xff]
        %v2730 = vld [vmem:[%s745 + $0x8] sm:$0xff]
        %v2731 = vld [vmem:[%s745 + $0x10] sm:$0xff]
        %v2732 = vld [vmem:[%s745 + $0x18] sm:$0xff]
        %v2733 = vld [vmem:[%s745 + $0x20] sm:$0xff]
        %v2734 = vld [vmem:[%s745 + $0x28] sm:$0xff]
        %v2735 = vld [vmem:[%s745 + $0x30] sm:$0xff]
        %v2736 = vld [vmem:[%s745 + $0x38] sm:$0xff]
        %v2737 = vld [vmem:[%s745 + $0x40] sm:$0xff]
        %v2738 = vld [vmem:[%s745 + $0x48] sm:$0xff]
        %v2739 = vld [vmem:[%s745 + $0x50] sm:$0xff]
        %v2740 = vld [vmem:[%s745 + $0x58] sm:$0xff]
        %v2741 = vld [vmem:[%s745 + $0x60] sm:$0xff]
        %v2742 = vld [vmem:[%s745 + $0x68] sm:$0xff]
        %v2743 = vld [vmem:[%s745 + $0x70] sm:$0xff]
        %v2744 = vld [vmem:[%s745 + $0x78] sm:$0xff]
        %v2745 = vld [vmem:[%s745 + $0x80] sm:$0xff]
        %v2746 = vld [vmem:[%s745 + $0x88] sm:$0xff]
        %v2747 = vld [vmem:[%s745 + $0x90] sm:$0xff]
        %v2748 = vld [vmem:[%s745 + $0x98] sm:$0xff]
        %v2749 = vld [vmem:[%s745 + $0xa0] sm:$0xff]
        %v2750 = vld [vmem:[%s745 + $0xa8] sm:$0xff]
        %v2751 = vld [vmem:[%s745 + $0xb0] sm:$0xff]
        %v2752 = vld [vmem:[%s745 + $0xb8] sm:$0xff]
        %v2753 = vld [vmem:[%s745 + $0xc0] sm:$0xff]
        %v2754 = vld [vmem:[%s745 + $0xc8] sm:$0xff]
        %v2755 = vld [vmem:[%s745 + $0xd0] sm:$0xff]
        %v2756 = vld [vmem:[%s745 + $0xd8] sm:$0xff]
        %v2757 = vld [vmem:[%s745 + $0xe0] sm:$0xff]
        %v2758 = vld [vmem:[%s745 + $0xe8] sm:$0xff]
        %v2759 = vld [vmem:[%s745 + $0xf0] sm:$0xff]
        %v2760 = vld [vmem:[%s745 + $0xf8] sm:$0xff]
        %v2761 = vld [vmem:[%s845] sm:$0xf]
        %v2763 = vlaneseq
        %v2764 = vshrl.u32 %v2763, 7
        %v2765 = vsub.s32 0, %v2764
        %v2766 = vrot.slane %v2761, %v2765
        %v2767 = vlaneseq
        %v2768 = vshrl.u32 %v2767, 7
        %v2769 = vsub.s32 1, %v2768
        %v2770 = vrot.slane %v2761, %v2769
        %v2771 = vlaneseq
        %v2772 = vshrl.u32 %v2771, 7
        %v2773 = vsub.s32 2, %v2772
        %v2774 = vrot.slane %v2761, %v2773
        %v2775 = vlaneseq
        %v2776 = vshrl.u32 %v2775, 7
        %v2777 = vsub.s32 3, %v2776
        %v2778 = vrot.slane %v2761, %v2777
        %v2815 = vunpack.c.l.b16 %v2729
        %v2816 = vunpack.c.h.b16 %v2729
        %v2817 = vunpack.c.l.b16 %v2730
        %v2818 = vunpack.c.h.b16 %v2730
        %v2819 = vunpack.c.l.b16 %v2731
        %v2820 = vunpack.c.h.b16 %v2731
        %v2821 = vunpack.c.l.b16 %v2732
        %v2822 = vunpack.c.h.b16 %v2732
        %v2823 = vunpack.c.l.b16 %v2733
        %v2824 = vunpack.c.h.b16 %v2733
        %v2825 = vunpack.c.l.b16 %v2734
        %v2826 = vunpack.c.h.b16 %v2734
        %v2827 = vunpack.c.l.b16 %v2735
        %v2828 = vunpack.c.h.b16 %v2735
        %v2829 = vunpack.c.l.b16 %v2736
        %v2830 = vunpack.c.h.b16 %v2736
        %v2831 = vunpack.c.l.b16 %v2737
        %v2832 = vunpack.c.h.b16 %v2737
        %v2833 = vunpack.c.l.b16 %v2738
        %v2834 = vunpack.c.h.b16 %v2738
        %v2835 = vunpack.c.l.b16 %v2739
        %v2836 = vunpack.c.h.b16 %v2739
        %v2837 = vunpack.c.l.b16 %v2740
        %v2838 = vunpack.c.h.b16 %v2740
        %v2839 = vunpack.c.l.b16 %v2741
        %v2840 = vunpack.c.h.b16 %v2741
        %v2841 = vunpack.c.l.b16 %v2742
        %v2842 = vunpack.c.h.b16 %v2742
        %v2843 = vunpack.c.l.b16 %v2743
        %v2844 = vunpack.c.h.b16 %v2743
        %v2845 = vunpack.c.l.b16 %v2744
        %v2846 = vunpack.c.h.b16 %v2744
        %v2847 = vunpack.c.l.b16 %v2745
        %v2848 = vunpack.c.h.b16 %v2745
        %v2849 = vunpack.c.l.b16 %v2746
        %v2850 = vunpack.c.h.b16 %v2746
        %v2851 = vunpack.c.l.b16 %v2747
        %v2852 = vunpack.c.h.b16 %v2747
        %v2853 = vunpack.c.l.b16 %v2748
        %v2854 = vunpack.c.h.b16 %v2748
        %v2855 = vunpack.c.l.b16 %v2749
        %v2856 = vunpack.c.h.b16 %v2749
        %v2857 = vunpack.c.l.b16 %v2750
        %v2858 = vunpack.c.h.b16 %v2750
        %v2859 = vunpack.c.l.b16 %v2751
        %v2860 = vunpack.c.h.b16 %v2751
        %v2861 = vunpack.c.l.b16 %v2752
        %v2862 = vunpack.c.h.b16 %v2752
        %v2863 = vunpack.c.l.b16 %v2753
        %v2864 = vunpack.c.h.b16 %v2753
        %v2865 = vunpack.c.l.b16 %v2754
        %v2866 = vunpack.c.h.b16 %v2754
        %v2867 = vunpack.c.l.b16 %v2755
        %v2868 = vunpack.c.h.b16 %v2755
        %v2869 = vunpack.c.l.b16 %v2756
        %v2870 = vunpack.c.h.b16 %v2756
        %v2871 = vunpack.c.l.b16 %v2757
        %v2872 = vunpack.c.h.b16 %v2757
        %v2873 = vunpack.c.l.b16 %v2758
        %v2874 = vunpack.c.h.b16 %v2758
        %v2875 = vunpack.c.l.b16 %v2759
        %v2876 = vunpack.c.h.b16 %v2759
        %v2877 = vunpack.c.l.b16 %v2760
        %v2878 = vunpack.c.h.b16 %v2760
        %v2879 = vpack.c.b16 %v2819, %v2815
        %v2880 = vpack.c.b16 %v2820, %v2816
        %v2881 = vpack.c.b16 %v2821, %v2817
        %v2882 = vpack.c.b16 %v2822, %v2818
        %v2883 = vpack.c.b16 %v2827, %v2823
        %v2884 = vpack.c.b16 %v2828, %v2824
        %v2885 = vpack.c.b16 %v2829, %v2825
        %v2886 = vpack.c.b16 %v2830, %v2826
        %v2887 = vpack.c.b16 %v2835, %v2831
        %v2888 = vpack.c.b16 %v2836, %v2832
        %v2889 = vpack.c.b16 %v2837, %v2833
        %v2890 = vpack.c.b16 %v2838, %v2834
        %v2891 = vpack.c.b16 %v2843, %v2839
        %v2892 = vpack.c.b16 %v2844, %v2840
        %v2893 = vpack.c.b16 %v2845, %v2841
        %v2894 = vpack.c.b16 %v2846, %v2842
        %v2895 = vpack.c.b16 %v2851, %v2847
        %v2896 = vpack.c.b16 %v2852, %v2848
        %v2897 = vpack.c.b16 %v2853, %v2849
        %v2898 = vpack.c.b16 %v2854, %v2850
        %v2899 = vpack.c.b16 %v2859, %v2855
        %v2900 = vpack.c.b16 %v2860, %v2856
        %v2901 = vpack.c.b16 %v2861, %v2857
        %v2902 = vpack.c.b16 %v2862, %v2858
        %v2903 = vpack.c.b16 %v2867, %v2863
        %v2904 = vpack.c.b16 %v2868, %v2864
        %v2905 = vpack.c.b16 %v2869, %v2865
        %v2906 = vpack.c.b16 %v2870, %v2866
        %v2907 = vpack.c.b16 %v2875, %v2871
        %v2908 = vpack.c.b16 %v2876, %v2872
        %v2909 = vpack.c.b16 %v2877, %v2873
        %v2910 = vpack.c.b16 %v2878, %v2874
        %2943 = vmatprep.subr.bf16.mxu0 %v2880
        %2944 = vmatpush1.bf16.msra.mxu0 %v2879
        %2945 = vmatprep.subr.bf16.mxu0 %v2884
        %2946 = vmatpush1.bf16.msra.mxu0 %v2883
        %2947 = vmatprep.subr.bf16.mxu0 %v2888
        %2948 = vmatpush1.bf16.msra.mxu0 %v2887
        %2949 = vmatprep.subr.bf16.mxu0 %v2892
        %2950 = vmatpush1.bf16.msra.mxu0 %v2891
        %2951 = vmatprep.subr.bf16.mxu0 %v2896
        %2952 = vmatpush1.bf16.msra.mxu0 %v2895
        %2953 = vmatprep.subr.bf16.mxu0 %v2900
        %2954 = vmatpush1.bf16.msra.mxu0 %v2899
        %2955 = vmatprep.subr.bf16.mxu0 %v2904
        %2956 = vmatpush1.bf16.msra.mxu0 %v2903
        %2957 = vmatprep.subr.bf16.mxu0 %v2908
        %2958 = vmatpush1.bf16.msra.mxu0 %v2907
        %2959 = vmatprep.subr.bf16.mxu0 0
        %2960 = vmatpush1.bf16.msra.mxu0 0
        %2961 = vmatprep.subr.bf16.mxu0 0
        %2962 = vmatpush1.bf16.msra.mxu0 0
        %2963 = vmatprep.subr.bf16.mxu0 0
        %2964 = vmatpush1.bf16.msra.mxu0 0
        %2965 = vmatprep.subr.bf16.mxu0 0
        %2966 = vmatpush1.bf16.msra.mxu0 0
        %2967 = vmatprep.subr.bf16.mxu0 0
        %2968 = vmatpush1.bf16.msra.mxu0 0
        %2969 = vmatprep.subr.bf16.mxu0 0
        %2970 = vmatpush1.bf16.msra.mxu0 0
        %2971 = vmatprep.subr.bf16.mxu0 0
        %2972 = vmatpush1.bf16.msra.mxu0 0
        %2973 = vmatprep.subr.bf16.mxu0 0
        %2974 = vmatpush1.bf16.msra.mxu0 0
        %2975 = vmatprep.mubr.bf16.mxu0 0
        %2976 = vmatmul.mubr.bf16.gmra.mrb[0].mxu0 %v2728
        %v2977 = vpop.f32.mrb[0].mxu0
        %v2978 = vadd.f32 %v2766, %v2977
        %v2979 = vpop.f32.mrb[0].mxu0
        %v2980 = vadd.f32 %v2770, %v2979
        %v2981 = vpop.f32.mrb[0].mxu0
        %v2982 = vadd.f32 %v2766, %v2981
        %v2983 = vpop.f32.mrb[0].mxu0
        %v2984 = vadd.f32 %v2770, %v2983
        %2985 = vdwg.mxu0
        %2986 = vmatprep.subr.bf16.mxu0 %v2882
        %2987 = vmatpush1.bf16.msra.mxu0 %v2881
        %2988 = vmatprep.subr.bf16.mxu0 %v2886
        %2989 = vmatpush1.bf16.msra.mxu0 %v2885
        %2990 = vmatprep.subr.bf16.mxu0 %v2890
        %2991 = vmatpush1.bf16.msra.mxu0 %v2889
        %2992 = vmatprep.subr.bf16.mxu0 %v2894
        %2993 = vmatpush1.bf16.msra.mxu0 %v2893
        %2994 = vmatprep.subr.bf16.mxu0 %v2898
        %2995 = vmatpush1.bf16.msra.mxu0 %v2897
        %2996 = vmatprep.subr.bf16.mxu0 %v2902
        %2997 = vmatpush1.bf16.msra.mxu0 %v2901
        %2998 = vmatprep.subr.bf16.mxu0 %v2906
        %2999 = vmatpush1.bf16.msra.mxu0 %v2905
        %3000 = vmatprep.subr.bf16.mxu0 %v2910
        %3001 = vmatpush1.bf16.msra.mxu0 %v2909
        %3002 = vmatprep.subr.bf16.mxu0 0
        %3003 = vmatpush1.bf16.msra.mxu0 0
        %3004 = vmatprep.subr.bf16.mxu0 0
        %3005 = vmatpush1.bf16.msra.mxu0 0
        %3006 = vmatprep.subr.bf16.mxu0 0
        %3007 = vmatpush1.bf16.msra.mxu0 0
        %3008 = vmatprep.subr.bf16.mxu0 0
        %3009 = vmatpush1.bf16.msra.mxu0 0
        %3010 = vmatprep.subr.bf16.mxu0 0
        %3011 = vmatpush1.bf16.msra.mxu0 0
        %3012 = vmatprep.subr.bf16.mxu0 0
        %3013 = vmatpush1.bf16.msra.mxu0 0
        %3014 = vmatprep.subr.bf16.mxu0 0
        %3015 = vmatpush1.bf16.msra.mxu0 0
        %3016 = vmatprep.subr.bf16.mxu0 0
        %3017 = vmatpush1.bf16.msra.mxu0 0
        %3018 = vmatprep.mubr.bf16.mxu0 0
        %3019 = vmatmul.mubr.bf16.gmra.mrb[0].mxu0 %v2728
        %v3020 = vpop.f32.mrb[0].mxu0
        %v3021 = vadd.f32 %v2774, %v3020
        %v3022 = vpop.f32.mrb[0].mxu0
        %v3023 = vadd.f32 %v2778, %v3022
        %v3024 = vpop.f32.mrb[0].mxu0
        %v3025 = vadd.f32 %v2774, %v3024
        %v3026 = vpop.f32.mrb[0].mxu0
        %v3027 = vadd.f32 %v2778, %v3026
        %3028 = vdwg.mxu0
        %v3029 = vmax.f32 %v2978, 0.0
        %v3030 = vmax.f32 %v2980, 0.0
        %v3031 = vmax.f32 %v3021, 0.0
        %v3032 = vmax.f32 %v3023, 0.0
        %v3033 = vmax.f32 %v2982, 0.0
        %v3034 = vmax.f32 %v2984, 0.0
        %v3035 = vmax.f32 %v3025, 0.0
        %v3036 = vmax.f32 %v3027, 0.0
        %v3037 = vpack.c.bf16 %v3033, %v3029
        %v3038 = vpack.c.bf16 %v3034, %v3030
        %v3039 = vpack.c.bf16 %v3035, %v3031
        %v3040 = vpack.c.bf16 %v3036, %v3032
        %v3041 = vld [vmem:[%s754] sm:$0xf]
        %v3042 = vld [vmem:[%s754 + $0x4] sm:$0xf]
        %v3043 = vld [vmem:[%s754 + $0x8] sm:$0xf]
        %v3044 = vld [vmem:[%s754 + $0xc] sm:$0xf]
        %v3045 = vld [vmem:[%s754 + $0x10] sm:$0xf]
        %v3046 = vld [vmem:[%s754 + $0x14] sm:$0xf]
        %v3047 = vld [vmem:[%s754 + $0x18] sm:$0xf]
        %v3048 = vld [vmem:[%s754 + $0x1c] sm:$0xf]
        %v3049 = vld [vmem:[%s754 + $0x20] sm:$0xf]
        %v3050 = vld [vmem:[%s754 + $0x24] sm:$0xf]
        %v3051 = vld [vmem:[%s754 + $0x28] sm:$0xf]
        %v3052 = vld [vmem:[%s754 + $0x2c] sm:$0xf]
        %v3053 = vld [vmem:[%s754 + $0x30] sm:$0xf]
        %v3054 = vld [vmem:[%s754 + $0x34] sm:$0xf]
        %v3055 = vld [vmem:[%s754 + $0x38] sm:$0xf]
        %v3056 = vld [vmem:[%s754 + $0x3c] sm:$0xf]
        %v3057 = vld [vmem:[%s754 + $0x40] sm:$0xf]
        %v3058 = vld [vmem:[%s754 + $0x44] sm:$0xf]
        %v3059 = vld [vmem:[%s754 + $0x48] sm:$0xf]
        %v3060 = vld [vmem:[%s754 + $0x4c] sm:$0xf]
        %v3061 = vld [vmem:[%s754 + $0x50] sm:$0xf]
        %v3062 = vld [vmem:[%s754 + $0x54] sm:$0xf]
        %v3063 = vld [vmem:[%s754 + $0x58] sm:$0xf]
        %v3064 = vld [vmem:[%s754 + $0x5c] sm:$0xf]
        %v3065 = vld [vmem:[%s754 + $0x60] sm:$0xf]
        %v3066 = vld [vmem:[%s754 + $0x64] sm:$0xf]
        %v3067 = vld [vmem:[%s754 + $0x68] sm:$0xf]
        %v3068 = vld [vmem:[%s754 + $0x6c] sm:$0xf]
        %v3069 = vld [vmem:[%s754 + $0x70] sm:$0xf]
        %v3070 = vld [vmem:[%s754 + $0x74] sm:$0xf]
        %v3071 = vld [vmem:[%s754 + $0x78] sm:$0xf]
        %v3072 = vld [vmem:[%s754 + $0x7c] sm:$0xf]
        %v3073 = vld [vmem:[%s754 + $0x80] sm:$0xf]
        %v3074 = vld [vmem:[%s754 + $0x84] sm:$0xf]
        %v3075 = vld [vmem:[%s754 + $0x88] sm:$0xf]
        %v3076 = vld [vmem:[%s754 + $0x8c] sm:$0xf]
        %v3077 = vld [vmem:[%s754 + $0x90] sm:$0xf]
        %v3078 = vld [vmem:[%s754 + $0x94] sm:$0xf]
        %v3079 = vld [vmem:[%s754 + $0x98] sm:$0xf]
        %v3080 = vld [vmem:[%s754 + $0x9c] sm:$0xf]
        %v3081 = vld [vmem:[%s754 + $0xa0] sm:$0xf]
        %v3082 = vld [vmem:[%s754 + $0xa4] sm:$0xf]
        %v3083 = vld [vmem:[%s754 + $0xa8] sm:$0xf]
        %v3084 = vld [vmem:[%s754 + $0xac] sm:$0xf]
        %v3085 = vld [vmem:[%s754 + $0xb0] sm:$0xf]
        %v3086 = vld [vmem:[%s754 + $0xb4] sm:$0xf]
        %v3087 = vld [vmem:[%s754 + $0xb8] sm:$0xf]
        %v3088 = vld [vmem:[%s754 + $0xbc] sm:$0xf]
        %v3089 = vld [vmem:[%s754 + $0xc0] sm:$0xf]
        %v3090 = vld [vmem:[%s754 + $0xc4] sm:$0xf]
        %v3091 = vld [vmem:[%s754 + $0xc8] sm:$0xf]
        %v3092 = vld [vmem:[%s754 + $0xcc] sm:$0xf]
        %v3093 = vld [vmem:[%s754 + $0xd0] sm:$0xf]
        %v3094 = vld [vmem:[%s754 + $0xd4] sm:$0xf]
        %v3095 = vld [vmem:[%s754 + $0xd8] sm:$0xf]
        %v3096 = vld [vmem:[%s754 + $0xdc] sm:$0xf]
        %v3097 = vld [vmem:[%s754 + $0xe0] sm:$0xf]
        %v3098 = vld [vmem:[%s754 + $0xe4] sm:$0xf]
        %v3099 = vld [vmem:[%s754 + $0xe8] sm:$0xf]
        %v3100 = vld [vmem:[%s754 + $0xec] sm:$0xf]
        %v3101 = vld [vmem:[%s754 + $0xf0] sm:$0xf]
        %v3102 = vld [vmem:[%s754 + $0xf4] sm:$0xf]
        %v3103 = vld [vmem:[%s754 + $0xf8] sm:$0xf]
        %v3104 = vld [vmem:[%s754 + $0xfc] sm:$0xf]
        %v3105 = vld [vmem:[%s848] sm:$0x1]
        %v3107 = vlaneseq
        %v3108 = vshrl.u32 %v3107, 7
        %v3109 = vsub.s32 0, %v3108
        %v3110 = vrot.slane %v3105, %v3109
        %v3176 = vunpack.c.l.b16 %v3041
        %v3177 = vunpack.c.l.b16 %v3042
        %v3178 = vunpack.c.l.b16 %v3043
        %v3179 = vunpack.c.l.b16 %v3044
        %v3180 = vunpack.c.l.b16 %v3045
        %v3181 = vunpack.c.l.b16 %v3046
        %v3182 = vunpack.c.l.b16 %v3047
        %v3183 = vunpack.c.l.b16 %v3048
        %v3184 = vunpack.c.l.b16 %v3049
        %v3185 = vunpack.c.l.b16 %v3050
        %v3186 = vunpack.c.l.b16 %v3051
        %v3187 = vunpack.c.l.b16 %v3052
        %v3188 = vunpack.c.l.b16 %v3053
        %v3189 = vunpack.c.l.b16 %v3054
        %v3190 = vunpack.c.l.b16 %v3055
        %v3191 = vunpack.c.l.b16 %v3056
        %v3192 = vunpack.c.l.b16 %v3057
        %v3193 = vunpack.c.l.b16 %v3058
        %v3194 = vunpack.c.l.b16 %v3059
        %v3195 = vunpack.c.l.b16 %v3060
        %v3196 = vunpack.c.l.b16 %v3061
        %v3197 = vunpack.c.l.b16 %v3062
        %v3198 = vunpack.c.l.b16 %v3063
        %v3199 = vunpack.c.l.b16 %v3064
        %v3200 = vunpack.c.l.b16 %v3065
        %v3201 = vunpack.c.l.b16 %v3066
        %v3202 = vunpack.c.l.b16 %v3067
        %v3203 = vunpack.c.l.b16 %v3068
        %v3204 = vunpack.c.l.b16 %v3069
        %v3205 = vunpack.c.l.b16 %v3070
        %v3206 = vunpack.c.l.b16 %v3071
        %v3207 = vunpack.c.l.b16 %v3072
        %v3208 = vunpack.c.l.b16 %v3073
        %v3209 = vunpack.c.l.b16 %v3074
        %v3210 = vunpack.c.l.b16 %v3075
        %v3211 = vunpack.c.l.b16 %v3076
        %v3212 = vunpack.c.l.b16 %v3077
        %v3213 = vunpack.c.l.b16 %v3078
        %v3214 = vunpack.c.l.b16 %v3079
        %v3215 = vunpack.c.l.b16 %v3080
        %v3216 = vunpack.c.l.b16 %v3081
        %v3217 = vunpack.c.l.b16 %v3082
        %v3218 = vunpack.c.l.b16 %v3083
        %v3219 = vunpack.c.l.b16 %v3084
        %v3220 = vunpack.c.l.b16 %v3085
        %v3221 = vunpack.c.l.b16 %v3086
        %v3222 = vunpack.c.l.b16 %v3087
        %v3223 = vunpack.c.l.b16 %v3088
        %v3224 = vunpack.c.l.b16 %v3089
        %v3225 = vunpack.c.l.b16 %v3090
        %v3226 = vunpack.c.l.b16 %v3091
        %v3227 = vunpack.c.l.b16 %v3092
        %v3228 = vunpack.c.l.b16 %v3093
        %v3229 = vunpack.c.l.b16 %v3094
        %v3230 = vunpack.c.l.b16 %v3095
        %v3231 = vunpack.c.l.b16 %v3096
        %v3232 = vunpack.c.l.b16 %v3097
        %v3233 = vunpack.c.l.b16 %v3098
        %v3234 = vunpack.c.l.b16 %v3099
        %v3235 = vunpack.c.l.b16 %v3100
        %v3236 = vunpack.c.l.b16 %v3101
        %v3237 = vunpack.c.l.b16 %v3102
        %v3238 = vunpack.c.l.b16 %v3103
        %v3239 = vunpack.c.l.b16 %v3104
        %v3240 = vpack.c.b16 %v3177, %v3176
        %v3241 = vpack.c.b16 %v3179, %v3178
        %v3242 = vpack.c.b16 %v3181, %v3180
        %v3243 = vpack.c.b16 %v3183, %v3182
        %v3244 = vpack.c.b16 %v3185, %v3184
        %v3245 = vpack.c.b16 %v3187, %v3186
        %v3246 = vpack.c.b16 %v3189, %v3188
        %v3247 = vpack.c.b16 %v3191, %v3190
        %v3248 = vpack.c.b16 %v3193, %v3192
        %v3249 = vpack.c.b16 %v3195, %v3194
        %v3250 = vpack.c.b16 %v3197, %v3196
        %v3251 = vpack.c.b16 %v3199, %v3198
        %v3252 = vpack.c.b16 %v3201, %v3200
        %v3253 = vpack.c.b16 %v3203, %v3202
        %v3254 = vpack.c.b16 %v3205, %v3204
        %v3255 = vpack.c.b16 %v3207, %v3206
        %v3256 = vpack.c.b16 %v3209, %v3208
        %v3257 = vpack.c.b16 %v3211, %v3210
        %v3258 = vpack.c.b16 %v3213, %v3212
        %v3259 = vpack.c.b16 %v3215, %v3214
        %v3260 = vpack.c.b16 %v3217, %v3216
        %v3261 = vpack.c.b16 %v3219, %v3218
        %v3262 = vpack.c.b16 %v3221, %v3220
        %v3263 = vpack.c.b16 %v3223, %v3222
        %v3264 = vpack.c.b16 %v3225, %v3224
        %v3265 = vpack.c.b16 %v3227, %v3226
        %v3266 = vpack.c.b16 %v3229, %v3228
        %v3267 = vpack.c.b16 %v3231, %v3230
        %v3268 = vpack.c.b16 %v3233, %v3232
        %v3269 = vpack.c.b16 %v3235, %v3234
        %v3270 = vpack.c.b16 %v3237, %v3236
        %v3271 = vpack.c.b16 %v3239, %v3238
        %3304 = vmatprep.subr.bf16.mxu0 0
        %3305 = vmatpush1.bf16.msra.mxu0 %v3240
        %3306 = vmatprep.subr.bf16.mxu0 0
        %3307 = vmatpush1.bf16.msra.mxu0 %v3241
        %3308 = vmatprep.subr.bf16.mxu0 0
        %3309 = vmatpush1.bf16.msra.mxu0 %v3242
        %3310 = vmatprep.subr.bf16.mxu0 0
        %3311 = vmatpush1.bf16.msra.mxu0 %v3243
        %3312 = vmatprep.subr.bf16.mxu0 0
        %3313 = vmatpush1.bf16.msra.mxu0 %v3244
        %3314 = vmatprep.subr.bf16.mxu0 0
        %3315 = vmatpush1.bf16.msra.mxu0 %v3245
        %3316 = vmatprep.subr.bf16.mxu0 0
        %3317 = vmatpush1.bf16.msra.mxu0 %v3246
        %3318 = vmatprep.subr.bf16.mxu0 0
        %3319 = vmatpush1.bf16.msra.mxu0 %v3247
        %3320 = vmatprep.subr.bf16.mxu0 0
        %3321 = vmatpush1.bf16.msra.mxu0 %v3248
        %3322 = vmatprep.subr.bf16.mxu0 0
        %3323 = vmatpush1.bf16.msra.mxu0 %v3249
        %3324 = vmatprep.subr.bf16.mxu0 0
        %3325 = vmatpush1.bf16.msra.mxu0 %v3250
        %3326 = vmatprep.subr.bf16.mxu0 0
        %3327 = vmatpush1.bf16.msra.mxu0 %v3251
        %3328 = vmatprep.subr.bf16.mxu0 0
        %3329 = vmatpush1.bf16.msra.mxu0 %v3252
        %3330 = vmatprep.subr.bf16.mxu0 0
        %3331 = vmatpush1.bf16.msra.mxu0 %v3253
        %3332 = vmatprep.subr.bf16.mxu0 0
        %3333 = vmatpush1.bf16.msra.mxu0 %v3254
        %3334 = vmatprep.subr.bf16.mxu0 0
        %3335 = vmatpush1.bf16.msra.mxu0 %v3255
        %3336 = vmatprep.mubr.bf16.mxu0 %v3038
        %3337 = vmatmul.mubr.bf16.gmra.mrb[0].mxu0 %v3037
        %v3338 = vpop.f32.mrb[0].mxu0
        %v3339 = vadd.f32 %v3110, %v3338
        %v3340 = vpop.f32.mrb[0].mxu0
        %v3341 = vpop.f32.mrb[0].mxu0
        %v3342 = vadd.f32 %v3110, %v3341
        %v3343 = vpop.f32.mrb[0].mxu0
        %3344 = vdwg.mxu0
        %3345 = vmatprep.subr.bf16.mxu0 0
        %3346 = vmatpush1.bf16.msra.mxu0 %v3256
        %3347 = vmatprep.subr.bf16.mxu0 0
        %3348 = vmatpush1.bf16.msra.mxu0 %v3257
        %3349 = vmatprep.subr.bf16.mxu0 0
        %3350 = vmatpush1.bf16.msra.mxu0 %v3258
        %3351 = vmatprep.subr.bf16.mxu0 0
        %3352 = vmatpush1.bf16.msra.mxu0 %v3259
        %3353 = vmatprep.subr.bf16.mxu0 0
        %3354 = vmatpush1.bf16.msra.mxu0 %v3260
        %3355 = vmatprep.subr.bf16.mxu0 0
        %3356 = vmatpush1.bf16.msra.mxu0 %v3261
        %3357 = vmatprep.subr.bf16.mxu0 0
        %3358 = vmatpush1.bf16.msra.mxu0 %v3262
        %3359 = vmatprep.subr.bf16.mxu0 0
        %3360 = vmatpush1.bf16.msra.mxu0 %v3263
        %3361 = vmatprep.subr.bf16.mxu0 0
        %3362 = vmatpush1.bf16.msra.mxu0 %v3264
        %3363 = vmatprep.subr.bf16.mxu0 0
        %3364 = vmatpush1.bf16.msra.mxu0 %v3265
        %3365 = vmatprep.subr.bf16.mxu0 0
        %3366 = vmatpush1.bf16.msra.mxu0 %v3266
        %3367 = vmatprep.subr.bf16.mxu0 0
        %3368 = vmatpush1.bf16.msra.mxu0 %v3267
        %3369 = vmatprep.subr.bf16.mxu0 0
        %3370 = vmatpush1.bf16.msra.mxu0 %v3268
        %3371 = vmatprep.subr.bf16.mxu0 0
        %3372 = vmatpush1.bf16.msra.mxu0 %v3269
        %3373 = vmatprep.subr.bf16.mxu0 0
        %3374 = vmatpush1.bf16.msra.mxu0 %v3270
        %3375 = vmatprep.subr.bf16.mxu0 0
        %3376 = vmatpush1.bf16.msra.mxu0 %v3271
        %3377 = vmatprep.mubr.bf16.mxu0 %v3040
        %3378 = vmatmul.mubr.bf16.gmra.mrb[0].mxu0 %v3039
        %v3379 = vpop.f32.mrb[0].mxu0
        %v3380 = vadd.f32 %v3339, %v3379
        %v3381 = vpop.f32.mrb[0].mxu0
        %v3382 = vpop.f32.mrb[0].mxu0
        %v3383 = vadd.f32 %v3342, %v3382
        %v3384 = vpop.f32.mrb[0].mxu0
        %3385 = vdwg.mxu0
        %v3386 = vadd.f32 %v2726, %v3380
        %v3387 = vadd.f32 %v2727, %v3383
        %3388 = vadd.xlane.f32.xlu0 %v3386
        %v3389 = vpop.xlane.xlu0 %3388
        %3390 = vadd.xlane.f32.xlu0 %v3387
        %v3391 = vpop.xlane.xlu0 %3390
        %v3392 = vmul.f32 %v3389, %v2546
        %v3393 = vmul.f32 %v3391, %v2546
        %v3394 = vsub.f32 %v3386, %v3392
        %v3395 = vsub.f32 %v3387, %v3393
        %v3396 = vmul.f32 %v3394, %v3394
        %v3397 = vmul.f32 %v3395, %v3395
        %3398 = vadd.xlane.f32.xlu0 %v3396
        %v3399 = vpop.xlane.xlu0 %3398
        %3400 = vadd.xlane.f32.xlu0 %v3397
        %v3401 = vpop.xlane.xlu0 %3400
        %v3402 = vmul.f32 %v3399, %v2546
        %v3403 = vmul.f32 %v3401, %v2546
        %v3404 = vadd.f32 %v3402, 1e-05
        %v3405 = vadd.f32 %v3403, 1e-05
        %v3406 = vrsqrt.pop %v3404
        %v3407 = vrsqrt.pop %v3405
        %v3408 = vmul.f32 %v3394, %v3406
        %v3409 = vmul.f32 %v3395, %v3407
        %v3410 = vlaneseq
        %v3411 = vshrl.u32 %v3410, 7
        %v3412 = vsub.s32 4, %v3411
        %v3413 = vrot.slane %v1061, %v3412
        %v3414 = vmul.f32 %v3408, %v3413
        %v3415 = vmul.f32 %v3409, %v3413
        %v3416 = vlaneseq
        %v3417 = vshrl.u32 %v3416, 7
        %v3418 = vsub.s32 5, %v3417
        %v3419 = vrot.slane %v1061, %v3418
        %v3420 = vadd.f32 %v3414, %v3419
        %v3421 = vadd.f32 %v3415, %v3419
        %3422 = vst [vmem:[#allocation18] sm:$0xff] %v3420
        %3423 = vst [vmem:[#allocation18 + $0x8] sm:$0xff] %v3421
        // Predicated region
        $region137: #{tpu_custom_call.1} parent=91 // pred_check
          %p3424 = pneg %p470
        $region138: #{tpu_custom_call.1} parent=91 // pred_check_branch
          %3426 = sbr.rel (%p3424) target = $region140
        $region139: #{tpu_custom_call.1} parent=91 // pred_region
          %s3428 = ssub.s32 256, 256
          %3429 = vsyncadd [#allocation5], %s3428
          %s3430 = sshll.u32 [#allocation18], 4
          %s3431 = int_to_ptr.vmem [resolvable:$true] %s3430
          %3436 = dma.vmem_to_hbm [thread:$0]  %s3431, 256, %s18, [#allocation5], 128, 128, 8
        $region140: #{tpu_custom_call.1} parent=91 // pred_fallthru
          _
        // Predicated region
        $region141: #{tpu_custom_call.1} parent=91 // pred_check
          %p3437 = pneg %p470
        $region142: #{tpu_custom_call.1} parent=91 // pred_check_branch
          %3439 = sbr.rel (%p3437) target = $region144
        $region143: #{tpu_custom_call.1} parent=91 // pred_region
          %3440 = dma.done [#allocation5], 256
        $region144: #{tpu_custom_call.1} parent=91 // pred_fallthru
          _
      $region92: #{tpu_custom_call.1} parent=5 // pred_fallthru
        _
      %p3441 = scmp.le.s32.totalorder 2, %s29
      // Predicated region
      $region145: #{tpu_custom_call.1} parent=5 // pred_check
        %p3442 = pneg %p3441
      $region146: #{tpu_custom_call.1} parent=5 // pred_check_branch
        %3444 = sbr.rel (%p3442) target = $region148
      $region147: #{tpu_custom_call.1} parent=5 // pred_region
        %s3445 = ssub.s32 %s29, 2
      $region148: #{tpu_custom_call.1} parent=5 // pred_fallthru
        _
    $region6: #{tpu_custom_call.1} parent=1 // loop_footer
      %s33 = sadd.s32 1, %s29
    $region7: #{tpu_custom_call.1} parent=1 // loop_footer_branch
      %28 = sbr.rel target = $region3
    $region8: #{tpu_custom_call.1} parent=1 // loop_exit
      _
    %3446 = vsyncpa [#allocation4], 1
    %s3447 = scalar_lea.sflag [#allocation4], 1
    %3448 = vsyncpa %s3447, 1
    %3449 = vsyncpa [#allocation7], 1
    %3450 = vsyncpa [#allocation10], 1
    %3451 = vsyncpa [#allocation13], 1
    %3452 = vsyncpa [#allocation5], 1
    %s3453 = scalar_lea.sflag [#allocation5], 1
    %3454 = vsyncpa %s3453, 1

</llo_original>
